<compile_context>
chip_gen: v7x
topology: tpu7x:2x2x1
jax: 0.10.0
libtpu: 0.0.40
codegen_flags: <defaults>
</compile_context>

<pallas_src>
import functools

import jax
import jax.numpy as jnp
from jax.experimental import pallas as pl
from jax.experimental.pallas import tpu as pltpu


def _round_up(x, m):
    return ((x + m - 1) // m) * m


def _butd_attention_kernel(q_ref, r_ref, wq_ref, bq_ref, wr_ref, br_ref,
                           wa_ref, ba_ref, attended_ref, attn_ref,
                           *, num_regions, h_chunk, approx_recip, dot_precision):
    """One batch tile (TB rows) per grid step.

    q_ref        : (TB, Dq)       question features (bf16 in the default fast path)
    r_ref        : (TB*Np, Dr)    region features, regions flattened into rows
    wq_ref       : (Dq, H), bq_ref: (1, H) f32
    wr_ref       : (Dr, H), br_ref: (1, H) f32
    wa_ref       : (1, H) f32     attention head as a row (H -> 1 projection)
    ba_ref       : (1, 1) f32     scalar bias (SMEM)
    attended_ref : (TB, H)  f32
    attn_ref     : (TB, Np) f32   lane-dense attention weights (Np = N rounded up to 8)
    """
    tb, n_pad = attn_ref.shape
    h = attended_ref.shape[1]

    dot_kwargs = dict(preferred_element_type=jnp.float32)
    if dot_precision is not None:
        dot_kwargs["precision"] = dot_precision

    # Projections (MXU, f32 accumulation).  Region projection is ONE big matmul.
    pq = jnp.dot(q_ref[...], wq_ref[...], **dot_kwargs) + bq_ref[...]        # (TB, H)
    pr = jnp.dot(r_ref[...], wr_ref[...], **dot_kwargs) + br_ref[...]        # (TB*Np, H)

    # Recover the per-batch region structure.  Np is a multiple of 8 and the lane
    # dim (H) is unchanged, so this reshape is tile-aligned (metadata only).
    pr3 = pr.reshape(tb, n_pad, h)                                           # (TB, Np, H)

    wa_row = wa_ref[...]                                                     # (1, H)
    ba = ba_ref[0, 0]

    # Attention logits accumulated over H in lane chunks: the (TB, Np, H) tanh tensor
    # is never materialized at once, which bounds VMEM/vreg pressure -> larger TB.
    logits = jnp.zeros((tb, n_pad), jnp.float32)
    for c0 in range(0, h, h_chunk):
        c1 = min(c0 + h_chunk, h)
        comb = jnp.tanh(pq[:, None, c0:c1] + pr3[:, :, c0:c1])               # (TB, Np, c)
        logits = logits + jnp.sum(comb * wa_row[:, c0:c1][None], axis=-1)    # (TB, Np)
    logits = logits + ba

    # Mask padded regions (branch is static: only emitted when Np != N).
    if n_pad != num_regions:
        lane = jax.lax.broadcasted_iota(jnp.int32, (tb, n_pad), 1)
        logits = jnp.where(lane < num_regions, logits, -1e30)

    # Softmax over the region (lane) axis, per batch row.
    m = jnp.max(logits, axis=-1, keepdims=True)
    e = jnp.exp(logits - m)
    s = jnp.sum(e, axis=-1, keepdims=True)
    if approx_recip:
        attn = e * pl.reciprocal(s, approx=True)   # EUP slot; keeps the VPU free
    else:
        attn = e / s                               # exact path for tight f32 checks
    attn_ref[...] = attn

    # attended = sum over regions of attn * projected_regions, H-chunked as above.
    for c0 in range(0, h, h_chunk):
        c1 = min(c0 + h_chunk, h)
        attended_ref[:, c0:c1] = jnp.sum(attn[:, :, None] * pr3[:, :, c0:c1], axis=1)


def _vmem_limits():
    """Generation-aware scoped-VMEM limit and tile-sizing budget (bytes)."""
    cap = 64 << 20                     # conservative fallback (v7x per-TC capacity)
    try:
        info = pltpu.get_tpu_info()
        cap = int(getattr(info, "vmem_capacity_bytes", cap)) or cap
    except Exception:
        pass
    limit = max((3 * cap) // 4, 32 << 20)       # ~96 MiB on v5e/v6e, ~48 MiB on v7x
    budget = max(limit - (8 << 20), 16 << 20)   # headroom for Mosaic internal scratch
    return limit, budget


def _vmem_bytes(tb, n_pad, dq, dr, h, in_bytes, weight_bufs, h_chunk):
    f32 = 4
    io = 2 * tb * (dq + n_pad * dr) * in_bytes            # double-buffered inputs
    io += 2 * tb * (h + n_pad) * f32                      # double-buffered outputs
    weights = weight_bufs * (dq + dr) * h * in_bytes + 2 * 3 * h * f32
    inter = 2 * tb * n_pad * h * f32 + 2 * tb * n_pad * h_chunk * f32
    return io + weights + inter


def _pick_batch_tile(batch, n_pad, dq, dr, h, in_bytes, weight_bufs, h_chunk, budget):
    tb = _round_up(batch, 8)
    # Keep >= 2 grid steps when the batch allows it so dimension_semantics=("parallel",)
    # can shard steps across the two TensorCores of a v7x chip (harmless on v5e/v6e).
    if batch > 8:
        tb = min(tb, _round_up(pl.cdiv(batch, 2), 8))
    while tb > 8 and _vmem_bytes(tb, n_pad, dq, dr, h, in_bytes,
                                 weight_bufs, h_chunk) > budget:
        tb -= 8
    return max(tb, 8)


def topdown_attention(question_features, region_features, params, *,
                      batch_tile=None, use_bf16=True):
    """Pallas BUTD attention. Returns (attended (B, H) f32, attention_weights (B, N) f32).

    use_bf16=True (default) runs the two MXU projections with bf16 operands and f32
    accumulation; set False for a bit-accurate f32 path (tight reference checks).
    """
    B, Dq = question_features.shape
    _, N, Dr = region_features.shape
    wq, bq, wr, br, wa, ba = params
    H = wq.shape[1]

    in_dtype = jnp.bfloat16 if use_bf16 else jnp.float32
    in_bytes = jnp.dtype(in_dtype).itemsize

    N_pad = _round_up(N, 8)        # keeps the in-kernel (TB*Np, H)->(TB, Np, H) reshape aligned
    h_chunk = min(H, 256)          # lane-chunk for the tanh/logit and attended passes

    vmem_limit, vmem_budget = _vmem_limits()
    if batch_tile is not None:
        tb = _round_up(batch_tile, 8)
    else:
        tb = _pick_batch_tile(B, N_pad, Dq, Dr, H, in_bytes,
                              weight_bufs=1, h_chunk=h_chunk, budget=vmem_budget)
    B_pad = _round_up(B, tb)

    # Operand prep: bf16 casts (MXU operands only) plus the padding needed to keep
    # every block 8-row aligned.  Under jit the cast/pad/flatten fuse into a single
    # pass and are no-ops when the caller already supplies bf16, 8-aligned inputs.
    # TODO(synk): accept a pre-padded bf16 (B, N_pad, Dr) region layout from the data
    # pipeline so even that single prep pass disappears from the hot path.
    q = question_features.astype(in_dtype)
    r = region_features.astype(in_dtype)
    if B_pad != B:
        q = jnp.pad(q, ((0, B_pad - B), (0, 0)))
    if B_pad != B or N_pad != N:
        r = jnp.pad(r, ((0, B_pad - B), (0, N_pad - N), (0, 0)))
    r2 = r.reshape(B_pad * N_pad, Dr)      # free: contiguous row-major view in HBM

    wq_c = wq.astype(in_dtype)
    wr_c = wr.astype(in_dtype)
    bq_c = bq.astype(jnp.float32)
    br_c = br.astype(jnp.float32)
    wa_c = wa.astype(jnp.float32)
    ba_c = ba.astype(jnp.float32)

    kernel = functools.partial(
        _butd_attention_kernel,
        num_regions=N, h_chunk=h_chunk, approx_recip=use_bf16,
        dot_precision=None if use_bf16 else jax.lax.Precision.HIGHEST)

    cost = pl.CostEstimate(
        flops=int(2 * B_pad * H * (Dq + N_pad * Dr + 2 * N_pad)),
        transcendentals=int(B_pad * N_pad * (H + 1)),
        bytes_accessed=int(B_pad * (Dq + N_pad * Dr) * in_bytes
                           + (Dq + Dr + 3) * H * in_bytes
                           + B_pad * (H + N_pad) * 4))

    out_shape = (jax.ShapeDtypeStruct((B_pad, H), jnp.float32),
                 jax.ShapeDtypeStruct((B_pad, N_pad), jnp.float32))

    def _in_specs(single_buffer_weights):
        wkw = {"pipeline_mode": pl.Buffered(1)} if single_buffer_weights else {}
        return [
            pl.BlockSpec((tb, Dq), lambda b: (b, 0)),            # question tile
            pl.BlockSpec((tb * N_pad, Dr), lambda b: (b, 0)),    # flattened region tile
            pl.BlockSpec((Dq, H), lambda b: (0, 0), **wkw),      # Wq (resident)
            pl.BlockSpec((1, H), lambda b: (0, 0), **wkw),       # bq
            pl.BlockSpec((Dr, H), lambda b: (0, 0), **wkw),      # Wr (resident)
            pl.BlockSpec((1, H), lambda b: (0, 0), **wkw),       # br
            pl.BlockSpec((1, H), lambda b: (0, 0), **wkw),       # wa (row)
            pl.BlockSpec(memory_space=pltpu.MemorySpace.SMEM),   # ba scalar
        ]

    out_specs = [
        pl.BlockSpec((tb, H), lambda b: (b, 0)),                 # attended features
        pl.BlockSpec((tb, N_pad), lambda b: (b, 0)),             # lane-dense attn weights
    ]

    def _call(single_buffer_weights):
        return pl.pallas_call(
            kernel,
            out_shape=out_shape,
            grid_spec=pltpu.PrefetchScalarGridSpec(
                num_scalar_prefetch=0,
                grid=(B_pad // tb,),
                in_specs=_in_specs(single_buffer_weights),
                out_specs=out_specs),
            compiler_params=pltpu.CompilerParams(
                dimension_semantics=("parallel",),
                vmem_limit_bytes=vmem_limit),
            cost_estimate=cost,
        )(q, r2, wq_c, bq_c, wr_c, br_c, wa_c, ba_c)

    try:
        # Single-buffer the constant-index weight blocks (halves their VMEM footprint).
        attended, attn = _call(single_buffer_weights=True)
    except Exception:
        # pl.Buffered(1) not accepted by this jax/libtpu combo -> default buffering.
        attended, attn = _call(single_buffer_weights=False)

    return attended[:B], attn[:B, :N]


def make_params(key, question_dim, region_dim, hidden_dim):
    """Deterministic synthetic parameters with the same shapes as the nn.Linear layers,
    pre-transposed to (in_dim, out_dim); the attention head is stored as a (1, H) row."""
    k1, k2, k3, k4, k5, k6 = jax.random.split(key, 6)
    wq = jax.random.normal(k1, (question_dim, hidden_dim), jnp.float32) * 0.1
    bq = jax.random.normal(k2, (1, hidden_dim), jnp.float32) * 0.1
    wr = jax.random.normal(k3, (region_dim, hidden_dim), jnp.float32) * 0.1
    br = jax.random.normal(k4, (1, hidden_dim), jnp.float32) * 0.1
    wa = jax.random.normal(k5, (1, hidden_dim), jnp.float32) * 0.1
    ba = jax.random.normal(k6, (1, 1), jnp.float32) * 0.1
    return wq, bq, wr, br, wa, ba


def reference(question_features, region_features, params):
    """Pure-JAX reference of the PyTorch forward (full f32 matmul precision)."""
    wq, bq, wr, br, wa, ba = params
    hi = jax.lax.Precision.HIGHEST
    pq = jnp.dot(question_features, wq, precision=hi) + bq[0]                    # (B, H)
    pr = jnp.einsum('bnd,dh->bnh', region_features, wr, precision=hi) + br[0]    # (B, N, H)
    combined = jnp.tanh(pq[:, None, :] + pr)                                     # (B, N, H)
    logits = jnp.einsum('bnh,h->bn', combined, wa[0], precision=hi) + ba[0, 0]
    attn = jax.nn.softmax(logits, axis=-1)                                       # over regions
    attended = jnp.sum(attn[..., None] * pr, axis=1)                             # (B, H)
    return attended, attn


if __name__ == "__main__":
    master = jax.random.PRNGKey(0)

    def run_case(case_id, B, N, Dq, Dr, H, batch_tile=None):
        kq, kr, kp = jax.random.split(jax.random.fold_in(master, case_id), 3)
        q = jax.random.normal(kq, (B, Dq), jnp.float32)
        r = jax.random.normal(kr, (B, N, Dr), jnp.float32)
        params = make_params(kp, Dq, Dr, H)
        ref_att, ref_w = reference(q, r, params)

        # Exact f32 path: tight semantic check (masking, softmax, attended sum).
        att, w = topdown_attention(q, r, params, batch_tile=batch_tile, use_bf16=False)
        jax.block_until_ready((att, w))
        assert att.shape == (B, H) and w.shape == (B, N)
        assert jnp.allclose(att, ref_att, atol=1e-4, rtol=1e-4)
        assert jnp.allclose(w, ref_w, atol=1e-4, rtol=1e-4)

        # Default bf16-MXU fast path: looser tolerance (bf16 operands, f32 accumulation).
        att16, w16 = topdown_attention(q, r, params, batch_tile=batch_tile, use_bf16=True)
        jax.block_until_ready((att16, w16))
        assert att16.shape == (B, H) and w16.shape == (B, N)
        assert jnp.allclose(att16, ref_att, atol=3e-2, rtol=3e-2)
        assert jnp.allclose(w16, ref_w, atol=3e-2, rtol=3e-2)

    # Aligned small case: single grid step, no padding.
    run_case(0, B=2, N=8, Dq=32, Dr=32, H=32)
    # Padding / masking / multi-step case: N=36 -> Np=40 region mask, B=13 -> batch pad,
    # forced batch_tile=8 -> 2 grid steps (exercises the megacore-style grid).
    run_case(1, B=13, N=36, Dq=64, Dr=96, H=48, batch_tile=8)

    print("KERNEL_OK")
</pallas_src>

<mosaic_0001>
module attributes {stable_mosaic.version = 11 : i64} {
  func.func @_butd_attention_kernel(%arg0: i32, %arg1: memref<8x32xf32, #tpu.memory_space<vmem>>, %arg2: memref<64x32xf32, #tpu.memory_space<vmem>>, %arg3: memref<32x32xf32, #tpu.memory_space<vmem>>, %arg4: memref<1x32xf32, #tpu.memory_space<vmem>>, %arg5: memref<32x32xf32, #tpu.memory_space<vmem>>, %arg6: memref<1x32xf32, #tpu.memory_space<vmem>>, %arg7: memref<1x32xf32, #tpu.memory_space<vmem>>, %arg8: memref<1x1xf32, #tpu.memory_space<smem>>, %arg9: memref<8x32xf32, #tpu.memory_space<vmem>>, %arg10: memref<8x8xf32, #tpu.memory_space<vmem>>) attributes {dimension_semantics = [#tpu.dimension_semantics<parallel>], iteration_bounds = array<i64: 1>, scalar_prefetch = 0 : i64, scratch_operands = 0 : i64, tpu.core_type = #tpu.core_type<tc>, window_params = [{transform_indices = @transform_0, window_bounds = array<i64: 8, 32>}, {transform_indices = @transform_1, window_bounds = array<i64: 64, 32>}, {pipeline_mode = #tpu.pipeline_mode<synchronous>, transform_indices = @transform_2, window_bounds = array<i64: 32, 32>}, {pipeline_mode = #tpu.pipeline_mode<synchronous>, transform_indices = @transform_3, window_bounds = array<i64: 1, 32>}, {pipeline_mode = #tpu.pipeline_mode<synchronous>, transform_indices = @transform_4, window_bounds = array<i64: 32, 32>}, {pipeline_mode = #tpu.pipeline_mode<synchronous>, transform_indices = @transform_5, window_bounds = array<i64: 1, 32>}, {pipeline_mode = #tpu.pipeline_mode<synchronous>, transform_indices = @transform_6, window_bounds = array<i64: 1, 32>}, {transform_indices = @transform_7, window_bounds = array<i64: 1, 1>}, {transform_indices = @transform_8, window_bounds = array<i64: 8, 32>}, {transform_indices = @transform_9, window_bounds = array<i64: 8, 8>}]} {
    %c0 = arith.constant 0 : index
    %c0_0 = arith.constant 0 : index
    %0 = vector.load %arg1[%c0, %c0_0] : memref<8x32xf32, #tpu.memory_space<vmem>>, vector<8x32xf32>
    %c0_1 = arith.constant 0 : index
    %c0_2 = arith.constant 0 : index
    %1 = vector.load %arg3[%c0_1, %c0_2] : memref<32x32xf32, #tpu.memory_space<vmem>>, vector<32x32xf32>
    %cst = arith.constant dense<0.000000e+00> : vector<8x32xf32>
    %2 = tpu.matmul %0, %1, %cst {dimension_numbers = #tpu.dot_dimension_numbers<[1], [0], [0], [1], [0, 0, 1, 1], [], []>, precision = #tpu.contract_precision<fp32>} : vector<8x32xf32>, vector<32x32xf32>, vector<8x32xf32> -> vector<8x32xf32>
    %c0_3 = arith.constant 0 : index
    %c0_4 = arith.constant 0 : index
    %3 = vector.load %arg4[%c0_3, %c0_4] : memref<1x32xf32, #tpu.memory_space<vmem>>, vector<1x32xf32>
    %4 = vector.broadcast %3 : vector<1x32xf32> to vector<8x32xf32>
    %5 = arith.addf %2, %4 : vector<8x32xf32>
    %c0_5 = arith.constant 0 : index
    %c0_6 = arith.constant 0 : index
    %6 = vector.load %arg2[%c0_5, %c0_6] : memref<64x32xf32, #tpu.memory_space<vmem>>, vector<64x32xf32>
    %c0_7 = arith.constant 0 : index
    %c0_8 = arith.constant 0 : index
    %7 = vector.load %arg5[%c0_7, %c0_8] : memref<32x32xf32, #tpu.memory_space<vmem>>, vector<32x32xf32>
    %cst_9 = arith.constant dense<0.000000e+00> : vector<64x32xf32>
    %8 = tpu.matmul %6, %7, %cst_9 {dimension_numbers = #tpu.dot_dimension_numbers<[1], [0], [0], [1], [0, 0, 1, 1], [], []>, precision = #tpu.contract_precision<fp32>} : vector<64x32xf32>, vector<32x32xf32>, vector<64x32xf32> -> vector<64x32xf32>
    %c0_10 = arith.constant 0 : index
    %c0_11 = arith.constant 0 : index
    %9 = vector.load %arg6[%c0_10, %c0_11] : memref<1x32xf32, #tpu.memory_space<vmem>>, vector<1x32xf32>
    %10 = vector.broadcast %9 : vector<1x32xf32> to vector<64x32xf32>
    %11 = arith.addf %8, %10 : vector<64x32xf32>
    %12 = vector.shape_cast %11 : vector<64x32xf32> to vector<8x8x32xf32>
    %c0_12 = arith.constant 0 : index
    %c0_13 = arith.constant 0 : index
    %13 = vector.load %arg7[%c0_12, %c0_13] : memref<1x32xf32, #tpu.memory_space<vmem>>, vector<1x32xf32>
    %c0_14 = arith.constant 0 : index
    %c0_15 = arith.constant 0 : index
    %14 = memref.load %arg8[%c0_14, %c0_15] : memref<1x1xf32, #tpu.memory_space<smem>>
    %cst_16 = arith.constant 0.000000e+00 : f32
    %15 = vector.broadcast %cst_16 : f32 to vector<8x8xf32>
    %16 = vector.shape_cast %5 : vector<8x32xf32> to vector<8x1x32xf32>
    %17 = vector.broadcast %16 : vector<8x1x32xf32> to vector<8x8x32xf32>
    %18 = arith.addf %17, %12 : vector<8x8x32xf32>
    %19 = math.tanh %18 : vector<8x8x32xf32>
    %20 = vector.shape_cast %13 : vector<1x32xf32> to vector<1x1x32xf32>
    %21 = vector.broadcast %20 : vector<1x1x32xf32> to vector<8x8x32xf32>
    %22 = arith.mulf %19, %21 : vector<8x8x32xf32>
    %cst_17 = arith.constant dense<0.000000e+00> : vector<8x8xf32>
    %23 = vector.multi_reduction <add>, %22, %cst_17 [2] : vector<8x8x32xf32> to vector<8x8xf32>
    %24 = arith.addf %15, %23 : vector<8x8xf32>
    %25 = vector.broadcast %14 : f32 to vector<8x8xf32>
    %26 = arith.addf %24, %25 : vector<8x8xf32>
    %cst_18 = arith.constant dense<0xFF800000> : vector<8xf32>
    %27 = vector.multi_reduction <maximumf>, %26, %cst_18 [1] : vector<8x8xf32> to vector<8xf32>
    %28 = vector.shape_cast %27 : vector<8xf32> to vector<8x1xf32>
    %29 = vector.broadcast %28 : vector<8x1xf32> to vector<8x8xf32>
    %30 = arith.subf %26, %29 : vector<8x8xf32>
    %31 = math.exp %30 : vector<8x8xf32>
    %cst_19 = arith.constant dense<0.000000e+00> : vector<8xf32>
    %32 = vector.multi_reduction <add>, %31, %cst_19 [1] : vector<8x8xf32> to vector<8xf32>
    %33 = vector.shape_cast %32 : vector<8xf32> to vector<8x1xf32>
    %34 = vector.broadcast %33 : vector<8x1xf32> to vector<8x8xf32>
    %35 = arith.divf %31, %34 : vector<8x8xf32>
    %c0_20 = arith.constant 0 : index
    %c0_21 = arith.constant 0 : index
    %36 = vector.load %arg10[%c0_20, %c0_21] : memref<8x8xf32, #tpu.memory_space<vmem>>, vector<8x8xf32>
    tpu.vector_store %arg10[%c0_20, %c0_21], %35 {strides = array<i32>} : memref<8x8xf32, #tpu.memory_space<vmem>>, vector<8x8xf32>,
    %37 = vector.shape_cast %35 : vector<8x8xf32> to vector<8x8x1xf32>
    %38 = vector.broadcast %37 : vector<8x8x1xf32> to vector<8x8x32xf32>
    %39 = arith.mulf %38, %12 : vector<8x8x32xf32>
    %cst_22 = arith.constant dense<0.000000e+00> : vector<8x32xf32>
    %40 = vector.multi_reduction <add>, %39, %cst_22 [1] : vector<8x8x32xf32> to vector<8x32xf32>
    %c0_23 = arith.constant 0 : index
    %c0_24 = arith.constant 0 : index
    %41 = vector.load %arg9[%c0_23, %c0_24] : memref<8x32xf32, #tpu.memory_space<vmem>>, vector<8x32xf32>
    tpu.vector_store %arg9[%c0_23, %c0_24], %40 {strides = array<i32>} : memref<8x32xf32, #tpu.memory_space<vmem>>, vector<8x32xf32>,
    return
  }
  func.func @transform_0(%arg0: i32) -> (i32, i32) {
    %c0_i32 = arith.constant 0 : i32
    %c0_i32_0 = arith.constant 0 : i32
    return %arg0, %c0_i32 : i32, i32
  }
  func.func @transform_1(%arg0: i32) -> (i32, i32) {
    %c0_i32 = arith.constant 0 : i32
    %c0_i32_0 = arith.constant 0 : i32
    return %arg0, %c0_i32 : i32, i32
  }
  func.func @transform_2(%arg0: i32) -> (i32, i32) {
    %c0_i32 = arith.constant 0 : i32
    %c0_i32_0 = arith.constant 0 : i32
    %c0_i32_1 = arith.constant 0 : i32
    return %c0_i32, %c0_i32_0 : i32, i32
  }
  func.func @transform_3(%arg0: i32) -> (i32, i32) {
    %c0_i32 = arith.constant 0 : i32
    %c0_i32_0 = arith.constant 0 : i32
    %c0_i32_1 = arith.constant 0 : i32
    return %c0_i32, %c0_i32_0 : i32, i32
  }
  func.func @transform_4(%arg0: i32) -> (i32, i32) {
    %c0_i32 = arith.constant 0 : i32
    %c0_i32_0 = arith.constant 0 : i32
    %c0_i32_1 = arith.constant 0 : i32
    return %c0_i32, %c0_i32_0 : i32, i32
  }
  func.func @transform_5(%arg0: i32) -> (i32, i32) {
    %c0_i32 = arith.constant 0 : i32
    %c0_i32_0 = arith.constant 0 : i32
    %c0_i32_1 = arith.constant 0 : i32
    return %c0_i32, %c0_i32_0 : i32, i32
  }
  func.func @transform_6(%arg0: i32) -> (i32, i32) {
    %c0_i32 = arith.constant 0 : i32
    %c0_i32_0 = arith.constant 0 : i32
    %c0_i32_1 = arith.constant 0 : i32
    return %c0_i32, %c0_i32_0 : i32, i32
  }
  func.func @transform_7(%arg0: i32) -> (i32, i32) {
    %c0_i32 = arith.constant 0 : i32
    %c0_i32_0 = arith.constant 0 : i32
    %c0_i32_1 = arith.constant 0 : i32
    return %c0_i32, %c0_i32_0 : i32, i32
  }
  func.func @transform_8(%arg0: i32) -> (i32, i32) {
    %c0_i32 = arith.constant 0 : i32
    %c0_i32_0 = arith.constant 0 : i32
    return %arg0, %c0_i32 : i32, i32
  }
  func.func @transform_9(%arg0: i32) -> (i32, i32) {
    %c0_i32 = arith.constant 0 : i32
    %c0_i32_0 = arith.constant 0 : i32
    return %arg0, %c0_i32 : i32, i32
  }
}

module attributes {stable_mosaic.version = 11 : i64} {
  func.func @_butd_attention_kernel(%arg0: i32, %arg1: memref<8x32xf32, #tpu.memory_space<vmem>>, %arg2: memref<64x32xf32, #tpu.memory_space<vmem>>, %arg3: memref<32x32xf32, #tpu.memory_space<vmem>>, %arg4: memref<1x32xf32, #tpu.memory_space<vmem>>, %arg5: memref<32x32xf32, #tpu.memory_space<vmem>>, %arg6: memref<1x32xf32, #tpu.memory_space<vmem>>, %arg7: memref<1x32xf32, #tpu.memory_space<vmem>>, %arg8: memref<1x1xf32, #tpu.memory_space<smem>>, %arg9: memref<8x32xf32, #tpu.memory_space<vmem>>, %arg10: memref<8x8xf32, #tpu.memory_space<vmem>>) attributes {dimension_semantics = [#tpu.dimension_semantics<parallel>], iteration_bounds = array<i64: 1>, scalar_prefetch = 0 : i64, scratch_operands = 0 : i64, tpu.core_type = #tpu.core_type<tc>, window_params = [{transform_indices = @transform_0, window_bounds = array<i64: 8, 32>}, {transform_indices = @transform_1, window_bounds = array<i64: 64, 32>}, {pipeline_mode = #tpu.pipeline_mode<synchronous>, transform_indices = @transform_2, window_bounds = array<i64: 32, 32>}, {pipeline_mode = #tpu.pipeline_mode<synchronous>, transform_indices = @transform_3, window_bounds = array<i64: 1, 32>}, {pipeline_mode = #tpu.pipeline_mode<synchronous>, transform_indices = @transform_4, window_bounds = array<i64: 32, 32>}, {pipeline_mode = #tpu.pipeline_mode<synchronous>, transform_indices = @transform_5, window_bounds = array<i64: 1, 32>}, {pipeline_mode = #tpu.pipeline_mode<synchronous>, transform_indices = @transform_6, window_bounds = array<i64: 1, 32>}, {transform_indices = @transform_7, window_bounds = array<i64: 1, 1>}, {transform_indices = @transform_8, window_bounds = array<i64: 8, 32>}, {transform_indices = @transform_9, window_bounds = array<i64: 8, 8>}]} {
    %c0 = arith.constant 0 : index
    %c0_0 = arith.constant 0 : index
    %0 = vector.load %arg1[%c0, %c0_0] : memref<8x32xf32, #tpu.memory_space<vmem>>, vector<8x32xf32>
    %c0_1 = arith.constant 0 : index
    %c0_2 = arith.constant 0 : index
    %1 = vector.load %arg3[%c0_1, %c0_2] : memref<32x32xf32, #tpu.memory_space<vmem>>, vector<32x32xf32>
    %cst = arith.constant dense<0.000000e+00> : vector<8x32xf32>
    %2 = tpu.matmul %0, %1, %cst {dimension_numbers = #tpu.dot_dimension_numbers<[1], [0], [0], [1], [0, 0, 1, 1], [], []>, precision = #tpu.contract_precision<fp32>} : vector<8x32xf32>, vector<32x32xf32>, vector<8x32xf32> -> vector<8x32xf32>
    %c0_3 = arith.constant 0 : index
    %c0_4 = arith.constant 0 : index
    %3 = vector.load %arg4[%c0_3, %c0_4] : memref<1x32xf32, #tpu.memory_space<vmem>>, vector<1x32xf32>
    %4 = vector.broadcast %3 : vector<1x32xf32> to vector<8x32xf32>
    %5 = arith.addf %2, %4 : vector<8x32xf32>
    %c0_5 = arith.constant 0 : index
    %c0_6 = arith.constant 0 : index
    %6 = vector.load %arg2[%c0_5, %c0_6] : memref<64x32xf32, #tpu.memory_space<vmem>>, vector<64x32xf32>
    %c0_7 = arith.constant 0 : index
    %c0_8 = arith.constant 0 : index
    %7 = vector.load %arg5[%c0_7, %c0_8] : memref<32x32xf32, #tpu.memory_space<vmem>>, vector<32x32xf32>
    %cst_9 = arith.constant dense<0.000000e+00> : vector<64x32xf32>
    %8 = tpu.matmul %6, %7, %cst_9 {dimension_numbers = #tpu.dot_dimension_numbers<[1], [0], [0], [1], [0, 0, 1, 1], [], []>, precision = #tpu.contract_precision<fp32>} : vector<64x32xf32>, vector<32x32xf32>, vector<64x32xf32> -> vector<64x32xf32>
    %c0_10 = arith.constant 0 : index
    %c0_11 = arith.constant 0 : index
    %9 = vector.load %arg6[%c0_10, %c0_11] : memref<1x32xf32, #tpu.memory_space<vmem>>, vector<1x32xf32>
    %10 = vector.broadcast %9 : vector<1x32xf32> to vector<64x32xf32>
    %11 = arith.addf %8, %10 : vector<64x32xf32>
    %12 = vector.shape_cast %11 : vector<64x32xf32> to vector<8x8x32xf32>
    %c0_12 = arith.constant 0 : index
    %c0_13 = arith.constant 0 : index
    %13 = vector.load %arg7[%c0_12, %c0_13] : memref<1x32xf32, #tpu.memory_space<vmem>>, vector<1x32xf32>
    %c0_14 = arith.constant 0 : index
    %c0_15 = arith.constant 0 : index
    %14 = memref.load %arg8[%c0_14, %c0_15] : memref<1x1xf32, #tpu.memory_space<smem>>
    %cst_16 = arith.constant 0.000000e+00 : f32
    %15 = vector.broadcast %cst_16 : f32 to vector<8x8xf32>
    %16 = vector.shape_cast %5 : vector<8x32xf32> to vector<8x1x32xf32>
    %17 = vector.broadcast %16 : vector<8x1x32xf32> to vector<8x8x32xf32>
    %18 = arith.addf %17, %12 : vector<8x8x32xf32>
    %19 = math.tanh %18 : vector<8x8x32xf32>
    %20 = vector.shape_cast %13 : vector<1x32xf32> to vector<1x1x32xf32>
    %21 = vector.broadcast %20 : vector<1x1x32xf32> to vector<8x8x32xf32>
    %22 = arith.mulf %19, %21 : vector<8x8x32xf32>
    %cst_17 = arith.constant dense<0.000000e+00> : vector<8x8xf32>
    %23 = vector.multi_reduction <add>, %22, %cst_17 [2] : vector<8x8x32xf32> to vector<8x8xf32>
    %24 = arith.addf %15, %23 : vector<8x8xf32>
    %25 = vector.broadcast %14 : f32 to vector<8x8xf32>
    %26 = arith.addf %24, %25 : vector<8x8xf32>
    %cst_18 = arith.constant dense<0xFF800000> : vector<8xf32>
    %27 = vector.multi_reduction <maximumf>, %26, %cst_18 [1] : vector<8x8xf32> to vector<8xf32>
    %28 = vector.shape_cast %27 : vector<8xf32> to vector<8x1xf32>
    %29 = vector.broadcast %28 : vector<8x1xf32> to vector<8x8xf32>
    %30 = arith.subf %26, %29 : vector<8x8xf32>
    %31 = math.exp %30 : vector<8x8xf32>
    %cst_19 = arith.constant dense<0.000000e+00> : vector<8xf32>
    %32 = vector.multi_reduction <add>, %31, %cst_19 [1] : vector<8x8xf32> to vector<8xf32>
    %33 = vector.shape_cast %32 : vector<8xf32> to vector<8x1xf32>
    %34 = vector.broadcast %33 : vector<8x1xf32> to vector<8x8xf32>
    %35 = arith.divf %31, %34 : vector<8x8xf32>
    %c0_20 = arith.constant 0 : index
    %c0_21 = arith.constant 0 : index
    %36 = vector.load %arg10[%c0_20, %c0_21] : memref<8x8xf32, #tpu.memory_space<vmem>>, vector<8x8xf32>
    tpu.vector_store %arg10[%c0_20, %c0_21], %35 {strides = array<i32>} : memref<8x8xf32, #tpu.memory_space<vmem>>, vector<8x8xf32>,
    %37 = vector.shape_cast %35 : vector<8x8xf32> to vector<8x8x1xf32>
    %38 = vector.broadcast %37 : vector<8x8x1xf32> to vector<8x8x32xf32>
    %39 = arith.mulf %38, %12 : vector<8x8x32xf32>
    %cst_22 = arith.constant dense<0.000000e+00> : vector<8x32xf32>
    %40 = vector.multi_reduction <add>, %39, %cst_22 [1] : vector<8x8x32xf32> to vector<8x32xf32>
    %c0_23 = arith.constant 0 : index
    %c0_24 = arith.constant 0 : index
    %41 = vector.load %arg9[%c0_23, %c0_24] : memref<8x32xf32, #tpu.memory_space<vmem>>, vector<8x32xf32>
    tpu.vector_store %arg9[%c0_23, %c0_24], %40 {strides = array<i32>} : memref<8x32xf32, #tpu.memory_space<vmem>>, vector<8x32xf32>,
    return
  }
  func.func @transform_0(%arg0: i32) -> (i32, i32) {
    %c0_i32 = arith.constant 0 : i32
    %c0_i32_0 = arith.constant 0 : i32
    return %arg0, %c0_i32 : i32, i32
  }
  func.func @transform_1(%arg0: i32) -> (i32, i32) {
    %c0_i32 = arith.constant 0 : i32
    %c0_i32_0 = arith.constant 0 : i32
    return %arg0, %c0_i32 : i32, i32
  }
  func.func @transform_2(%arg0: i32) -> (i32, i32) {
    %c0_i32 = arith.constant 0 : i32
    %c0_i32_0 = arith.constant 0 : i32
    %c0_i32_1 = arith.constant 0 : i32
    return %c0_i32, %c0_i32_0 : i32, i32
  }
  func.func @transform_3(%arg0: i32) -> (i32, i32) {
    %c0_i32 = arith.constant 0 : i32
    %c0_i32_0 = arith.constant 0 : i32
    %c0_i32_1 = arith.constant 0 : i32
    return %c0_i32, %c0_i32_0 : i32, i32
  }
  func.func @transform_4(%arg0: i32) -> (i32, i32) {
    %c0_i32 = arith.constant 0 : i32
    %c0_i32_0 = arith.constant 0 : i32
    %c0_i32_1 = arith.constant 0 : i32
    return %c0_i32, %c0_i32_0 : i32, i32
  }
  func.func @transform_5(%arg0: i32) -> (i32, i32) {
    %c0_i32 = arith.constant 0 : i32
    %c0_i32_0 = arith.constant 0 : i32
    %c0_i32_1 = arith.constant 0 : i32
    return %c0_i32, %c0_i32_0 : i32, i32
  }
  func.func @transform_6(%arg0: i32) -> (i32, i32) {
    %c0_i32 = arith.constant 0 : i32
    %c0_i32_0 = arith.constant 0 : i32
    %c0_i32_1 = arith.constant 0 : i32
    return %c0_i32, %c0_i32_0 : i32, i32
  }
  func.func @transform_7(%arg0: i32) -> (i32, i32) {
    %c0_i32 = arith.constant 0 : i32
    %c0_i32_0 = arith.constant 0 : i32
    %c0_i32_1 = arith.constant 0 : i32
    return %c0_i32, %c0_i32_0 : i32, i32
  }
  func.func @transform_8(%arg0: i32) -> (i32, i32) {
    %c0_i32 = arith.constant 0 : i32
    %c0_i32_0 = arith.constant 0 : i32
    return %arg0, %c0_i32 : i32, i32
  }
  func.func @transform_9(%arg0: i32) -> (i32, i32) {
    %c0_i32 = arith.constant 0 : i32
    %c0_i32_0 = arith.constant 0 : i32
    return %arg0, %c0_i32 : i32, i32
  }
}

</mosaic_0001>

<llo_original>
// kernel: tpu_custom_call.1
$region0: #{tpu_custom_call.1}
  #allocation0 [shape = 'u32[]', space=smem, size = 0x4, offset = 0x4, fixed_abs, tag = 'smem constant byte address 0x4 - core index']
  #allocation1 [shape = 'u32[144,128]{1,0:T(1,128)}', space=vmem, size = 0x12000, scoped, tag = 'internal scratch']
  #allocation2 [shape = 'f32[1,1]{1,0:T(1,128)S(6)}', space=smem, size = 0x200, scoped, tag = 'scoped memory for tpu_custom_call.1']
  %s0 = inlined_call_operand.vmem [shape: f32[8,32], index: 0, kind: input, shape index: {}]
  %s1 = inlined_call_operand.vmem [shape: f32[64,32], index: 1, kind: input, shape index: {}]
  %s2 = inlined_call_operand.vmem [shape: f32[32,32], index: 2, kind: input, shape index: {}]
  %s3 = inlined_call_operand.vmem [shape: f32[1,32], index: 3, kind: input, shape index: {}]
  %s4 = inlined_call_operand.vmem [shape: f32[32,32], index: 4, kind: input, shape index: {}]
  %s5 = inlined_call_operand.vmem [shape: f32[1,32], index: 5, kind: input, shape index: {}]
  %s6 = inlined_call_operand.vmem [shape: f32[1,32], index: 6, kind: input, shape index: {}]
  %s7 = inlined_call_operand.<no memory space> [shape: f32[1,1], index: 7, kind: input, shape index: {}]
  %s8 = inlined_call_operand.hbm [shape: f32[8,32], index: 8, kind: output, shape index: {0}]
  %s9 = inlined_call_operand.hbm [shape: f32[8,8], index: 9, kind: output, shape index: {1}]
  %10 = xla_tuple %s8, %s9
  %s11 = sld [smem:[#allocation0]]
  $region50: #{tpu_custom_call.1} parent=0
    _
  %s13 = ssub.s32 1, %s11
  %s14 = scalar_select 0, %s13, %s11
  %15 = sst [smem:[#allocation2]] %s7
  $region1: #{tpu_custom_call.1} parent=0
    #allocation3 [shape = 'u8[4096]{0}', space=vmem, size = 0x1000, scoped, tag = 'output window, operand 0, single buffered']
    #allocation4 [shape = 's32[1]{0}', space=sflag, size = 0x4, scoped, tag = 'scoped memory for tpu_custom_call.1']
    #allocation5 [shape = 'u8[4096]{0}', space=vmem, size = 0x1000, scoped, tag = 'output window, operand 1, single buffered']
    #allocation6 [shape = 's32[1]{0}', space=sflag, size = 0x4, scoped, tag = 'scoped memory for tpu_custom_call.1']
    %16 = vsyncpa [#allocation4], 0
    %17 = vsyncpa [#allocation6], 0
    // Predicated region
    $region2: #{tpu_custom_call.1} parent=1 // pred_check
      _
    $region3: #{tpu_custom_call.1} parent=1 // pred_check_branch
      %19 = sbr.rel (0) target = $region5
    $region4: #{tpu_custom_call.1} parent=1 // pred_region
      _
    $region5: #{tpu_custom_call.1} parent=1 // pred_fallthru
      _
    // Predicated region
    $region6: #{tpu_custom_call.1} parent=1 // pred_check
      _
    $region7: #{tpu_custom_call.1} parent=1 // pred_check_branch
      %21 = sbr.rel (0) target = $region9
    $region8: #{tpu_custom_call.1} parent=1 // pred_region
      _
    $region9: #{tpu_custom_call.1} parent=1 // pred_fallthru
      _
    // Predicated region
    $region10: #{tpu_custom_call.1} parent=1 // pred_check
      _
    $region11: #{tpu_custom_call.1} parent=1 // pred_check_branch
      %23 = sbr.rel (0) target = $region13
    $region12: #{tpu_custom_call.1} parent=1 // pred_region
      _
    $region13: #{tpu_custom_call.1} parent=1 // pred_fallthru
      _
    // Predicated region
    $region14: #{tpu_custom_call.1} parent=1 // pred_check
      _
    $region15: #{tpu_custom_call.1} parent=1 // pred_check_branch
      %25 = sbr.rel (0) target = $region17
    $region16: #{tpu_custom_call.1} parent=1 // pred_region
      _
    $region17: #{tpu_custom_call.1} parent=1 // pred_fallthru
      _
    // Predicated region
    $region18: #{tpu_custom_call.1} parent=1 // pred_check
      _
    $region19: #{tpu_custom_call.1} parent=1 // pred_check_branch
      %27 = sbr.rel (0) target = $region21
    $region20: #{tpu_custom_call.1} parent=1 // pred_region
      _
    $region21: #{tpu_custom_call.1} parent=1 // pred_fallthru
      _
    // Predicated region
    $region22: #{tpu_custom_call.1} parent=1 // pred_check
      _
    $region23: #{tpu_custom_call.1} parent=1 // pred_check_branch
      %29 = sbr.rel (0) target = $region25
    $region24: #{tpu_custom_call.1} parent=1 // pred_region
      _
    $region25: #{tpu_custom_call.1} parent=1 // pred_fallthru
      _
    // Predicated region
    $region26: #{tpu_custom_call.1} parent=1 // pred_check
      _
    $region27: #{tpu_custom_call.1} parent=1 // pred_check_branch
      %31 = sbr.rel (0) target = $region29
    $region28: #{tpu_custom_call.1} parent=1 // pred_region
      _
    $region29: #{tpu_custom_call.1} parent=1 // pred_fallthru
      _
    // Predicated region
    $region30: #{tpu_custom_call.1} parent=1 // pred_check
      _
    $region31: #{tpu_custom_call.1} parent=1 // pred_check_branch
      %33 = sbr.rel (0) target = $region33
    $region32: #{tpu_custom_call.1} parent=1 // pred_region
      _
    $region33: #{tpu_custom_call.1} parent=1 // pred_fallthru
      _
    %v34 = vld [vmem:[%s0] sm:$0xff]
    %v35 = vld [vmem:[%s2] sm:$0xff]
    %v36 = vld [vmem:[%s2 + $0x8] sm:$0xff]
    %v37 = vld [vmem:[%s2 + $0x10] sm:$0xff]
    %v38 = vld [vmem:[%s2 + $0x18] sm:$0xff]
    %v39 = vld [vmem:[%s3] sm:$0x1]
    %v41 = vlaneseq
    %v42 = vshrl.u32 %v41, 7
    %v43 = vsub.s32 0, %v42
    %v44 = vrot.slane %v39, %v43
    %vm46 = vcmask 261120
    %v48 = vsel %vm46, %v34, 0
    %50 = vmatprep.subr.mxu0 0.0
    %v51 = vand.u32 %v35, 4294901760
    %52 = vmatpush1.msra.mxu0 %v51
    %53 = vmatprep.subr.mxu0 0.0
    %v54 = vand.u32 %v36, 4294901760
    %55 = vmatpush1.msra.mxu0 %v54
    %56 = vmatprep.subr.mxu0 0.0
    %v57 = vand.u32 %v37, 4294901760
    %58 = vmatpush1.msra.mxu0 %v57
    %59 = vmatprep.subr.mxu0 0.0
    %v60 = vand.u32 %v38, 4294901760
    %61 = vmatpush1.msra.mxu0 %v60
    %62 = vmatprep.subr.mxu0 0.0
    %63 = vmatpush1.msra.mxu0 0.0
    %64 = vmatprep.subr.mxu0 0.0
    %65 = vmatpush1.msra.mxu0 0.0
    %66 = vmatprep.subr.mxu0 0.0
    %67 = vmatpush1.msra.mxu0 0.0
    %68 = vmatprep.subr.mxu0 0.0
    %69 = vmatpush1.msra.mxu0 0.0
    %70 = vmatprep.subr.mxu0 0.0
    %71 = vmatpush1.msra.mxu0 0.0
    %72 = vmatprep.subr.mxu0 0.0
    %73 = vmatpush1.msra.mxu0 0.0
    %74 = vmatprep.subr.mxu0 0.0
    %75 = vmatpush1.msra.mxu0 0.0
    %76 = vmatprep.subr.mxu0 0.0
    %77 = vmatpush1.msra.mxu0 0.0
    %78 = vmatprep.subr.mxu0 0.0
    %79 = vmatpush1.msra.mxu0 0.0
    %80 = vmatprep.subr.mxu0 0.0
    %81 = vmatpush1.msra.mxu0 0.0
    %82 = vmatprep.subr.mxu0 0.0
    %83 = vmatpush1.msra.mxu0 0.0
    %84 = vmatprep.subr.mxu0 0.0
    %85 = vmatpush1.msra.mxu0 0.0
    %86 = vmatprep.subr.mxu0 0.0
    %87 = vmatpush1.msra.mxu0 0.0
    %88 = vmatprep.subr.mxu0 0.0
    %89 = vmatpush1.msra.mxu0 0.0
    %90 = vmatprep.subr.mxu0 0.0
    %91 = vmatpush1.msra.mxu0 0.0
    %92 = vmatprep.subr.mxu0 0.0
    %93 = vmatpush1.msra.mxu0 0.0
    %94 = vmatprep.subr.mxu0 0.0
    %95 = vmatpush1.msra.mxu0 0.0
    %96 = vmatprep.subr.mxu0 0.0
    %97 = vmatpush1.msra.mxu0 0.0
    %98 = vmatprep.subr.mxu0 0.0
    %99 = vmatpush1.msra.mxu0 0.0
    %100 = vmatprep.subr.mxu0 0.0
    %101 = vmatpush1.msra.mxu0 0.0
    %102 = vmatprep.subr.mxu0 0.0
    %103 = vmatpush1.msra.mxu0 0.0
    %104 = vmatprep.subr.mxu0 0.0
    %105 = vmatpush1.msra.mxu0 0.0
    %106 = vmatprep.subr.mxu0 0.0
    %107 = vmatpush1.msra.mxu0 0.0
    %108 = vmatprep.subr.mxu0 0.0
    %109 = vmatpush1.msra.mxu0 0.0
    %110 = vmatprep.subr.mxu0 0.0
    %111 = vmatpush1.msra.mxu0 0.0
    %112 = vmatprep.subr.mxu0 0.0
    %113 = vmatpush1.msra.mxu0 0.0
    %114 = vmatprep.subr.mxu0 0.0
    %115 = vmatpush1.msra.mxu0 0.0
    %116 = vmatprep.subr.mxu0 0.0
    %117 = vmatpush1.msra.mxu0 0.0
    %118 = vmatprep.mubr.f32.mxu0 0.0
    %v119 = vand.u32 %v48, 4294901760
    %v120 = vsub.f32 %v48, %v119
    %v121 = vand.u32 %v120, 4294901760
    %v122 = vsub.f32 %v120, %v121
    %v123 = vand.u32 %v122, 4294901760
    %124 = vmatmul.mubr.f32.gmra.mrb[0].mxu0 %v123
    %v125 = vpop.f32.mrb[0].mxu0
    %v126 = vadd.f32 %v44, %v125
    %v127 = vpop.f32.mrb[0].mxu0
    %128 = vdwg.mxu0
    %129 = vmatprep.subr.mxu0 0.0
    %v130 = vand.u32 %v35, 4294901760
    %v131 = vsub.f32 %v35, %v130
    %v132 = vand.u32 %v131, 4294901760
    %v133 = vsub.f32 %v131, %v132
    %v134 = vand.u32 %v133, 4294901760
    %135 = vmatpush1.msra.mxu0 %v134
    %136 = vmatprep.subr.mxu0 0.0
    %v137 = vand.u32 %v36, 4294901760
    %v138 = vsub.f32 %v36, %v137
    %v139 = vand.u32 %v138, 4294901760
    %v140 = vsub.f32 %v138, %v139
    %v141 = vand.u32 %v140, 4294901760
    %142 = vmatpush1.msra.mxu0 %v141
    %143 = vmatprep.subr.mxu0 0.0
    %v144 = vand.u32 %v37, 4294901760
    %v145 = vsub.f32 %v37, %v144
    %v146 = vand.u32 %v145, 4294901760
    %v147 = vsub.f32 %v145, %v146
    %v148 = vand.u32 %v147, 4294901760
    %149 = vmatpush1.msra.mxu0 %v148
    %150 = vmatprep.subr.mxu0 0.0
    %v151 = vand.u32 %v38, 4294901760
    %v152 = vsub.f32 %v38, %v151
    %v153 = vand.u32 %v152, 4294901760
    %v154 = vsub.f32 %v152, %v153
    %v155 = vand.u32 %v154, 4294901760
    %156 = vmatpush1.msra.mxu0 %v155
    %157 = vmatprep.subr.mxu0 0.0
    %158 = vmatpush1.msra.mxu0 0.0
    %159 = vmatprep.subr.mxu0 0.0
    %160 = vmatpush1.msra.mxu0 0.0
    %161 = vmatprep.subr.mxu0 0.0
    %162 = vmatpush1.msra.mxu0 0.0
    %163 = vmatprep.subr.mxu0 0.0
    %164 = vmatpush1.msra.mxu0 0.0
    %165 = vmatprep.subr.mxu0 0.0
    %166 = vmatpush1.msra.mxu0 0.0
    %167 = vmatprep.subr.mxu0 0.0
    %168 = vmatpush1.msra.mxu0 0.0
    %169 = vmatprep.subr.mxu0 0.0
    %170 = vmatpush1.msra.mxu0 0.0
    %171 = vmatprep.subr.mxu0 0.0
    %172 = vmatpush1.msra.mxu0 0.0
    %173 = vmatprep.subr.mxu0 0.0
    %174 = vmatpush1.msra.mxu0 0.0
    %175 = vmatprep.subr.mxu0 0.0
    %176 = vmatpush1.msra.mxu0 0.0
    %177 = vmatprep.subr.mxu0 0.0
    %178 = vmatpush1.msra.mxu0 0.0
    %179 = vmatprep.subr.mxu0 0.0
    %180 = vmatpush1.msra.mxu0 0.0
    %181 = vmatprep.subr.mxu0 0.0
    %182 = vmatpush1.msra.mxu0 0.0
    %183 = vmatprep.subr.mxu0 0.0
    %184 = vmatpush1.msra.mxu0 0.0
    %185 = vmatprep.subr.mxu0 0.0
    %186 = vmatpush1.msra.mxu0 0.0
    %187 = vmatprep.subr.mxu0 0.0
    %188 = vmatpush1.msra.mxu0 0.0
    %189 = vmatprep.subr.mxu0 0.0
    %190 = vmatpush1.msra.mxu0 0.0
    %191 = vmatprep.subr.mxu0 0.0
    %192 = vmatpush1.msra.mxu0 0.0
    %193 = vmatprep.subr.mxu0 0.0
    %194 = vmatpush1.msra.mxu0 0.0
    %195 = vmatprep.subr.mxu0 0.0
    %196 = vmatpush1.msra.mxu0 0.0
    %197 = vmatprep.subr.mxu0 0.0
    %198 = vmatpush1.msra.mxu0 0.0
    %199 = vmatprep.subr.mxu0 0.0
    %200 = vmatpush1.msra.mxu0 0.0
    %201 = vmatprep.subr.mxu0 0.0
    %202 = vmatpush1.msra.mxu0 0.0
    %203 = vmatprep.subr.mxu0 0.0
    %204 = vmatpush1.msra.mxu0 0.0
    %205 = vmatprep.subr.mxu0 0.0
    %206 = vmatpush1.msra.mxu0 0.0
    %207 = vmatprep.subr.mxu0 0.0
    %208 = vmatpush1.msra.mxu0 0.0
    %209 = vmatprep.subr.mxu0 0.0
    %210 = vmatpush1.msra.mxu0 0.0
    %211 = vmatprep.subr.mxu0 0.0
    %212 = vmatpush1.msra.mxu0 0.0
    %213 = vmatprep.mubr.f32.mxu0 0.0
    %v214 = vand.u32 %v48, 4294901760
    %215 = vmatmul.mubr.f32.gmra.mrb[0].mxu0 %v214
    %v216 = vpop.f32.mrb[0].mxu0
    %v217 = vadd.f32 %v126, %v216
    %v218 = vpop.f32.mrb[0].mxu0
    %219 = vdwg.mxu0
    %220 = vmatprep.subr.mxu0 0.0
    %v221 = vand.u32 %v35, 4294901760
    %v222 = vsub.f32 %v35, %v221
    %223 = vmatpush1.msra.mxu0 %v222
    %224 = vmatprep.subr.mxu0 0.0
    %v225 = vand.u32 %v36, 4294901760
    %v226 = vsub.f32 %v36, %v225
    %227 = vmatpush1.msra.mxu0 %v226
    %228 = vmatprep.subr.mxu0 0.0
    %v229 = vand.u32 %v37, 4294901760
    %v230 = vsub.f32 %v37, %v229
    %231 = vmatpush1.msra.mxu0 %v230
    %232 = vmatprep.subr.mxu0 0.0
    %v233 = vand.u32 %v38, 4294901760
    %v234 = vsub.f32 %v38, %v233
    %235 = vmatpush1.msra.mxu0 %v234
    %236 = vmatprep.subr.mxu0 0.0
    %237 = vmatpush1.msra.mxu0 0.0
    %238 = vmatprep.subr.mxu0 0.0
    %239 = vmatpush1.msra.mxu0 0.0
    %240 = vmatprep.subr.mxu0 0.0
    %241 = vmatpush1.msra.mxu0 0.0
    %242 = vmatprep.subr.mxu0 0.0
    %243 = vmatpush1.msra.mxu0 0.0
    %244 = vmatprep.subr.mxu0 0.0
    %245 = vmatpush1.msra.mxu0 0.0
    %246 = vmatprep.subr.mxu0 0.0
    %247 = vmatpush1.msra.mxu0 0.0
    %248 = vmatprep.subr.mxu0 0.0
    %249 = vmatpush1.msra.mxu0 0.0
    %250 = vmatprep.subr.mxu0 0.0
    %251 = vmatpush1.msra.mxu0 0.0
    %252 = vmatprep.subr.mxu0 0.0
    %253 = vmatpush1.msra.mxu0 0.0
    %254 = vmatprep.subr.mxu0 0.0
    %255 = vmatpush1.msra.mxu0 0.0
    %256 = vmatprep.subr.mxu0 0.0
    %257 = vmatpush1.msra.mxu0 0.0
    %258 = vmatprep.subr.mxu0 0.0
    %259 = vmatpush1.msra.mxu0 0.0
    %260 = vmatprep.subr.mxu0 0.0
    %261 = vmatpush1.msra.mxu0 0.0
    %262 = vmatprep.subr.mxu0 0.0
    %263 = vmatpush1.msra.mxu0 0.0
    %264 = vmatprep.subr.mxu0 0.0
    %265 = vmatpush1.msra.mxu0 0.0
    %266 = vmatprep.subr.mxu0 0.0
    %267 = vmatpush1.msra.mxu0 0.0
    %268 = vmatprep.subr.mxu0 0.0
    %269 = vmatpush1.msra.mxu0 0.0
    %270 = vmatprep.subr.mxu0 0.0
    %271 = vmatpush1.msra.mxu0 0.0
    %272 = vmatprep.subr.mxu0 0.0
    %273 = vmatpush1.msra.mxu0 0.0
    %274 = vmatprep.subr.mxu0 0.0
    %275 = vmatpush1.msra.mxu0 0.0
    %276 = vmatprep.subr.mxu0 0.0
    %277 = vmatpush1.msra.mxu0 0.0
    %278 = vmatprep.subr.mxu0 0.0
    %279 = vmatpush1.msra.mxu0 0.0
    %280 = vmatprep.subr.mxu0 0.0
    %281 = vmatpush1.msra.mxu0 0.0
    %282 = vmatprep.subr.mxu0 0.0
    %283 = vmatpush1.msra.mxu0 0.0
    %284 = vmatprep.subr.mxu0 0.0
    %285 = vmatpush1.msra.mxu0 0.0
    %286 = vmatprep.subr.mxu0 0.0
    %287 = vmatpush1.msra.mxu0 0.0
    %288 = vmatprep.subr.mxu0 0.0
    %289 = vmatpush1.msra.mxu0 0.0
    %290 = vmatprep.subr.mxu0 0.0
    %291 = vmatpush1.msra.mxu0 0.0
    %292 = vmatprep.mubr.f32.mxu0 0.0
    %v293 = vand.u32 %v48, 4294901760
    %v294 = vsub.f32 %v48, %v293
    %295 = vmatmul.mubr.f32.gmra.mrb[0].mxu0 %v294
    %v296 = vpop.f32.mrb[0].mxu0
    %v297 = vadd.f32 %v217, %v296
    %v298 = vpop.f32.mrb[0].mxu0
    %299 = vdwg.mxu0
    %300 = vmatprep.subr.mxu0 0.0
    %v301 = vand.u32 %v35, 4294901760
    %302 = vmatpush1.msra.mxu0 %v301
    %303 = vmatprep.subr.mxu0 0.0
    %v304 = vand.u32 %v36, 4294901760
    %305 = vmatpush1.msra.mxu0 %v304
    %306 = vmatprep.subr.mxu0 0.0
    %v307 = vand.u32 %v37, 4294901760
    %308 = vmatpush1.msra.mxu0 %v307
    %309 = vmatprep.subr.mxu0 0.0
    %v310 = vand.u32 %v38, 4294901760
    %311 = vmatpush1.msra.mxu0 %v310
    %312 = vmatprep.subr.mxu0 0.0
    %313 = vmatpush1.msra.mxu0 0.0
    %314 = vmatprep.subr.mxu0 0.0
    %315 = vmatpush1.msra.mxu0 0.0
    %316 = vmatprep.subr.mxu0 0.0
    %317 = vmatpush1.msra.mxu0 0.0
    %318 = vmatprep.subr.mxu0 0.0
    %319 = vmatpush1.msra.mxu0 0.0
    %320 = vmatprep.subr.mxu0 0.0
    %321 = vmatpush1.msra.mxu0 0.0
    %322 = vmatprep.subr.mxu0 0.0
    %323 = vmatpush1.msra.mxu0 0.0
    %324 = vmatprep.subr.mxu0 0.0
    %325 = vmatpush1.msra.mxu0 0.0
    %326 = vmatprep.subr.mxu0 0.0
    %327 = vmatpush1.msra.mxu0 0.0
    %328 = vmatprep.subr.mxu0 0.0
    %329 = vmatpush1.msra.mxu0 0.0
    %330 = vmatprep.subr.mxu0 0.0
    %331 = vmatpush1.msra.mxu0 0.0
    %332 = vmatprep.subr.mxu0 0.0
    %333 = vmatpush1.msra.mxu0 0.0
    %334 = vmatprep.subr.mxu0 0.0
    %335 = vmatpush1.msra.mxu0 0.0
    %336 = vmatprep.subr.mxu0 0.0
    %337 = vmatpush1.msra.mxu0 0.0
    %338 = vmatprep.subr.mxu0 0.0
    %339 = vmatpush1.msra.mxu0 0.0
    %340 = vmatprep.subr.mxu0 0.0
    %341 = vmatpush1.msra.mxu0 0.0
    %342 = vmatprep.subr.mxu0 0.0
    %343 = vmatpush1.msra.mxu0 0.0
    %344 = vmatprep.subr.mxu0 0.0
    %345 = vmatpush1.msra.mxu0 0.0
    %346 = vmatprep.subr.mxu0 0.0
    %347 = vmatpush1.msra.mxu0 0.0
    %348 = vmatprep.subr.mxu0 0.0
    %349 = vmatpush1.msra.mxu0 0.0
    %350 = vmatprep.subr.mxu0 0.0
    %351 = vmatpush1.msra.mxu0 0.0
    %352 = vmatprep.subr.mxu0 0.0
    %353 = vmatpush1.msra.mxu0 0.0
    %354 = vmatprep.subr.mxu0 0.0
    %355 = vmatpush1.msra.mxu0 0.0
    %356 = vmatprep.subr.mxu0 0.0
    %357 = vmatpush1.msra.mxu0 0.0
    %358 = vmatprep.subr.mxu0 0.0
    %359 = vmatpush1.msra.mxu0 0.0
    %360 = vmatprep.subr.mxu0 0.0
    %361 = vmatpush1.msra.mxu0 0.0
    %362 = vmatprep.subr.mxu0 0.0
    %363 = vmatpush1.msra.mxu0 0.0
    %364 = vmatprep.subr.mxu0 0.0
    %365 = vmatpush1.msra.mxu0 0.0
    %366 = vmatprep.subr.mxu0 0.0
    %367 = vmatpush1.msra.mxu0 0.0
    %368 = vmatprep.mubr.f32.mxu0 0.0
    %v369 = vand.u32 %v48, 4294901760
    %v370 = vsub.f32 %v48, %v369
    %v371 = vand.u32 %v370, 4294901760
    %372 = vmatmul.mubr.f32.gmra.mrb[0].mxu0 %v371
    %v373 = vpop.f32.mrb[0].mxu0
    %v374 = vadd.f32 %v297, %v373
    %v375 = vpop.f32.mrb[0].mxu0
    %376 = vdwg.mxu0
    %377 = vmatprep.subr.mxu0 0.0
    %v378 = vand.u32 %v35, 4294901760
    %v379 = vsub.f32 %v35, %v378
    %v380 = vand.u32 %v379, 4294901760
    %381 = vmatpush1.msra.mxu0 %v380
    %382 = vmatprep.subr.mxu0 0.0
    %v383 = vand.u32 %v36, 4294901760
    %v384 = vsub.f32 %v36, %v383
    %v385 = vand.u32 %v384, 4294901760
    %386 = vmatpush1.msra.mxu0 %v385
    %387 = vmatprep.subr.mxu0 0.0
    %v388 = vand.u32 %v37, 4294901760
    %v389 = vsub.f32 %v37, %v388
    %v390 = vand.u32 %v389, 4294901760
    %391 = vmatpush1.msra.mxu0 %v390
    %392 = vmatprep.subr.mxu0 0.0
    %v393 = vand.u32 %v38, 4294901760
    %v394 = vsub.f32 %v38, %v393
    %v395 = vand.u32 %v394, 4294901760
    %396 = vmatpush1.msra.mxu0 %v395
    %397 = vmatprep.subr.mxu0 0.0
    %398 = vmatpush1.msra.mxu0 0.0
    %399 = vmatprep.subr.mxu0 0.0
    %400 = vmatpush1.msra.mxu0 0.0
    %401 = vmatprep.subr.mxu0 0.0
    %402 = vmatpush1.msra.mxu0 0.0
    %403 = vmatprep.subr.mxu0 0.0
    %404 = vmatpush1.msra.mxu0 0.0
    %405 = vmatprep.subr.mxu0 0.0
    %406 = vmatpush1.msra.mxu0 0.0
    %407 = vmatprep.subr.mxu0 0.0
    %408 = vmatpush1.msra.mxu0 0.0
    %409 = vmatprep.subr.mxu0 0.0
    %410 = vmatpush1.msra.mxu0 0.0
    %411 = vmatprep.subr.mxu0 0.0
    %412 = vmatpush1.msra.mxu0 0.0
    %413 = vmatprep.subr.mxu0 0.0
    %414 = vmatpush1.msra.mxu0 0.0
    %415 = vmatprep.subr.mxu0 0.0
    %416 = vmatpush1.msra.mxu0 0.0
    %417 = vmatprep.subr.mxu0 0.0
    %418 = vmatpush1.msra.mxu0 0.0
    %419 = vmatprep.subr.mxu0 0.0
    %420 = vmatpush1.msra.mxu0 0.0
    %421 = vmatprep.subr.mxu0 0.0
    %422 = vmatpush1.msra.mxu0 0.0
    %423 = vmatprep.subr.mxu0 0.0
    %424 = vmatpush1.msra.mxu0 0.0
    %425 = vmatprep.subr.mxu0 0.0
    %426 = vmatpush1.msra.mxu0 0.0
    %427 = vmatprep.subr.mxu0 0.0
    %428 = vmatpush1.msra.mxu0 0.0
    %429 = vmatprep.subr.mxu0 0.0
    %430 = vmatpush1.msra.mxu0 0.0
    %431 = vmatprep.subr.mxu0 0.0
    %432 = vmatpush1.msra.mxu0 0.0
    %433 = vmatprep.subr.mxu0 0.0
    %434 = vmatpush1.msra.mxu0 0.0
    %435 = vmatprep.subr.mxu0 0.0
    %436 = vmatpush1.msra.mxu0 0.0
    %437 = vmatprep.subr.mxu0 0.0
    %438 = vmatpush1.msra.mxu0 0.0
    %439 = vmatprep.subr.mxu0 0.0
    %440 = vmatpush1.msra.mxu0 0.0
    %441 = vmatprep.subr.mxu0 0.0
    %442 = vmatpush1.msra.mxu0 0.0
    %443 = vmatprep.subr.mxu0 0.0
    %444 = vmatpush1.msra.mxu0 0.0
    %445 = vmatprep.subr.mxu0 0.0
    %446 = vmatpush1.msra.mxu0 0.0
    %447 = vmatprep.subr.mxu0 0.0
    %448 = vmatpush1.msra.mxu0 0.0
    %449 = vmatprep.subr.mxu0 0.0
    %450 = vmatpush1.msra.mxu0 0.0
    %451 = vmatprep.subr.mxu0 0.0
    %452 = vmatpush1.msra.mxu0 0.0
    %453 = vmatprep.mubr.f32.mxu0 0.0
    %v454 = vand.u32 %v48, 4294901760
    %455 = vmatmul.mubr.f32.gmra.mrb[0].mxu0 %v454
    %v456 = vpop.f32.mrb[0].mxu0
    %v457 = vadd.f32 %v374, %v456
    %v458 = vpop.f32.mrb[0].mxu0
    %459 = vdwg.mxu0
    %460 = vmatprep.subr.mxu0 0.0
    %v461 = vand.u32 %v35, 4294901760
    %462 = vmatpush1.msra.mxu0 %v461
    %463 = vmatprep.subr.mxu0 0.0
    %v464 = vand.u32 %v36, 4294901760
    %465 = vmatpush1.msra.mxu0 %v464
    %466 = vmatprep.subr.mxu0 0.0
    %v467 = vand.u32 %v37, 4294901760
    %468 = vmatpush1.msra.mxu0 %v467
    %469 = vmatprep.subr.mxu0 0.0
    %v470 = vand.u32 %v38, 4294901760
    %471 = vmatpush1.msra.mxu0 %v470
    %472 = vmatprep.subr.mxu0 0.0
    %473 = vmatpush1.msra.mxu0 0.0
    %474 = vmatprep.subr.mxu0 0.0
    %475 = vmatpush1.msra.mxu0 0.0
    %476 = vmatprep.subr.mxu0 0.0
    %477 = vmatpush1.msra.mxu0 0.0
    %478 = vmatprep.subr.mxu0 0.0
    %479 = vmatpush1.msra.mxu0 0.0
    %480 = vmatprep.subr.mxu0 0.0
    %481 = vmatpush1.msra.mxu0 0.0
    %482 = vmatprep.subr.mxu0 0.0
    %483 = vmatpush1.msra.mxu0 0.0
    %484 = vmatprep.subr.mxu0 0.0
    %485 = vmatpush1.msra.mxu0 0.0
    %486 = vmatprep.subr.mxu0 0.0
    %487 = vmatpush1.msra.mxu0 0.0
    %488 = vmatprep.subr.mxu0 0.0
    %489 = vmatpush1.msra.mxu0 0.0
    %490 = vmatprep.subr.mxu0 0.0
    %491 = vmatpush1.msra.mxu0 0.0
    %492 = vmatprep.subr.mxu0 0.0
    %493 = vmatpush1.msra.mxu0 0.0
    %494 = vmatprep.subr.mxu0 0.0
    %495 = vmatpush1.msra.mxu0 0.0
    %496 = vmatprep.subr.mxu0 0.0
    %497 = vmatpush1.msra.mxu0 0.0
    %498 = vmatprep.subr.mxu0 0.0
    %499 = vmatpush1.msra.mxu0 0.0
    %500 = vmatprep.subr.mxu0 0.0
    %501 = vmatpush1.msra.mxu0 0.0
    %502 = vmatprep.subr.mxu0 0.0
    %503 = vmatpush1.msra.mxu0 0.0
    %504 = vmatprep.subr.mxu0 0.0
    %505 = vmatpush1.msra.mxu0 0.0
    %506 = vmatprep.subr.mxu0 0.0
    %507 = vmatpush1.msra.mxu0 0.0
    %508 = vmatprep.subr.mxu0 0.0
    %509 = vmatpush1.msra.mxu0 0.0
    %510 = vmatprep.subr.mxu0 0.0
    %511 = vmatpush1.msra.mxu0 0.0
    %512 = vmatprep.subr.mxu0 0.0
    %513 = vmatpush1.msra.mxu0 0.0
    %514 = vmatprep.subr.mxu0 0.0
    %515 = vmatpush1.msra.mxu0 0.0
    %516 = vmatprep.subr.mxu0 0.0
    %517 = vmatpush1.msra.mxu0 0.0
    %518 = vmatprep.subr.mxu0 0.0
    %519 = vmatpush1.msra.mxu0 0.0
    %520 = vmatprep.subr.mxu0 0.0
    %521 = vmatpush1.msra.mxu0 0.0
    %522 = vmatprep.subr.mxu0 0.0
    %523 = vmatpush1.msra.mxu0 0.0
    %524 = vmatprep.subr.mxu0 0.0
    %525 = vmatpush1.msra.mxu0 0.0
    %526 = vmatprep.subr.mxu0 0.0
    %527 = vmatpush1.msra.mxu0 0.0
    %528 = vmatprep.mubr.f32.mxu0 0.0
    %v529 = vand.u32 %v48, 4294901760
    %530 = vmatmul.mubr.f32.gmra.mrb[0].mxu0 %v529
    %v531 = vpop.f32.mrb[0].mxu0
    %v532 = vadd.f32 %v457, %v531
    %v533 = vpop.f32.mrb[0].mxu0
    %534 = vdwg.mxu0
    %v535 = vld [vmem:[%s1] sm:$0xff]
    %v536 = vld [vmem:[%s1 + $0x8] sm:$0xff]
    %v537 = vld [vmem:[%s1 + $0x10] sm:$0xff]
    %v538 = vld [vmem:[%s1 + $0x18] sm:$0xff]
    %v539 = vld [vmem:[%s1 + $0x20] sm:$0xff]
    %v540 = vld [vmem:[%s1 + $0x28] sm:$0xff]
    %v541 = vld [vmem:[%s1 + $0x30] sm:$0xff]
    %v542 = vld [vmem:[%s1 + $0x38] sm:$0xff]
    %v543 = vld [vmem:[%s4] sm:$0xff]
    %v544 = vld [vmem:[%s4 + $0x8] sm:$0xff]
    %v545 = vld [vmem:[%s4 + $0x10] sm:$0xff]
    %v546 = vld [vmem:[%s4 + $0x18] sm:$0xff]
    %v547 = vld [vmem:[%s5] sm:$0x1]
    %v549 = vlaneseq
    %v550 = vshrl.u32 %v549, 7
    %v551 = vsub.s32 0, %v550
    %v552 = vrot.slane %v547, %v551
    %v555 = vsel %vm46, %v535, 0
    %v558 = vsel %vm46, %v536, 0
    %v561 = vsel %vm46, %v537, 0
    %v564 = vsel %vm46, %v538, 0
    %v567 = vsel %vm46, %v539, 0
    %v570 = vsel %vm46, %v540, 0
    %v573 = vsel %vm46, %v541, 0
    %v576 = vsel %vm46, %v542, 0
    %578 = vmatprep.subr.mxu0 0.0
    %v579 = vand.u32 %v543, 4294901760
    %580 = vmatpush1.msra.mxu0 %v579
    %581 = vmatprep.subr.mxu0 0.0
    %v582 = vand.u32 %v544, 4294901760
    %583 = vmatpush1.msra.mxu0 %v582
    %584 = vmatprep.subr.mxu0 0.0
    %v585 = vand.u32 %v545, 4294901760
    %586 = vmatpush1.msra.mxu0 %v585
    %587 = vmatprep.subr.mxu0 0.0
    %v588 = vand.u32 %v546, 4294901760
    %589 = vmatpush1.msra.mxu0 %v588
    %590 = vmatprep.subr.mxu0 0.0
    %591 = vmatpush1.msra.mxu0 0.0
    %592 = vmatprep.subr.mxu0 0.0
    %593 = vmatpush1.msra.mxu0 0.0
    %594 = vmatprep.subr.mxu0 0.0
    %595 = vmatpush1.msra.mxu0 0.0
    %596 = vmatprep.subr.mxu0 0.0
    %597 = vmatpush1.msra.mxu0 0.0
    %598 = vmatprep.subr.mxu0 0.0
    %599 = vmatpush1.msra.mxu0 0.0
    %600 = vmatprep.subr.mxu0 0.0
    %601 = vmatpush1.msra.mxu0 0.0
    %602 = vmatprep.subr.mxu0 0.0
    %603 = vmatpush1.msra.mxu0 0.0
    %604 = vmatprep.subr.mxu0 0.0
    %605 = vmatpush1.msra.mxu0 0.0
    %606 = vmatprep.subr.mxu0 0.0
    %607 = vmatpush1.msra.mxu0 0.0
    %608 = vmatprep.subr.mxu0 0.0
    %609 = vmatpush1.msra.mxu0 0.0
    %610 = vmatprep.subr.mxu0 0.0
    %611 = vmatpush1.msra.mxu0 0.0
    %612 = vmatprep.subr.mxu0 0.0
    %613 = vmatpush1.msra.mxu0 0.0
    %614 = vmatprep.subr.mxu0 0.0
    %615 = vmatpush1.msra.mxu0 0.0
    %616 = vmatprep.subr.mxu0 0.0
    %617 = vmatpush1.msra.mxu0 0.0
    %618 = vmatprep.subr.mxu0 0.0
    %619 = vmatpush1.msra.mxu0 0.0
    %620 = vmatprep.subr.mxu0 0.0
    %621 = vmatpush1.msra.mxu0 0.0
    %622 = vmatprep.subr.mxu0 0.0
    %623 = vmatpush1.msra.mxu0 0.0
    %624 = vmatprep.subr.mxu0 0.0
    %625 = vmatpush1.msra.mxu0 0.0
    %626 = vmatprep.subr.mxu0 0.0
    %627 = vmatpush1.msra.mxu0 0.0
    %628 = vmatprep.subr.mxu0 0.0
    %629 = vmatpush1.msra.mxu0 0.0
    %630 = vmatprep.subr.mxu0 0.0
    %631 = vmatpush1.msra.mxu0 0.0
    %632 = vmatprep.subr.mxu0 0.0
    %633 = vmatpush1.msra.mxu0 0.0
    %634 = vmatprep.subr.mxu0 0.0
    %635 = vmatpush1.msra.mxu0 0.0
    %636 = vmatprep.subr.mxu0 0.0
    %637 = vmatpush1.msra.mxu0 0.0
    %638 = vmatprep.subr.mxu0 0.0
    %639 = vmatpush1.msra.mxu0 0.0
    %640 = vmatprep.subr.mxu0 0.0
    %641 = vmatpush1.msra.mxu0 0.0
    %642 = vmatprep.subr.mxu0 0.0
    %643 = vmatpush1.msra.mxu0 0.0
    %644 = vmatprep.subr.mxu0 0.0
    %645 = vmatpush1.msra.mxu0 0.0
    %646 = vmatprep.mubr.f32.mxu0 0.0
    %v647 = vand.u32 %v555, 4294901760
    %v648 = vsub.f32 %v555, %v647
    %v649 = vand.u32 %v648, 4294901760
    %v650 = vsub.f32 %v648, %v649
    %v651 = vand.u32 %v650, 4294901760
    %652 = vmatmul.mubr.f32.gmra.mrb[0].mxu0 %v651
    %v653 = vpop.f32.mrb[0].mxu0
    %v654 = vadd.f32 %v552, %v653
    %v655 = vpop.f32.mrb[0].mxu0
    %656 = vmatprep.mubr.f32.mxu0 0.0
    %v657 = vand.u32 %v558, 4294901760
    %v658 = vsub.f32 %v558, %v657
    %v659 = vand.u32 %v658, 4294901760
    %v660 = vsub.f32 %v658, %v659
    %v661 = vand.u32 %v660, 4294901760
    %662 = vmatmul.mubr.f32.gmra.mrb[0].mxu0 %v661
    %v663 = vpop.f32.mrb[0].mxu0
    %v664 = vadd.f32 %v552, %v663
    %v665 = vpop.f32.mrb[0].mxu0
    %666 = vmatprep.mubr.f32.mxu0 0.0
    %v667 = vand.u32 %v561, 4294901760
    %v668 = vsub.f32 %v561, %v667
    %v669 = vand.u32 %v668, 4294901760
    %v670 = vsub.f32 %v668, %v669
    %v671 = vand.u32 %v670, 4294901760
    %672 = vmatmul.mubr.f32.gmra.mrb[0].mxu0 %v671
    %v673 = vpop.f32.mrb[0].mxu0
    %v674 = vadd.f32 %v552, %v673
    %v675 = vpop.f32.mrb[0].mxu0
    %676 = vmatprep.mubr.f32.mxu0 0.0
    %v677 = vand.u32 %v564, 4294901760
    %v678 = vsub.f32 %v564, %v677
    %v679 = vand.u32 %v678, 4294901760
    %v680 = vsub.f32 %v678, %v679
    %v681 = vand.u32 %v680, 4294901760
    %682 = vmatmul.mubr.f32.gmra.mrb[0].mxu0 %v681
    %v683 = vpop.f32.mrb[0].mxu0
    %v684 = vadd.f32 %v552, %v683
    %v685 = vpop.f32.mrb[0].mxu0
    %686 = vmatprep.mubr.f32.mxu0 0.0
    %v687 = vand.u32 %v567, 4294901760
    %v688 = vsub.f32 %v567, %v687
    %v689 = vand.u32 %v688, 4294901760
    %v690 = vsub.f32 %v688, %v689
    %v691 = vand.u32 %v690, 4294901760
    %692 = vmatmul.mubr.f32.gmra.mrb[0].mxu0 %v691
    %v693 = vpop.f32.mrb[0].mxu0
    %v694 = vadd.f32 %v552, %v693
    %v695 = vpop.f32.mrb[0].mxu0
    %696 = vmatprep.mubr.f32.mxu0 0.0
    %v697 = vand.u32 %v570, 4294901760
    %v698 = vsub.f32 %v570, %v697
    %v699 = vand.u32 %v698, 4294901760
    %v700 = vsub.f32 %v698, %v699
    %v701 = vand.u32 %v700, 4294901760
    %702 = vmatmul.mubr.f32.gmra.mrb[0].mxu0 %v701
    %v703 = vpop.f32.mrb[0].mxu0
    %v704 = vadd.f32 %v552, %v703
    %v705 = vpop.f32.mrb[0].mxu0
    %706 = vmatprep.mubr.f32.mxu0 0.0
    %v707 = vand.u32 %v573, 4294901760
    %v708 = vsub.f32 %v573, %v707
    %v709 = vand.u32 %v708, 4294901760
    %v710 = vsub.f32 %v708, %v709
    %v711 = vand.u32 %v710, 4294901760
    %712 = vmatmul.mubr.f32.gmra.mrb[0].mxu0 %v711
    %v713 = vpop.f32.mrb[0].mxu0
    %v714 = vadd.f32 %v552, %v713
    %v715 = vpop.f32.mrb[0].mxu0
    %716 = vmatprep.mubr.f32.mxu0 0.0
    %v717 = vand.u32 %v576, 4294901760
    %v718 = vsub.f32 %v576, %v717
    %v719 = vand.u32 %v718, 4294901760
    %v720 = vsub.f32 %v718, %v719
    %v721 = vand.u32 %v720, 4294901760
    %722 = vmatmul.mubr.f32.gmra.mrb[0].mxu0 %v721
    %v723 = vpop.f32.mrb[0].mxu0
    %v724 = vadd.f32 %v552, %v723
    %v725 = vpop.f32.mrb[0].mxu0
    %726 = vdwg.mxu0
    %727 = vmatprep.subr.mxu0 0.0
    %v728 = vand.u32 %v543, 4294901760
    %v729 = vsub.f32 %v543, %v728
    %v730 = vand.u32 %v729, 4294901760
    %v731 = vsub.f32 %v729, %v730
    %v732 = vand.u32 %v731, 4294901760
    %733 = vmatpush1.msra.mxu0 %v732
    %734 = vmatprep.subr.mxu0 0.0
    %v735 = vand.u32 %v544, 4294901760
    %v736 = vsub.f32 %v544, %v735
    %v737 = vand.u32 %v736, 4294901760
    %v738 = vsub.f32 %v736, %v737
    %v739 = vand.u32 %v738, 4294901760
    %740 = vmatpush1.msra.mxu0 %v739
    %741 = vmatprep.subr.mxu0 0.0
    %v742 = vand.u32 %v545, 4294901760
    %v743 = vsub.f32 %v545, %v742
    %v744 = vand.u32 %v743, 4294901760
    %v745 = vsub.f32 %v743, %v744
    %v746 = vand.u32 %v745, 4294901760
    %747 = vmatpush1.msra.mxu0 %v746
    %748 = vmatprep.subr.mxu0 0.0
    %v749 = vand.u32 %v546, 4294901760
    %v750 = vsub.f32 %v546, %v749
    %v751 = vand.u32 %v750, 4294901760
    %v752 = vsub.f32 %v750, %v751
    %v753 = vand.u32 %v752, 4294901760
    %754 = vmatpush1.msra.mxu0 %v753
    %755 = vmatprep.subr.mxu0 0.0
    %756 = vmatpush1.msra.mxu0 0.0
    %757 = vmatprep.subr.mxu0 0.0
    %758 = vmatpush1.msra.mxu0 0.0
    %759 = vmatprep.subr.mxu0 0.0
    %760 = vmatpush1.msra.mxu0 0.0
    %761 = vmatprep.subr.mxu0 0.0
    %762 = vmatpush1.msra.mxu0 0.0
    %763 = vmatprep.subr.mxu0 0.0
    %764 = vmatpush1.msra.mxu0 0.0
    %765 = vmatprep.subr.mxu0 0.0
    %766 = vmatpush1.msra.mxu0 0.0
    %767 = vmatprep.subr.mxu0 0.0
    %768 = vmatpush1.msra.mxu0 0.0
    %769 = vmatprep.subr.mxu0 0.0
    %770 = vmatpush1.msra.mxu0 0.0
    %771 = vmatprep.subr.mxu0 0.0
    %772 = vmatpush1.msra.mxu0 0.0
    %773 = vmatprep.subr.mxu0 0.0
    %774 = vmatpush1.msra.mxu0 0.0
    %775 = vmatprep.subr.mxu0 0.0
    %776 = vmatpush1.msra.mxu0 0.0
    %777 = vmatprep.subr.mxu0 0.0
    %778 = vmatpush1.msra.mxu0 0.0
    %779 = vmatprep.subr.mxu0 0.0
    %780 = vmatpush1.msra.mxu0 0.0
    %781 = vmatprep.subr.mxu0 0.0
    %782 = vmatpush1.msra.mxu0 0.0
    %783 = vmatprep.subr.mxu0 0.0
    %784 = vmatpush1.msra.mxu0 0.0
    %785 = vmatprep.subr.mxu0 0.0
    %786 = vmatpush1.msra.mxu0 0.0
    %787 = vmatprep.subr.mxu0 0.0
    %788 = vmatpush1.msra.mxu0 0.0
    %789 = vmatprep.subr.mxu0 0.0
    %790 = vmatpush1.msra.mxu0 0.0
    %791 = vmatprep.subr.mxu0 0.0
    %792 = vmatpush1.msra.mxu0 0.0
    %793 = vmatprep.subr.mxu0 0.0
    %794 = vmatpush1.msra.mxu0 0.0
    %795 = vmatprep.subr.mxu0 0.0
    %796 = vmatpush1.msra.mxu0 0.0
    %797 = vmatprep.subr.mxu0 0.0
    %798 = vmatpush1.msra.mxu0 0.0
    %799 = vmatprep.subr.mxu0 0.0
    %800 = vmatpush1.msra.mxu0 0.0
    %801 = vmatprep.subr.mxu0 0.0
    %802 = vmatpush1.msra.mxu0 0.0
    %803 = vmatprep.subr.mxu0 0.0
    %804 = vmatpush1.msra.mxu0 0.0
    %805 = vmatprep.subr.mxu0 0.0
    %806 = vmatpush1.msra.mxu0 0.0
    %807 = vmatprep.subr.mxu0 0.0
    %808 = vmatpush1.msra.mxu0 0.0
    %809 = vmatprep.subr.mxu0 0.0
    %810 = vmatpush1.msra.mxu0 0.0
    %811 = vmatprep.mubr.f32.mxu0 0.0
    %v812 = vand.u32 %v555, 4294901760
    %813 = vmatmul.mubr.f32.gmra.mrb[0].mxu0 %v812
    %v814 = vpop.f32.mrb[0].mxu0
    %v815 = vadd.f32 %v654, %v814
    %v816 = vpop.f32.mrb[0].mxu0
    %817 = vmatprep.mubr.f32.mxu0 0.0
    %v818 = vand.u32 %v558, 4294901760
    %819 = vmatmul.mubr.f32.gmra.mrb[0].mxu0 %v818
    %v820 = vpop.f32.mrb[0].mxu0
    %v821 = vadd.f32 %v664, %v820
    %v822 = vpop.f32.mrb[0].mxu0
    %823 = vmatprep.mubr.f32.mxu0 0.0
    %v824 = vand.u32 %v561, 4294901760
    %825 = vmatmul.mubr.f32.gmra.mrb[0].mxu0 %v824
    %v826 = vpop.f32.mrb[0].mxu0
    %v827 = vadd.f32 %v674, %v826
    %v828 = vpop.f32.mrb[0].mxu0
    %829 = vmatprep.mubr.f32.mxu0 0.0
    %v830 = vand.u32 %v564, 4294901760
    %831 = vmatmul.mubr.f32.gmra.mrb[0].mxu0 %v830
    %v832 = vpop.f32.mrb[0].mxu0
    %v833 = vadd.f32 %v684, %v832
    %v834 = vpop.f32.mrb[0].mxu0
    %835 = vmatprep.mubr.f32.mxu0 0.0
    %v836 = vand.u32 %v567, 4294901760
    %837 = vmatmul.mubr.f32.gmra.mrb[0].mxu0 %v836
    %v838 = vpop.f32.mrb[0].mxu0
    %v839 = vadd.f32 %v694, %v838
    %v840 = vpop.f32.mrb[0].mxu0
    %841 = vmatprep.mubr.f32.mxu0 0.0
    %v842 = vand.u32 %v570, 4294901760
    %843 = vmatmul.mubr.f32.gmra.mrb[0].mxu0 %v842
    %v844 = vpop.f32.mrb[0].mxu0
    %v845 = vadd.f32 %v704, %v844
    %v846 = vpop.f32.mrb[0].mxu0
    %847 = vmatprep.mubr.f32.mxu0 0.0
    %v848 = vand.u32 %v573, 4294901760
    %849 = vmatmul.mubr.f32.gmra.mrb[0].mxu0 %v848
    %v850 = vpop.f32.mrb[0].mxu0
    %v851 = vadd.f32 %v714, %v850
    %v852 = vpop.f32.mrb[0].mxu0
    %853 = vmatprep.mubr.f32.mxu0 0.0
    %v854 = vand.u32 %v576, 4294901760
    %855 = vmatmul.mubr.f32.gmra.mrb[0].mxu0 %v854
    %v856 = vpop.f32.mrb[0].mxu0
    %v857 = vadd.f32 %v724, %v856
    %v858 = vpop.f32.mrb[0].mxu0
    %859 = vdwg.mxu0
    %860 = vmatprep.subr.mxu0 0.0
    %v861 = vand.u32 %v543, 4294901760
    %v862 = vsub.f32 %v543, %v861
    %863 = vmatpush1.msra.mxu0 %v862
    %864 = vmatprep.subr.mxu0 0.0
    %v865 = vand.u32 %v544, 4294901760
    %v866 = vsub.f32 %v544, %v865
    %867 = vmatpush1.msra.mxu0 %v866
    %868 = vmatprep.subr.mxu0 0.0
    %v869 = vand.u32 %v545, 4294901760
    %v870 = vsub.f32 %v545, %v869
    %871 = vmatpush1.msra.mxu0 %v870
    %872 = vmatprep.subr.mxu0 0.0
    %v873 = vand.u32 %v546, 4294901760
    %v874 = vsub.f32 %v546, %v873
    %875 = vmatpush1.msra.mxu0 %v874
    %876 = vmatprep.subr.mxu0 0.0
    %877 = vmatpush1.msra.mxu0 0.0
    %878 = vmatprep.subr.mxu0 0.0
    %879 = vmatpush1.msra.mxu0 0.0
    %880 = vmatprep.subr.mxu0 0.0
    %881 = vmatpush1.msra.mxu0 0.0
    %882 = vmatprep.subr.mxu0 0.0
    %883 = vmatpush1.msra.mxu0 0.0
    %884 = vmatprep.subr.mxu0 0.0
    %885 = vmatpush1.msra.mxu0 0.0
    %886 = vmatprep.subr.mxu0 0.0
    %887 = vmatpush1.msra.mxu0 0.0
    %888 = vmatprep.subr.mxu0 0.0
    %889 = vmatpush1.msra.mxu0 0.0
    %890 = vmatprep.subr.mxu0 0.0
    %891 = vmatpush1.msra.mxu0 0.0
    %892 = vmatprep.subr.mxu0 0.0
    %893 = vmatpush1.msra.mxu0 0.0
    %894 = vmatprep.subr.mxu0 0.0
    %895 = vmatpush1.msra.mxu0 0.0
    %896 = vmatprep.subr.mxu0 0.0
    %897 = vmatpush1.msra.mxu0 0.0
    %898 = vmatprep.subr.mxu0 0.0
    %899 = vmatpush1.msra.mxu0 0.0
    %900 = vmatprep.subr.mxu0 0.0
    %901 = vmatpush1.msra.mxu0 0.0
    %902 = vmatprep.subr.mxu0 0.0
    %903 = vmatpush1.msra.mxu0 0.0
    %904 = vmatprep.subr.mxu0 0.0
    %905 = vmatpush1.msra.mxu0 0.0
    %906 = vmatprep.subr.mxu0 0.0
    %907 = vmatpush1.msra.mxu0 0.0
    %908 = vmatprep.subr.mxu0 0.0
    %909 = vmatpush1.msra.mxu0 0.0
    %910 = vmatprep.subr.mxu0 0.0
    %911 = vmatpush1.msra.mxu0 0.0
    %912 = vmatprep.subr.mxu0 0.0
    %913 = vmatpush1.msra.mxu0 0.0
    %914 = vmatprep.subr.mxu0 0.0
    %915 = vmatpush1.msra.mxu0 0.0
    %916 = vmatprep.subr.mxu0 0.0
    %917 = vmatpush1.msra.mxu0 0.0
    %918 = vmatprep.subr.mxu0 0.0
    %919 = vmatpush1.msra.mxu0 0.0
    %920 = vmatprep.subr.mxu0 0.0
    %921 = vmatpush1.msra.mxu0 0.0
    %922 = vmatprep.subr.mxu0 0.0
    %923 = vmatpush1.msra.mxu0 0.0
    %924 = vmatprep.subr.mxu0 0.0
    %925 = vmatpush1.msra.mxu0 0.0
    %926 = vmatprep.subr.mxu0 0.0
    %927 = vmatpush1.msra.mxu0 0.0
    %928 = vmatprep.subr.mxu0 0.0
    %929 = vmatpush1.msra.mxu0 0.0
    %930 = vmatprep.subr.mxu0 0.0
    %931 = vmatpush1.msra.mxu0 0.0
    %932 = vmatprep.mubr.f32.mxu0 0.0
    %v933 = vand.u32 %v555, 4294901760
    %v934 = vsub.f32 %v555, %v933
    %935 = vmatmul.mubr.f32.gmra.mrb[0].mxu0 %v934
    %v936 = vpop.f32.mrb[0].mxu0
    %v937 = vadd.f32 %v815, %v936
    %v938 = vpop.f32.mrb[0].mxu0
    %939 = vmatprep.mubr.f32.mxu0 0.0
    %v940 = vand.u32 %v558, 4294901760
    %v941 = vsub.f32 %v558, %v940
    %942 = vmatmul.mubr.f32.gmra.mrb[0].mxu0 %v941
    %v943 = vpop.f32.mrb[0].mxu0
    %v944 = vadd.f32 %v821, %v943
    %v945 = vpop.f32.mrb[0].mxu0
    %946 = vmatprep.mubr.f32.mxu0 0.0
    %v947 = vand.u32 %v561, 4294901760
    %v948 = vsub.f32 %v561, %v947
    %949 = vmatmul.mubr.f32.gmra.mrb[0].mxu0 %v948
    %v950 = vpop.f32.mrb[0].mxu0
    %v951 = vadd.f32 %v827, %v950
    %v952 = vpop.f32.mrb[0].mxu0
    %953 = vmatprep.mubr.f32.mxu0 0.0
    %v954 = vand.u32 %v564, 4294901760
    %v955 = vsub.f32 %v564, %v954
    %956 = vmatmul.mubr.f32.gmra.mrb[0].mxu0 %v955
    %v957 = vpop.f32.mrb[0].mxu0
    %v958 = vadd.f32 %v833, %v957
    %v959 = vpop.f32.mrb[0].mxu0
    %960 = vmatprep.mubr.f32.mxu0 0.0
    %v961 = vand.u32 %v567, 4294901760
    %v962 = vsub.f32 %v567, %v961
    %963 = vmatmul.mubr.f32.gmra.mrb[0].mxu0 %v962
    %v964 = vpop.f32.mrb[0].mxu0
    %v965 = vadd.f32 %v839, %v964
    %v966 = vpop.f32.mrb[0].mxu0
    %967 = vmatprep.mubr.f32.mxu0 0.0
    %v968 = vand.u32 %v570, 4294901760
    %v969 = vsub.f32 %v570, %v968
    %970 = vmatmul.mubr.f32.gmra.mrb[0].mxu0 %v969
    %v971 = vpop.f32.mrb[0].mxu0
    %v972 = vadd.f32 %v845, %v971
    %v973 = vpop.f32.mrb[0].mxu0
    %974 = vmatprep.mubr.f32.mxu0 0.0
    %v975 = vand.u32 %v573, 4294901760
    %v976 = vsub.f32 %v573, %v975
    %977 = vmatmul.mubr.f32.gmra.mrb[0].mxu0 %v976
    %v978 = vpop.f32.mrb[0].mxu0
    %v979 = vadd.f32 %v851, %v978
    %v980 = vpop.f32.mrb[0].mxu0
    %981 = vmatprep.mubr.f32.mxu0 0.0
    %v982 = vand.u32 %v576, 4294901760
    %v983 = vsub.f32 %v576, %v982
    %984 = vmatmul.mubr.f32.gmra.mrb[0].mxu0 %v983
    %v985 = vpop.f32.mrb[0].mxu0
    %v986 = vadd.f32 %v857, %v985
    %v987 = vpop.f32.mrb[0].mxu0
    %988 = vdwg.mxu0
    %989 = vmatprep.subr.mxu0 0.0
    %v990 = vand.u32 %v543, 4294901760
    %991 = vmatpush1.msra.mxu0 %v990
    %992 = vmatprep.subr.mxu0 0.0
    %v993 = vand.u32 %v544, 4294901760
    %994 = vmatpush1.msra.mxu0 %v993
    %995 = vmatprep.subr.mxu0 0.0
    %v996 = vand.u32 %v545, 4294901760
    %997 = vmatpush1.msra.mxu0 %v996
    %998 = vmatprep.subr.mxu0 0.0
    %v999 = vand.u32 %v546, 4294901760
    %1000 = vmatpush1.msra.mxu0 %v999
    %1001 = vmatprep.subr.mxu0 0.0
    %1002 = vmatpush1.msra.mxu0 0.0
    %1003 = vmatprep.subr.mxu0 0.0
    %1004 = vmatpush1.msra.mxu0 0.0
    %1005 = vmatprep.subr.mxu0 0.0
    %1006 = vmatpush1.msra.mxu0 0.0
    %1007 = vmatprep.subr.mxu0 0.0
    %1008 = vmatpush1.msra.mxu0 0.0
    %1009 = vmatprep.subr.mxu0 0.0
    %1010 = vmatpush1.msra.mxu0 0.0
    %1011 = vmatprep.subr.mxu0 0.0
    %1012 = vmatpush1.msra.mxu0 0.0
    %1013 = vmatprep.subr.mxu0 0.0
    %1014 = vmatpush1.msra.mxu0 0.0
    %1015 = vmatprep.subr.mxu0 0.0
    %1016 = vmatpush1.msra.mxu0 0.0
    %1017 = vmatprep.subr.mxu0 0.0
    %1018 = vmatpush1.msra.mxu0 0.0
    %1019 = vmatprep.subr.mxu0 0.0
    %1020 = vmatpush1.msra.mxu0 0.0
    %1021 = vmatprep.subr.mxu0 0.0
    %1022 = vmatpush1.msra.mxu0 0.0
    %1023 = vmatprep.subr.mxu0 0.0
    %1024 = vmatpush1.msra.mxu0 0.0
    %1025 = vmatprep.subr.mxu0 0.0
    %1026 = vmatpush1.msra.mxu0 0.0
    %1027 = vmatprep.subr.mxu0 0.0
    %1028 = vmatpush1.msra.mxu0 0.0
    %1029 = vmatprep.subr.mxu0 0.0
    %1030 = vmatpush1.msra.mxu0 0.0
    %1031 = vmatprep.subr.mxu0 0.0
    %1032 = vmatpush1.msra.mxu0 0.0
    %1033 = vmatprep.subr.mxu0 0.0
    %1034 = vmatpush1.msra.mxu0 0.0
    %1035 = vmatprep.subr.mxu0 0.0
    %1036 = vmatpush1.msra.mxu0 0.0
    %1037 = vmatprep.subr.mxu0 0.0
    %1038 = vmatpush1.msra.mxu0 0.0
    %1039 = vmatprep.subr.mxu0 0.0
    %1040 = vmatpush1.msra.mxu0 0.0
    %1041 = vmatprep.subr.mxu0 0.0
    %1042 = vmatpush1.msra.mxu0 0.0
    %1043 = vmatprep.subr.mxu0 0.0
    %1044 = vmatpush1.msra.mxu0 0.0
    %1045 = vmatprep.subr.mxu0 0.0
    %1046 = vmatpush1.msra.mxu0 0.0
    %1047 = vmatprep.subr.mxu0 0.0
    %1048 = vmatpush1.msra.mxu0 0.0
    %1049 = vmatprep.subr.mxu0 0.0
    %1050 = vmatpush1.msra.mxu0 0.0
    %1051 = vmatprep.subr.mxu0 0.0
    %1052 = vmatpush1.msra.mxu0 0.0
    %1053 = vmatprep.subr.mxu0 0.0
    %1054 = vmatpush1.msra.mxu0 0.0
    %1055 = vmatprep.subr.mxu0 0.0
    %1056 = vmatpush1.msra.mxu0 0.0
    %1057 = vmatprep.mubr.f32.mxu0 0.0
    %v1058 = vand.u32 %v555, 4294901760
    %v1059 = vsub.f32 %v555, %v1058
    %v1060 = vand.u32 %v1059, 4294901760
    %1061 = vmatmul.mubr.f32.gmra.mrb[0].mxu0 %v1060
    %v1062 = vpop.f32.mrb[0].mxu0
    %v1063 = vadd.f32 %v937, %v1062
    %v1064 = vpop.f32.mrb[0].mxu0
    %1065 = vmatprep.mubr.f32.mxu0 0.0
    %v1066 = vand.u32 %v558, 4294901760
    %v1067 = vsub.f32 %v558, %v1066
    %v1068 = vand.u32 %v1067, 4294901760
    %1069 = vmatmul.mubr.f32.gmra.mrb[0].mxu0 %v1068
    %v1070 = vpop.f32.mrb[0].mxu0
    %v1071 = vadd.f32 %v944, %v1070
    %v1072 = vpop.f32.mrb[0].mxu0
    %1073 = vmatprep.mubr.f32.mxu0 0.0
    %v1074 = vand.u32 %v561, 4294901760
    %v1075 = vsub.f32 %v561, %v1074
    %v1076 = vand.u32 %v1075, 4294901760
    %1077 = vmatmul.mubr.f32.gmra.mrb[0].mxu0 %v1076
    %v1078 = vpop.f32.mrb[0].mxu0
    %v1079 = vadd.f32 %v951, %v1078
    %v1080 = vpop.f32.mrb[0].mxu0
    %1081 = vmatprep.mubr.f32.mxu0 0.0
    %v1082 = vand.u32 %v564, 4294901760
    %v1083 = vsub.f32 %v564, %v1082
    %v1084 = vand.u32 %v1083, 4294901760
    %1085 = vmatmul.mubr.f32.gmra.mrb[0].mxu0 %v1084
    %v1086 = vpop.f32.mrb[0].mxu0
    %v1087 = vadd.f32 %v958, %v1086
    %v1088 = vpop.f32.mrb[0].mxu0
    %1089 = vmatprep.mubr.f32.mxu0 0.0
    %v1090 = vand.u32 %v567, 4294901760
    %v1091 = vsub.f32 %v567, %v1090
    %v1092 = vand.u32 %v1091, 4294901760
    %1093 = vmatmul.mubr.f32.gmra.mrb[0].mxu0 %v1092
    %v1094 = vpop.f32.mrb[0].mxu0
    %v1095 = vadd.f32 %v965, %v1094
    %v1096 = vpop.f32.mrb[0].mxu0
    %1097 = vmatprep.mubr.f32.mxu0 0.0
    %v1098 = vand.u32 %v570, 4294901760
    %v1099 = vsub.f32 %v570, %v1098
    %v1100 = vand.u32 %v1099, 4294901760
    %1101 = vmatmul.mubr.f32.gmra.mrb[0].mxu0 %v1100
    %v1102 = vpop.f32.mrb[0].mxu0
    %v1103 = vadd.f32 %v972, %v1102
    %v1104 = vpop.f32.mrb[0].mxu0
    %1105 = vmatprep.mubr.f32.mxu0 0.0
    %v1106 = vand.u32 %v573, 4294901760
    %v1107 = vsub.f32 %v573, %v1106
    %v1108 = vand.u32 %v1107, 4294901760
    %1109 = vmatmul.mubr.f32.gmra.mrb[0].mxu0 %v1108
    %v1110 = vpop.f32.mrb[0].mxu0
    %v1111 = vadd.f32 %v979, %v1110
    %v1112 = vpop.f32.mrb[0].mxu0
    %1113 = vmatprep.mubr.f32.mxu0 0.0
    %v1114 = vand.u32 %v576, 4294901760
    %v1115 = vsub.f32 %v576, %v1114
    %v1116 = vand.u32 %v1115, 4294901760
    %1117 = vmatmul.mubr.f32.gmra.mrb[0].mxu0 %v1116
    %v1118 = vpop.f32.mrb[0].mxu0
    %v1119 = vadd.f32 %v986, %v1118
    %v1120 = vpop.f32.mrb[0].mxu0
    %1121 = vdwg.mxu0
    %1122 = vmatprep.subr.mxu0 0.0
    %v1123 = vand.u32 %v543, 4294901760
    %v1124 = vsub.f32 %v543, %v1123
    %v1125 = vand.u32 %v1124, 4294901760
    %1126 = vmatpush1.msra.mxu0 %v1125
    %1127 = vmatprep.subr.mxu0 0.0
    %v1128 = vand.u32 %v544, 4294901760
    %v1129 = vsub.f32 %v544, %v1128
    %v1130 = vand.u32 %v1129, 4294901760
    %1131 = vmatpush1.msra.mxu0 %v1130
    %1132 = vmatprep.subr.mxu0 0.0
    %v1133 = vand.u32 %v545, 4294901760
    %v1134 = vsub.f32 %v545, %v1133
    %v1135 = vand.u32 %v1134, 4294901760
    %1136 = vmatpush1.msra.mxu0 %v1135
    %1137 = vmatprep.subr.mxu0 0.0
    %v1138 = vand.u32 %v546, 4294901760
    %v1139 = vsub.f32 %v546, %v1138
    %v1140 = vand.u32 %v1139, 4294901760
    %1141 = vmatpush1.msra.mxu0 %v1140
    %1142 = vmatprep.subr.mxu0 0.0
    %1143 = vmatpush1.msra.mxu0 0.0
    %1144 = vmatprep.subr.mxu0 0.0
    %1145 = vmatpush1.msra.mxu0 0.0
    %1146 = vmatprep.subr.mxu0 0.0
    %1147 = vmatpush1.msra.mxu0 0.0
    %1148 = vmatprep.subr.mxu0 0.0
    %1149 = vmatpush1.msra.mxu0 0.0
    %1150 = vmatprep.subr.mxu0 0.0
    %1151 = vmatpush1.msra.mxu0 0.0
    %1152 = vmatprep.subr.mxu0 0.0
    %1153 = vmatpush1.msra.mxu0 0.0
    %1154 = vmatprep.subr.mxu0 0.0
    %1155 = vmatpush1.msra.mxu0 0.0
    %1156 = vmatprep.subr.mxu0 0.0
    %1157 = vmatpush1.msra.mxu0 0.0
    %1158 = vmatprep.subr.mxu0 0.0
    %1159 = vmatpush1.msra.mxu0 0.0
    %1160 = vmatprep.subr.mxu0 0.0
    %1161 = vmatpush1.msra.mxu0 0.0
    %1162 = vmatprep.subr.mxu0 0.0
    %1163 = vmatpush1.msra.mxu0 0.0
    %1164 = vmatprep.subr.mxu0 0.0
    %1165 = vmatpush1.msra.mxu0 0.0
    %1166 = vmatprep.subr.mxu0 0.0
    %1167 = vmatpush1.msra.mxu0 0.0
    %1168 = vmatprep.subr.mxu0 0.0
    %1169 = vmatpush1.msra.mxu0 0.0
    %1170 = vmatprep.subr.mxu0 0.0
    %1171 = vmatpush1.msra.mxu0 0.0
    %1172 = vmatprep.subr.mxu0 0.0
    %1173 = vmatpush1.msra.mxu0 0.0
    %1174 = vmatprep.subr.mxu0 0.0
    %1175 = vmatpush1.msra.mxu0 0.0
    %1176 = vmatprep.subr.mxu0 0.0
    %1177 = vmatpush1.msra.mxu0 0.0
    %1178 = vmatprep.subr.mxu0 0.0
    %1179 = vmatpush1.msra.mxu0 0.0
    %1180 = vmatprep.subr.mxu0 0.0
    %1181 = vmatpush1.msra.mxu0 0.0
    %1182 = vmatprep.subr.mxu0 0.0
    %1183 = vmatpush1.msra.mxu0 0.0
    %1184 = vmatprep.subr.mxu0 0.0
    %1185 = vmatpush1.msra.mxu0 0.0
    %1186 = vmatprep.subr.mxu0 0.0
    %1187 = vmatpush1.msra.mxu0 0.0
    %1188 = vmatprep.subr.mxu0 0.0
    %1189 = vmatpush1.msra.mxu0 0.0
    %1190 = vmatprep.subr.mxu0 0.0
    %1191 = vmatpush1.msra.mxu0 0.0
    %1192 = vmatprep.subr.mxu0 0.0
    %1193 = vmatpush1.msra.mxu0 0.0
    %1194 = vmatprep.subr.mxu0 0.0
    %1195 = vmatpush1.msra.mxu0 0.0
    %1196 = vmatprep.subr.mxu0 0.0
    %1197 = vmatpush1.msra.mxu0 0.0
    %1198 = vmatprep.mubr.f32.mxu0 0.0
    %v1199 = vand.u32 %v555, 4294901760
    %1200 = vmatmul.mubr.f32.gmra.mrb[0].mxu0 %v1199
    %v1201 = vpop.f32.mrb[0].mxu0
    %v1202 = vadd.f32 %v1063, %v1201
    %v1203 = vpop.f32.mrb[0].mxu0
    %1204 = vmatprep.mubr.f32.mxu0 0.0
    %v1205 = vand.u32 %v558, 4294901760
    %1206 = vmatmul.mubr.f32.gmra.mrb[0].mxu0 %v1205
    %v1207 = vpop.f32.mrb[0].mxu0
    %v1208 = vadd.f32 %v1071, %v1207
    %v1209 = vpop.f32.mrb[0].mxu0
    %1210 = vmatprep.mubr.f32.mxu0 0.0
    %v1211 = vand.u32 %v561, 4294901760
    %1212 = vmatmul.mubr.f32.gmra.mrb[0].mxu0 %v1211
    %v1213 = vpop.f32.mrb[0].mxu0
    %v1214 = vadd.f32 %v1079, %v1213
    %v1215 = vpop.f32.mrb[0].mxu0
    %1216 = vmatprep.mubr.f32.mxu0 0.0
    %v1217 = vand.u32 %v564, 4294901760
    %1218 = vmatmul.mubr.f32.gmra.mrb[0].mxu0 %v1217
    %v1219 = vpop.f32.mrb[0].mxu0
    %v1220 = vadd.f32 %v1087, %v1219
    %v1221 = vpop.f32.mrb[0].mxu0
    %1222 = vmatprep.mubr.f32.mxu0 0.0
    %v1223 = vand.u32 %v567, 4294901760
    %1224 = vmatmul.mubr.f32.gmra.mrb[0].mxu0 %v1223
    %v1225 = vpop.f32.mrb[0].mxu0
    %v1226 = vadd.f32 %v1095, %v1225
    %v1227 = vpop.f32.mrb[0].mxu0
    %1228 = vmatprep.mubr.f32.mxu0 0.0
    %v1229 = vand.u32 %v570, 4294901760
    %1230 = vmatmul.mubr.f32.gmra.mrb[0].mxu0 %v1229
    %v1231 = vpop.f32.mrb[0].mxu0
    %v1232 = vadd.f32 %v1103, %v1231
    %v1233 = vpop.f32.mrb[0].mxu0
    %1234 = vmatprep.mubr.f32.mxu0 0.0
    %v1235 = vand.u32 %v573, 4294901760
    %1236 = vmatmul.mubr.f32.gmra.mrb[0].mxu0 %v1235
    %v1237 = vpop.f32.mrb[0].mxu0
    %v1238 = vadd.f32 %v1111, %v1237
    %v1239 = vpop.f32.mrb[0].mxu0
    %1240 = vmatprep.mubr.f32.mxu0 0.0
    %v1241 = vand.u32 %v576, 4294901760
    %1242 = vmatmul.mubr.f32.gmra.mrb[0].mxu0 %v1241
    %v1243 = vpop.f32.mrb[0].mxu0
    %v1244 = vadd.f32 %v1119, %v1243
    %v1245 = vpop.f32.mrb[0].mxu0
    %1246 = vdwg.mxu0
    %1247 = vmatprep.subr.mxu0 0.0
    %v1248 = vand.u32 %v543, 4294901760
    %1249 = vmatpush1.msra.mxu0 %v1248
    %1250 = vmatprep.subr.mxu0 0.0
    %v1251 = vand.u32 %v544, 4294901760
    %1252 = vmatpush1.msra.mxu0 %v1251
    %1253 = vmatprep.subr.mxu0 0.0
    %v1254 = vand.u32 %v545, 4294901760
    %1255 = vmatpush1.msra.mxu0 %v1254
    %1256 = vmatprep.subr.mxu0 0.0
    %v1257 = vand.u32 %v546, 4294901760
    %1258 = vmatpush1.msra.mxu0 %v1257
    %1259 = vmatprep.subr.mxu0 0.0
    %1260 = vmatpush1.msra.mxu0 0.0
    %1261 = vmatprep.subr.mxu0 0.0
    %1262 = vmatpush1.msra.mxu0 0.0
    %1263 = vmatprep.subr.mxu0 0.0
    %1264 = vmatpush1.msra.mxu0 0.0
    %1265 = vmatprep.subr.mxu0 0.0
    %1266 = vmatpush1.msra.mxu0 0.0
    %1267 = vmatprep.subr.mxu0 0.0
    %1268 = vmatpush1.msra.mxu0 0.0
    %1269 = vmatprep.subr.mxu0 0.0
    %1270 = vmatpush1.msra.mxu0 0.0
    %1271 = vmatprep.subr.mxu0 0.0
    %1272 = vmatpush1.msra.mxu0 0.0
    %1273 = vmatprep.subr.mxu0 0.0
    %1274 = vmatpush1.msra.mxu0 0.0
    %1275 = vmatprep.subr.mxu0 0.0
    %1276 = vmatpush1.msra.mxu0 0.0
    %1277 = vmatprep.subr.mxu0 0.0
    %1278 = vmatpush1.msra.mxu0 0.0
    %1279 = vmatprep.subr.mxu0 0.0
    %1280 = vmatpush1.msra.mxu0 0.0
    %1281 = vmatprep.subr.mxu0 0.0
    %1282 = vmatpush1.msra.mxu0 0.0
    %1283 = vmatprep.subr.mxu0 0.0
    %1284 = vmatpush1.msra.mxu0 0.0
    %1285 = vmatprep.subr.mxu0 0.0
    %1286 = vmatpush1.msra.mxu0 0.0
    %1287 = vmatprep.subr.mxu0 0.0
    %1288 = vmatpush1.msra.mxu0 0.0
    %1289 = vmatprep.subr.mxu0 0.0
    %1290 = vmatpush1.msra.mxu0 0.0
    %1291 = vmatprep.subr.mxu0 0.0
    %1292 = vmatpush1.msra.mxu0 0.0
    %1293 = vmatprep.subr.mxu0 0.0
    %1294 = vmatpush1.msra.mxu0 0.0
    %1295 = vmatprep.subr.mxu0 0.0
    %1296 = vmatpush1.msra.mxu0 0.0
    %1297 = vmatprep.subr.mxu0 0.0
    %1298 = vmatpush1.msra.mxu0 0.0
    %1299 = vmatprep.subr.mxu0 0.0
    %1300 = vmatpush1.msra.mxu0 0.0
    %1301 = vmatprep.subr.mxu0 0.0
    %1302 = vmatpush1.msra.mxu0 0.0
    %1303 = vmatprep.subr.mxu0 0.0
    %1304 = vmatpush1.msra.mxu0 0.0
    %1305 = vmatprep.subr.mxu0 0.0
    %1306 = vmatpush1.msra.mxu0 0.0
    %1307 = vmatprep.subr.mxu0 0.0
    %1308 = vmatpush1.msra.mxu0 0.0
    %1309 = vmatprep.subr.mxu0 0.0
    %1310 = vmatpush1.msra.mxu0 0.0
    %1311 = vmatprep.subr.mxu0 0.0
    %1312 = vmatpush1.msra.mxu0 0.0
    %1313 = vmatprep.subr.mxu0 0.0
    %1314 = vmatpush1.msra.mxu0 0.0
    %1315 = vmatprep.mubr.f32.mxu0 0.0
    %v1316 = vand.u32 %v555, 4294901760
    %1317 = vmatmul.mubr.f32.gmra.mrb[0].mxu0 %v1316
    %v1318 = vpop.f32.mrb[0].mxu0
    %v1319 = vadd.f32 %v1202, %v1318
    %v1320 = vpop.f32.mrb[0].mxu0
    %1321 = vmatprep.mubr.f32.mxu0 0.0
    %v1322 = vand.u32 %v558, 4294901760
    %1323 = vmatmul.mubr.f32.gmra.mrb[0].mxu0 %v1322
    %v1324 = vpop.f32.mrb[0].mxu0
    %v1325 = vadd.f32 %v1208, %v1324
    %v1326 = vpop.f32.mrb[0].mxu0
    %1327 = vmatprep.mubr.f32.mxu0 0.0
    %v1328 = vand.u32 %v561, 4294901760
    %1329 = vmatmul.mubr.f32.gmra.mrb[0].mxu0 %v1328
    %v1330 = vpop.f32.mrb[0].mxu0
    %v1331 = vadd.f32 %v1214, %v1330
    %v1332 = vpop.f32.mrb[0].mxu0
    %1333 = vmatprep.mubr.f32.mxu0 0.0
    %v1334 = vand.u32 %v564, 4294901760
    %1335 = vmatmul.mubr.f32.gmra.mrb[0].mxu0 %v1334
    %v1336 = vpop.f32.mrb[0].mxu0
    %v1337 = vadd.f32 %v1220, %v1336
    %v1338 = vpop.f32.mrb[0].mxu0
    %1339 = vmatprep.mubr.f32.mxu0 0.0
    %v1340 = vand.u32 %v567, 4294901760
    %1341 = vmatmul.mubr.f32.gmra.mrb[0].mxu0 %v1340
    %v1342 = vpop.f32.mrb[0].mxu0
    %v1343 = vadd.f32 %v1226, %v1342
    %v1344 = vpop.f32.mrb[0].mxu0
    %1345 = vmatprep.mubr.f32.mxu0 0.0
    %v1346 = vand.u32 %v570, 4294901760
    %1347 = vmatmul.mubr.f32.gmra.mrb[0].mxu0 %v1346
    %v1348 = vpop.f32.mrb[0].mxu0
    %v1349 = vadd.f32 %v1232, %v1348
    %v1350 = vpop.f32.mrb[0].mxu0
    %1351 = vmatprep.mubr.f32.mxu0 0.0
    %v1352 = vand.u32 %v573, 4294901760
    %1353 = vmatmul.mubr.f32.gmra.mrb[0].mxu0 %v1352
    %v1354 = vpop.f32.mrb[0].mxu0
    %v1355 = vadd.f32 %v1238, %v1354
    %v1356 = vpop.f32.mrb[0].mxu0
    %1357 = vmatprep.mubr.f32.mxu0 0.0
    %v1358 = vand.u32 %v576, 4294901760
    %1359 = vmatmul.mubr.f32.gmra.mrb[0].mxu0 %v1358
    %v1360 = vpop.f32.mrb[0].mxu0
    %v1361 = vadd.f32 %v1244, %v1360
    %v1362 = vpop.f32.mrb[0].mxu0
    %1363 = vdwg.mxu0
    %v1364 = vld [vmem:[%s6] sm:$0x1]
    %s1365 = sld [smem:[#allocation2]]
    %v1367 = vcombine.high %v532, %v532
    %v1369 = vunpack.c.l.s4 1966171168
    %v1370 = vunpack.c.0.s8 %v1369
    %v1371 = vlaneseq
    %v1372 = vshrl.u32 %v1371, 7
    %v1373 = vsub.s32 %v1370, %v1372
    %v1374 = vrot.slane %v532, %v1373
    %v1376 = vunpack.c.l.s4 1966171168
    %v1377 = vunpack.c.0.s8 %v1376
    %v1378 = vlaneseq
    %v1379 = vshrl.u32 %v1378, 7
    %v1380 = vsub.s32 %v1377, %v1379
    %v1381 = vrot.slane %v1367, %v1380
    %v1382 = vcombine.high %v1374, %v1374
    %v1383 = vcombine.high %v1381, %v1381
    %v1385 = vunpack.c.l.s4 1966171168
    %v1386 = vunpack.c.0.s8 %v1385
    %v1387 = vlaneseq
    %v1388 = vshrl.u32 %v1387, 7
    %v1389 = vsub.s32 %v1386, %v1388
    %v1390 = vrot.slane %v1374, %v1389
    %v1392 = vunpack.c.l.s4 1966171168
    %v1393 = vunpack.c.0.s8 %v1392
    %v1394 = vlaneseq
    %v1395 = vshrl.u32 %v1394, 7
    %v1396 = vsub.s32 %v1393, %v1395
    %v1397 = vrot.slane %v1381, %v1396
    %v1399 = vunpack.c.l.s4 1966171168
    %v1400 = vunpack.c.0.s8 %v1399
    %v1401 = vlaneseq
    %v1402 = vshrl.u32 %v1401, 7
    %v1403 = vsub.s32 %v1400, %v1402
    %v1404 = vrot.slane %v1382, %v1403
    %v1406 = vunpack.c.l.s4 1966171168
    %v1407 = vunpack.c.0.s8 %v1406
    %v1408 = vlaneseq
    %v1409 = vshrl.u32 %v1408, 7
    %v1410 = vsub.s32 %v1407, %v1409
    %v1411 = vrot.slane %v1383, %v1410
    %v1412 = vcombine.high %v1390, %v1390
    %v1413 = vcombine.high %v1397, %v1397
    %v1414 = vcombine.high %v1404, %v1404
    %v1415 = vcombine.high %v1411, %v1411
    %v1416 = vlaneseq
    %v1417 = vshrl.u32 %v1416, 7
    %v1418 = vsub.s32 0, %v1417
    %v1419 = vrot.slane %v1390, %v1418
    %v1420 = vlaneseq
    %v1421 = vshrl.u32 %v1420, 7
    %v1422 = vsub.s32 0, %v1421
    %v1423 = vrot.slane %v1404, %v1422
    %v1424 = vlaneseq
    %v1425 = vshrl.u32 %v1424, 7
    %v1426 = vsub.s32 0, %v1425
    %v1427 = vrot.slane %v1412, %v1426
    %v1428 = vlaneseq
    %v1429 = vshrl.u32 %v1428, 7
    %v1430 = vsub.s32 0, %v1429
    %v1431 = vrot.slane %v1414, %v1430
    %v1432 = vlaneseq
    %v1433 = vshrl.u32 %v1432, 7
    %v1434 = vsub.s32 0, %v1433
    %v1435 = vrot.slane %v1397, %v1434
    %v1436 = vlaneseq
    %v1437 = vshrl.u32 %v1436, 7
    %v1438 = vsub.s32 0, %v1437
    %v1439 = vrot.slane %v1411, %v1438
    %v1440 = vlaneseq
    %v1441 = vshrl.u32 %v1440, 7
    %v1442 = vsub.s32 0, %v1441
    %v1443 = vrot.slane %v1413, %v1442
    %v1444 = vlaneseq
    %v1445 = vshrl.u32 %v1444, 7
    %v1446 = vsub.s32 0, %v1445
    %v1447 = vrot.slane %v1415, %v1446
    %v1456 = vadd.f32 %v1419, %v1319
    %v1457 = vadd.f32 %v1423, %v1325
    %v1458 = vadd.f32 %v1427, %v1331
    %v1459 = vadd.f32 %v1431, %v1337
    %v1460 = vadd.f32 %v1435, %v1343
    %v1461 = vadd.f32 %v1439, %v1349
    %v1462 = vadd.f32 %v1443, %v1355
    %v1463 = vadd.f32 %v1447, %v1361
    %v1464 = vtanh.pop %v1456
    %v1465 = vtanh.pop %v1457
    %v1466 = vtanh.pop %v1458
    %v1467 = vtanh.pop %v1459
    %v1468 = vtanh.pop %v1460
    %v1469 = vtanh.pop %v1461
    %v1470 = vtanh.pop %v1462
    %v1471 = vtanh.pop %v1463
    %v1473 = vlaneseq
    %v1474 = vshrl.u32 %v1473, 7
    %v1475 = vsub.s32 0, %v1474
    %v1476 = vrot.slane %v1364, %v1475
    %v1478 = vmul.f32 %v1464, %v1476
    %v1479 = vmul.f32 %v1465, %v1476
    %v1480 = vmul.f32 %v1466, %v1476
    %v1481 = vmul.f32 %v1467, %v1476
    %v1482 = vmul.f32 %v1468, %v1476
    %v1483 = vmul.f32 %v1469, %v1476
    %v1484 = vmul.f32 %v1470, %v1476
    %v1485 = vmul.f32 %v1471, %v1476
    %v1486 = vsel %vm46, %v1478, 0.0
    %1487 = vadd.xlane.f32.xlu0 %v1486
    %v1488 = vpop.xlane.xlu0 %1487
    %v1489 = vsel %vm46, %v1479, 0.0
    %1490 = vadd.xlane.f32.xlu0 %v1489
    %v1491 = vpop.xlane.xlu0 %1490
    %v1492 = vsel %vm46, %v1480, 0.0
    %1493 = vadd.xlane.f32.xlu0 %v1492
    %v1494 = vpop.xlane.xlu0 %1493
    %v1495 = vsel %vm46, %v1481, 0.0
    %1496 = vadd.xlane.f32.xlu0 %v1495
    %v1497 = vpop.xlane.xlu0 %1496
    %v1498 = vsel %vm46, %v1482, 0.0
    %1499 = vadd.xlane.f32.xlu0 %v1498
    %v1500 = vpop.xlane.xlu0 %1499
    %v1501 = vsel %vm46, %v1483, 0.0
    %1502 = vadd.xlane.f32.xlu0 %v1501
    %v1503 = vpop.xlane.xlu0 %1502
    %v1504 = vsel %vm46, %v1484, 0.0
    %1505 = vadd.xlane.f32.xlu0 %v1504
    %v1506 = vpop.xlane.xlu0 %1505
    %v1507 = vsel %vm46, %v1485, 0.0
    %1508 = vadd.xlane.f32.xlu0 %v1507
    %v1509 = vpop.xlane.xlu0 %1508
    %v1510 = vadd.f32 %v1488, 0.0
    %v1511 = vadd.f32 %v1491, 0.0
    %v1512 = vadd.f32 %v1494, 0.0
    %v1513 = vadd.f32 %v1497, 0.0
    %v1514 = vadd.f32 %v1500, 0.0
    %v1515 = vadd.f32 %v1503, 0.0
    %v1516 = vadd.f32 %v1506, 0.0
    %v1517 = vadd.f32 %v1509, 0.0
    %v1518 = vstv %s1365
    %v1519 = vadd.f32 %v1510, %v1518
    %v1520 = vadd.f32 %v1511, %v1518
    %v1521 = vadd.f32 %v1512, %v1518
    %v1522 = vadd.f32 %v1513, %v1518
    %v1523 = vadd.f32 %v1514, %v1518
    %v1524 = vadd.f32 %v1515, %v1518
    %v1525 = vadd.f32 %v1516, %v1518
    %v1526 = vadd.f32 %v1517, %v1518
    %v1535 = vlaneseq
    %v1536 = vand.u32 %v1535, 127
    %v1537 = vlaneseq
    %v1538 = vshrl.u32 %v1537, 7
    %v1539 = vsub.s32 %v1536, %v1538
    %v1540 = vrot.slane %v1519, %v1539
    %v1541 = vlaneseq
    %v1542 = vshrl.u32 %v1541, 7
    %v1543 = vsub.s32 %v1536, %v1542
    %v1544 = vrot.slane %v1520, %v1543
    %v1545 = vlaneseq
    %v1546 = vshrl.u32 %v1545, 7
    %v1547 = vsub.s32 %v1536, %v1546
    %v1548 = vrot.slane %v1521, %v1547
    %v1549 = vlaneseq
    %v1550 = vshrl.u32 %v1549, 7
    %v1551 = vsub.s32 %v1536, %v1550
    %v1552 = vrot.slane %v1522, %v1551
    %v1553 = vlaneseq
    %v1554 = vshrl.u32 %v1553, 7
    %v1555 = vsub.s32 %v1536, %v1554
    %v1556 = vrot.slane %v1523, %v1555
    %v1557 = vlaneseq
    %v1558 = vshrl.u32 %v1557, 7
    %v1559 = vsub.s32 %v1536, %v1558
    %v1560 = vrot.slane %v1524, %v1559
    %v1561 = vlaneseq
    %v1562 = vshrl.u32 %v1561, 7
    %v1563 = vsub.s32 %v1536, %v1562
    %v1564 = vrot.slane %v1525, %v1563
    %v1565 = vlaneseq
    %v1566 = vshrl.u32 %v1565, 7
    %v1567 = vsub.s32 %v1536, %v1566
    %v1568 = vrot.slane %v1526, %v1567
    %vm1569 = vcmask 1041409
    %v1570 = vsel %vm1569, %v1544, %v1540
    %vm1571 = vcmask 1042434
    %v1572 = vsel %vm1571, %v1548, %v1570
    %vm1573 = vcmask 1043459
    %v1574 = vsel %vm1573, %v1552, %v1572
    %vm1575 = vcmask 1044484
    %v1576 = vsel %vm1575, %v1556, %v1574
    %vm1577 = vcmask 1045509
    %v1578 = vsel %vm1577, %v1560, %v1576
    %vm1579 = vcmask 1046534
    %v1580 = vsel %vm1579, %v1564, %v1578
    %vm1581 = vcmask 1047559
    %v1582 = vsel %vm1581, %v1568, %v1580
    %vm1584 = vcmask 64512
    %v1585 = vsel %vm1584, %v1582, -inf
    %1586 = vmax.xlane.f32.xlu0 %v1585
    %v1587 = vpop.xlane.xlu0 %1586
    %v1589 = vlaneseq
    %v1590 = vshrl.u32 %v1589, 7
    %v1591 = vsub.s32 0, %v1590
    %v1592 = vrot.slane %v1587, %v1591
    %v1593 = vlaneseq
    %v1594 = vshrl.u32 %v1593, 7
    %v1595 = vsub.s32 1, %v1594
    %v1596 = vrot.slane %v1587, %v1595
    %v1597 = vlaneseq
    %v1598 = vshrl.u32 %v1597, 7
    %v1599 = vsub.s32 2, %v1598
    %v1600 = vrot.slane %v1587, %v1599
    %v1601 = vlaneseq
    %v1602 = vshrl.u32 %v1601, 7
    %v1603 = vsub.s32 3, %v1602
    %v1604 = vrot.slane %v1587, %v1603
    %v1605 = vlaneseq
    %v1606 = vshrl.u32 %v1605, 7
    %v1607 = vsub.s32 4, %v1606
    %v1608 = vrot.slane %v1587, %v1607
    %v1609 = vlaneseq
    %v1610 = vshrl.u32 %v1609, 7
    %v1611 = vsub.s32 5, %v1610
    %v1612 = vrot.slane %v1587, %v1611
    %v1613 = vlaneseq
    %v1614 = vshrl.u32 %v1613, 7
    %v1615 = vsub.s32 6, %v1614
    %v1616 = vrot.slane %v1587, %v1615
    %v1617 = vlaneseq
    %v1618 = vshrl.u32 %v1617, 7
    %v1619 = vsub.s32 7, %v1618
    %v1620 = vrot.slane %v1587, %v1619
    %v1629 = vsub.f32 %v1519, %v1592
    %v1630 = vsub.f32 %v1520, %v1596
    %v1631 = vsub.f32 %v1521, %v1600
    %v1632 = vsub.f32 %v1522, %v1604
    %v1633 = vsub.f32 %v1523, %v1608
    %v1634 = vsub.f32 %v1524, %v1612
    %v1635 = vsub.f32 %v1525, %v1616
    %v1636 = vsub.f32 %v1526, %v1620
    %v1637 = vmul.f32 %v1629, 1.442695
    %v1638 = vpow.pop %v1637
    %v1639 = vmul.f32 %v1630, 1.442695
    %v1640 = vpow.pop %v1639
    %v1641 = vmul.f32 %v1631, 1.442695
    %v1642 = vpow.pop %v1641
    %v1643 = vmul.f32 %v1632, 1.442695
    %v1644 = vpow.pop %v1643
    %v1645 = vmul.f32 %v1633, 1.442695
    %v1646 = vpow.pop %v1645
    %v1647 = vmul.f32 %v1634, 1.442695
    %v1648 = vpow.pop %v1647
    %v1649 = vmul.f32 %v1635, 1.442695
    %v1650 = vpow.pop %v1649
    %v1651 = vmul.f32 %v1636, 1.442695
    %v1652 = vpow.pop %v1651
    %1661 = vset.pattern.permute.xlu0 0
    %1662 = vperm.xlu0 %1661, %v1638
    %v1663 = vpop.permute.xlu0 %1662
    %1664 = vset.pattern.permute.xlu0 0
    %1665 = vperm.xlu0 %1664, %v1640
    %v1666 = vpop.permute.xlu0 %1665
    %1667 = vset.pattern.permute.xlu0 0
    %1668 = vperm.xlu0 %1667, %v1642
    %v1669 = vpop.permute.xlu0 %1668
    %1670 = vset.pattern.permute.xlu0 0
    %1671 = vperm.xlu0 %1670, %v1644
    %v1672 = vpop.permute.xlu0 %1671
    %1673 = vset.pattern.permute.xlu0 0
    %1674 = vperm.xlu0 %1673, %v1646
    %v1675 = vpop.permute.xlu0 %1674
    %1676 = vset.pattern.permute.xlu0 0
    %1677 = vperm.xlu0 %1676, %v1648
    %v1678 = vpop.permute.xlu0 %1677
    %1679 = vset.pattern.permute.xlu0 0
    %1680 = vperm.xlu0 %1679, %v1650
    %v1681 = vpop.permute.xlu0 %1680
    %1682 = vset.pattern.permute.xlu0 0
    %1683 = vperm.xlu0 %1682, %v1652
    %v1684 = vpop.permute.xlu0 %1683
    %v1685 = vlaneseq
    %v1686 = vshrl.u32 %v1685, 7
    %v1687 = vsub.s32 %v1536, %v1686
    %v1688 = vrot.slane %v1663, %v1687
    %v1689 = vlaneseq
    %v1690 = vshrl.u32 %v1689, 7
    %v1691 = vsub.s32 %v1536, %v1690
    %v1692 = vrot.slane %v1666, %v1691
    %v1693 = vlaneseq
    %v1694 = vshrl.u32 %v1693, 7
    %v1695 = vsub.s32 %v1536, %v1694
    %v1696 = vrot.slane %v1669, %v1695
    %v1697 = vlaneseq
    %v1698 = vshrl.u32 %v1697, 7
    %v1699 = vsub.s32 %v1536, %v1698
    %v1700 = vrot.slane %v1672, %v1699
    %v1701 = vlaneseq
    %v1702 = vshrl.u32 %v1701, 7
    %v1703 = vsub.s32 %v1536, %v1702
    %v1704 = vrot.slane %v1675, %v1703
    %v1705 = vlaneseq
    %v1706 = vshrl.u32 %v1705, 7
    %v1707 = vsub.s32 %v1536, %v1706
    %v1708 = vrot.slane %v1678, %v1707
    %v1709 = vlaneseq
    %v1710 = vshrl.u32 %v1709, 7
    %v1711 = vsub.s32 %v1536, %v1710
    %v1712 = vrot.slane %v1681, %v1711
    %v1713 = vlaneseq
    %v1714 = vshrl.u32 %v1713, 7
    %v1715 = vsub.s32 %v1536, %v1714
    %v1716 = vrot.slane %v1684, %v1715
    %v1717 = vsel %vm1569, %v1692, %v1688
    %v1718 = vsel %vm1571, %v1696, %v1717
    %v1719 = vsel %vm1573, %v1700, %v1718
    %v1720 = vsel %vm1575, %v1704, %v1719
    %v1721 = vsel %vm1577, %v1708, %v1720
    %v1722 = vsel %vm1579, %v1712, %v1721
    %v1723 = vsel %vm1581, %v1716, %v1722
    %v1725 = vsel %vm1584, %v1723, 0.0
    %1726 = vadd.xlane.f32.xlu0 %v1725
    %v1727 = vpop.xlane.xlu0 %1726
    %v1729 = vlaneseq
    %v1730 = vshrl.u32 %v1729, 7
    %v1731 = vsub.s32 0, %v1730
    %v1732 = vrot.slane %v1727, %v1731
    %v1733 = vlaneseq
    %v1734 = vshrl.u32 %v1733, 7
    %v1735 = vsub.s32 1, %v1734
    %v1736 = vrot.slane %v1727, %v1735
    %v1737 = vlaneseq
    %v1738 = vshrl.u32 %v1737, 7
    %v1739 = vsub.s32 2, %v1738
    %v1740 = vrot.slane %v1727, %v1739
    %v1741 = vlaneseq
    %v1742 = vshrl.u32 %v1741, 7
    %v1743 = vsub.s32 3, %v1742
    %v1744 = vrot.slane %v1727, %v1743
    %v1745 = vlaneseq
    %v1746 = vshrl.u32 %v1745, 7
    %v1747 = vsub.s32 4, %v1746
    %v1748 = vrot.slane %v1727, %v1747
    %v1749 = vlaneseq
    %v1750 = vshrl.u32 %v1749, 7
    %v1751 = vsub.s32 5, %v1750
    %v1752 = vrot.slane %v1727, %v1751
    %v1753 = vlaneseq
    %v1754 = vshrl.u32 %v1753, 7
    %v1755 = vsub.s32 6, %v1754
    %v1756 = vrot.slane %v1727, %v1755
    %v1757 = vlaneseq
    %v1758 = vshrl.u32 %v1757, 7
    %v1759 = vsub.s32 7, %v1758
    %v1760 = vrot.slane %v1727, %v1759
    %v1769 = vrcp.pop %v1732
    %v1770 = vmul.f32 %v1638, %v1769
    %v1771 = vrcp.pop %v1736
    %v1772 = vmul.f32 %v1640, %v1771
    %v1773 = vrcp.pop %v1740
    %v1774 = vmul.f32 %v1642, %v1773
    %v1775 = vrcp.pop %v1744
    %v1776 = vmul.f32 %v1644, %v1775
    %v1777 = vrcp.pop %v1748
    %v1778 = vmul.f32 %v1646, %v1777
    %v1779 = vrcp.pop %v1752
    %v1780 = vmul.f32 %v1648, %v1779
    %v1781 = vrcp.pop %v1756
    %v1782 = vmul.f32 %v1650, %v1781
    %v1783 = vrcp.pop %v1760
    %v1784 = vmul.f32 %v1652, %v1783
    %1793 = vset.pattern.permute.xlu0 0
    %1794 = vperm.xlu0 %1793, %v1770
    %v1795 = vpop.permute.xlu0 %1794
    %1796 = vset.pattern.permute.xlu0 0
    %1797 = vperm.xlu0 %1796, %v1772
    %v1798 = vpop.permute.xlu0 %1797
    %1799 = vset.pattern.permute.xlu0 0
    %1800 = vperm.xlu0 %1799, %v1774
    %v1801 = vpop.permute.xlu0 %1800
    %1802 = vset.pattern.permute.xlu0 0
    %1803 = vperm.xlu0 %1802, %v1776
    %v1804 = vpop.permute.xlu0 %1803
    %1805 = vset.pattern.permute.xlu0 0
    %1806 = vperm.xlu0 %1805, %v1778
    %v1807 = vpop.permute.xlu0 %1806
    %1808 = vset.pattern.permute.xlu0 0
    %1809 = vperm.xlu0 %1808, %v1780
    %v1810 = vpop.permute.xlu0 %1809
    %1811 = vset.pattern.permute.xlu0 0
    %1812 = vperm.xlu0 %1811, %v1782
    %v1813 = vpop.permute.xlu0 %1812
    %1814 = vset.pattern.permute.xlu0 0
    %1815 = vperm.xlu0 %1814, %v1784
    %v1816 = vpop.permute.xlu0 %1815
    %v1817 = vlaneseq
    %v1818 = vshrl.u32 %v1817, 7
    %v1819 = vsub.s32 %v1536, %v1818
    %v1820 = vrot.slane %v1795, %v1819
    %v1821 = vlaneseq
    %v1822 = vshrl.u32 %v1821, 7
    %v1823 = vsub.s32 %v1536, %v1822
    %v1824 = vrot.slane %v1798, %v1823
    %v1825 = vlaneseq
    %v1826 = vshrl.u32 %v1825, 7
    %v1827 = vsub.s32 %v1536, %v1826
    %v1828 = vrot.slane %v1801, %v1827
    %v1829 = vlaneseq
    %v1830 = vshrl.u32 %v1829, 7
    %v1831 = vsub.s32 %v1536, %v1830
    %v1832 = vrot.slane %v1804, %v1831
    %v1833 = vlaneseq
    %v1834 = vshrl.u32 %v1833, 7
    %v1835 = vsub.s32 %v1536, %v1834
    %v1836 = vrot.slane %v1807, %v1835
    %v1837 = vlaneseq
    %v1838 = vshrl.u32 %v1837, 7
    %v1839 = vsub.s32 %v1536, %v1838
    %v1840 = vrot.slane %v1810, %v1839
    %v1841 = vlaneseq
    %v1842 = vshrl.u32 %v1841, 7
    %v1843 = vsub.s32 %v1536, %v1842
    %v1844 = vrot.slane %v1813, %v1843
    %v1845 = vlaneseq
    %v1846 = vshrl.u32 %v1845, 7
    %v1847 = vsub.s32 %v1536, %v1846
    %v1848 = vrot.slane %v1816, %v1847
    %v1849 = vsel %vm1569, %v1824, %v1820
    %v1850 = vsel %vm1571, %v1828, %v1849
    %v1851 = vsel %vm1573, %v1832, %v1850
    %v1852 = vsel %vm1575, %v1836, %v1851
    %v1853 = vsel %vm1577, %v1840, %v1852
    %v1854 = vsel %vm1579, %v1844, %v1853
    %v1855 = vsel %vm1581, %v1848, %v1854
    %1857 = vst.msk [vmem:[#allocation5] sm:$0xff] %vm1584, %v1855
    %v1866 = vmul.f32 %v1795, %v1319
    %v1867 = vmul.f32 %v1798, %v1325
    %v1868 = vmul.f32 %v1801, %v1331
    %v1869 = vmul.f32 %v1804, %v1337
    %v1870 = vmul.f32 %v1807, %v1343
    %v1871 = vmul.f32 %v1810, %v1349
    %v1872 = vmul.f32 %v1813, %v1355
    %v1873 = vmul.f32 %v1816, %v1361
    %v1874 = vsel %vm46, %v1866, 0.0
    %v1875 = vrot.slane %v1874, 4
    %v1876 = vadd.f32 %v1874, %v1875
    %v1877 = vrot.slane %v1876, 2
    %v1878 = vadd.f32 %v1876, %v1877
    %v1879 = vrot.slane %v1878, 1
    %v1880 = vadd.f32 %v1878, %v1879
    %v1881 = vsel %vm46, %v1867, 0.0
    %v1882 = vrot.slane %v1881, 4
    %v1883 = vadd.f32 %v1881, %v1882
    %v1884 = vrot.slane %v1883, 2
    %v1885 = vadd.f32 %v1883, %v1884
    %v1886 = vrot.slane %v1885, 1
    %v1887 = vadd.f32 %v1885, %v1886
    %v1888 = vsel %vm46, %v1868, 0.0
    %v1889 = vrot.slane %v1888, 4
    %v1890 = vadd.f32 %v1888, %v1889
    %v1891 = vrot.slane %v1890, 2
    %v1892 = vadd.f32 %v1890, %v1891
    %v1893 = vrot.slane %v1892, 1
    %v1894 = vadd.f32 %v1892, %v1893
    %v1895 = vsel %vm46, %v1869, 0.0
    %v1896 = vrot.slane %v1895, 4
    %v1897 = vadd.f32 %v1895, %v1896
    %v1898 = vrot.slane %v1897, 2
    %v1899 = vadd.f32 %v1897, %v1898
    %v1900 = vrot.slane %v1899, 1
    %v1901 = vadd.f32 %v1899, %v1900
    %v1902 = vsel %vm46, %v1870, 0.0
    %v1903 = vrot.slane %v1902, 4
    %v1904 = vadd.f32 %v1902, %v1903
    %v1905 = vrot.slane %v1904, 2
    %v1906 = vadd.f32 %v1904, %v1905
    %v1907 = vrot.slane %v1906, 1
    %v1908 = vadd.f32 %v1906, %v1907
    %v1909 = vsel %vm46, %v1871, 0.0
    %v1910 = vrot.slane %v1909, 4
    %v1911 = vadd.f32 %v1909, %v1910
    %v1912 = vrot.slane %v1911, 2
    %v1913 = vadd.f32 %v1911, %v1912
    %v1914 = vrot.slane %v1913, 1
    %v1915 = vadd.f32 %v1913, %v1914
    %v1916 = vsel %vm46, %v1872, 0.0
    %v1917 = vrot.slane %v1916, 4
    %v1918 = vadd.f32 %v1916, %v1917
    %v1919 = vrot.slane %v1918, 2
    %v1920 = vadd.f32 %v1918, %v1919
    %v1921 = vrot.slane %v1920, 1
    %v1922 = vadd.f32 %v1920, %v1921
    %v1923 = vsel %vm46, %v1873, 0.0
    %v1924 = vrot.slane %v1923, 4
    %v1925 = vadd.f32 %v1923, %v1924
    %v1926 = vrot.slane %v1925, 2
    %v1927 = vadd.f32 %v1925, %v1926
    %v1928 = vrot.slane %v1927, 1
    %v1929 = vadd.f32 %v1927, %v1928
    %v1938 = vsel %vm1569, %v1887, %v1880
    %v1939 = vsel %vm1571, %v1894, %v1938
    %v1940 = vsel %vm1573, %v1901, %v1939
    %v1941 = vsel %vm1575, %v1908, %v1940
    %v1942 = vsel %vm1577, %v1915, %v1941
    %v1943 = vsel %vm1579, %v1922, %v1942
    %v1944 = vsel %vm1581, %v1929, %v1943
    %1946 = vst.msk [vmem:[#allocation3] sm:$0xff] %vm46, %v1944
    // Predicated region
    $region34: #{tpu_custom_call.1} parent=1 // pred_check
      _
    $region35: #{tpu_custom_call.1} parent=1 // pred_check_branch
      %1948 = sbr.rel (0) target = $region37
    $region36: #{tpu_custom_call.1} parent=1 // pred_region
      %s1950 = ssub.s32 128, 128
      %1951 = vsyncadd [#allocation4], %s1950
      %s1953 = sshll.u32 [#allocation3], 4
      %s1954 = int_to_ptr.vmem [resolvable:$true] %s1953
      %1956 = dma.vmem_to_hbm [thread:$0]  %s1954, 128, %s8, [#allocation4]
    $region37: #{tpu_custom_call.1} parent=1 // pred_fallthru
      _
    // Predicated region
    $region38: #{tpu_custom_call.1} parent=1 // pred_check
      _
    $region39: #{tpu_custom_call.1} parent=1 // pred_check_branch
      %1958 = sbr.rel (0) target = $region41
    $region40: #{tpu_custom_call.1} parent=1 // pred_region
      %s1960 = ssub.s32 128, 128
      %1961 = vsyncadd [#allocation6], %s1960
      %s1963 = sshll.u32 [#allocation5], 4
      %s1964 = int_to_ptr.vmem [resolvable:$true] %s1963
      %1966 = dma.vmem_to_hbm [thread:$0]  %s1964, 128, %s9, [#allocation6]
    $region41: #{tpu_custom_call.1} parent=1 // pred_fallthru
      _
    // Predicated region
    $region42: #{tpu_custom_call.1} parent=1 // pred_check
      _
    $region43: #{tpu_custom_call.1} parent=1 // pred_check_branch
      %1968 = sbr.rel (0) target = $region45
    $region44: #{tpu_custom_call.1} parent=1 // pred_region
      %1969 = dma.done [#allocation4], 128
    $region45: #{tpu_custom_call.1} parent=1 // pred_fallthru
      _
    // Predicated region
    $region46: #{tpu_custom_call.1} parent=1 // pred_check
      _
    $region47: #{tpu_custom_call.1} parent=1 // pred_check_branch
      %1971 = sbr.rel (0) target = $region49
    $region48: #{tpu_custom_call.1} parent=1 // pred_region
      %1972 = dma.done [#allocation6], 128
    $region49: #{tpu_custom_call.1} parent=1 // pred_fallthru
      _
    %1973 = vsyncpa [#allocation4], 1
    %1974 = vsyncpa [#allocation6], 1

// kernel: tpu_custom_call.1
$region0: #{tpu_custom_call.1}
  #allocation0 [shape = 'u32[]', space=smem, size = 0x4, offset = 0x4, fixed_abs, tag = 'smem constant byte address 0x4 - core index']
  #allocation1 [shape = 'u32[144,128]{1,0:T(1,128)}', space=vmem, size = 0x12000, scoped, tag = 'internal scratch']
  #allocation2 [shape = 'f32[1,1]{1,0:T(1,128)S(6)}', space=smem, size = 0x200, scoped, tag = 'scoped memory for tpu_custom_call.1']
  %s0 = inlined_call_operand.vmem [shape: f32[8,32], index: 0, kind: input, shape index: {}]
  %s1 = inlined_call_operand.vmem [shape: f32[64,32], index: 1, kind: input, shape index: {}]
  %s2 = inlined_call_operand.vmem [shape: f32[32,32], index: 2, kind: input, shape index: {}]
  %s3 = inlined_call_operand.vmem [shape: f32[1,32], index: 3, kind: input, shape index: {}]
  %s4 = inlined_call_operand.vmem [shape: f32[32,32], index: 4, kind: input, shape index: {}]
  %s5 = inlined_call_operand.vmem [shape: f32[1,32], index: 5, kind: input, shape index: {}]
  %s6 = inlined_call_operand.vmem [shape: f32[1,32], index: 6, kind: input, shape index: {}]
  %s7 = inlined_call_operand.<no memory space> [shape: f32[1,1], index: 7, kind: input, shape index: {}]
  %s8 = inlined_call_operand.hbm [shape: f32[8,32], index: 8, kind: output, shape index: {0}]
  %s9 = inlined_call_operand.hbm [shape: f32[8,8], index: 9, kind: output, shape index: {1}]
  %10 = xla_tuple %s8, %s9
  %s11 = sld [smem:[#allocation0]]
  $region50: #{tpu_custom_call.1} parent=0
    _
  %s13 = ssub.s32 1, %s11
  %s14 = scalar_select 0, %s13, %s11
  %15 = sst [smem:[#allocation2]] %s7
  $region1: #{tpu_custom_call.1} parent=0
    #allocation3 [shape = 'u8[4096]{0}', space=vmem, size = 0x1000, scoped, tag = 'output window, operand 0, single buffered']
    #allocation4 [shape = 's32[1]{0}', space=sflag, size = 0x4, scoped, tag = 'scoped memory for tpu_custom_call.1']
    #allocation5 [shape = 'u8[4096]{0}', space=vmem, size = 0x1000, scoped, tag = 'output window, operand 1, single buffered']
    #allocation6 [shape = 's32[1]{0}', space=sflag, size = 0x4, scoped, tag = 'scoped memory for tpu_custom_call.1']
    %16 = vsyncpa [#allocation4], 0
    %17 = vsyncpa [#allocation6], 0
    // Predicated region
    $region2: #{tpu_custom_call.1} parent=1 // pred_check
      _
    $region3: #{tpu_custom_call.1} parent=1 // pred_check_branch
      %19 = sbr.rel (0) target = $region5
    $region4: #{tpu_custom_call.1} parent=1 // pred_region
      _
    $region5: #{tpu_custom_call.1} parent=1 // pred_fallthru
      _
    // Predicated region
    $region6: #{tpu_custom_call.1} parent=1 // pred_check
      _
    $region7: #{tpu_custom_call.1} parent=1 // pred_check_branch
      %21 = sbr.rel (0) target = $region9
    $region8: #{tpu_custom_call.1} parent=1 // pred_region
      _
    $region9: #{tpu_custom_call.1} parent=1 // pred_fallthru
      _
    // Predicated region
    $region10: #{tpu_custom_call.1} parent=1 // pred_check
      _
    $region11: #{tpu_custom_call.1} parent=1 // pred_check_branch
      %23 = sbr.rel (0) target = $region13
    $region12: #{tpu_custom_call.1} parent=1 // pred_region
      _
    $region13: #{tpu_custom_call.1} parent=1 // pred_fallthru
      _
    // Predicated region
    $region14: #{tpu_custom_call.1} parent=1 // pred_check
      _
    $region15: #{tpu_custom_call.1} parent=1 // pred_check_branch
      %25 = sbr.rel (0) target = $region17
    $region16: #{tpu_custom_call.1} parent=1 // pred_region
      _
    $region17: #{tpu_custom_call.1} parent=1 // pred_fallthru
      _
    // Predicated region
    $region18: #{tpu_custom_call.1} parent=1 // pred_check
      _
    $region19: #{tpu_custom_call.1} parent=1 // pred_check_branch
      %27 = sbr.rel (0) target = $region21
    $region20: #{tpu_custom_call.1} parent=1 // pred_region
      _
    $region21: #{tpu_custom_call.1} parent=1 // pred_fallthru
      _
    // Predicated region
    $region22: #{tpu_custom_call.1} parent=1 // pred_check
      _
    $region23: #{tpu_custom_call.1} parent=1 // pred_check_branch
      %29 = sbr.rel (0) target = $region25
    $region24: #{tpu_custom_call.1} parent=1 // pred_region
      _
    $region25: #{tpu_custom_call.1} parent=1 // pred_fallthru
      _
    // Predicated region
    $region26: #{tpu_custom_call.1} parent=1 // pred_check
      _
    $region27: #{tpu_custom_call.1} parent=1 // pred_check_branch
      %31 = sbr.rel (0) target = $region29
    $region28: #{tpu_custom_call.1} parent=1 // pred_region
      _
    $region29: #{tpu_custom_call.1} parent=1 // pred_fallthru
      _
    // Predicated region
    $region30: #{tpu_custom_call.1} parent=1 // pred_check
      _
    $region31: #{tpu_custom_call.1} parent=1 // pred_check_branch
      %33 = sbr.rel (0) target = $region33
    $region32: #{tpu_custom_call.1} parent=1 // pred_region
      _
    $region33: #{tpu_custom_call.1} parent=1 // pred_fallthru
      _
    %v34 = vld [vmem:[%s0] sm:$0xff]
    %v35 = vld [vmem:[%s2] sm:$0xff]
    %v36 = vld [vmem:[%s2 + $0x8] sm:$0xff]
    %v37 = vld [vmem:[%s2 + $0x10] sm:$0xff]
    %v38 = vld [vmem:[%s2 + $0x18] sm:$0xff]
    %v39 = vld [vmem:[%s3] sm:$0x1]
    %v41 = vlaneseq
    %v42 = vshrl.u32 %v41, 7
    %v43 = vsub.s32 0, %v42
    %v44 = vrot.slane %v39, %v43
    %vm46 = vcmask 261120
    %v48 = vsel %vm46, %v34, 0
    %50 = vmatprep.subr.mxu0 0.0
    %v51 = vand.u32 %v35, 4294901760
    %52 = vmatpush1.msra.mxu0 %v51
    %53 = vmatprep.subr.mxu0 0.0
    %v54 = vand.u32 %v36, 4294901760
    %55 = vmatpush1.msra.mxu0 %v54
    %56 = vmatprep.subr.mxu0 0.0
    %v57 = vand.u32 %v37, 4294901760
    %58 = vmatpush1.msra.mxu0 %v57
    %59 = vmatprep.subr.mxu0 0.0
    %v60 = vand.u32 %v38, 4294901760
    %61 = vmatpush1.msra.mxu0 %v60
    %62 = vmatprep.subr.mxu0 0.0
    %63 = vmatpush1.msra.mxu0 0.0
    %64 = vmatprep.subr.mxu0 0.0
    %65 = vmatpush1.msra.mxu0 0.0
    %66 = vmatprep.subr.mxu0 0.0
    %67 = vmatpush1.msra.mxu0 0.0
    %68 = vmatprep.subr.mxu0 0.0
    %69 = vmatpush1.msra.mxu0 0.0
    %70 = vmatprep.subr.mxu0 0.0
    %71 = vmatpush1.msra.mxu0 0.0
    %72 = vmatprep.subr.mxu0 0.0
    %73 = vmatpush1.msra.mxu0 0.0
    %74 = vmatprep.subr.mxu0 0.0
    %75 = vmatpush1.msra.mxu0 0.0
    %76 = vmatprep.subr.mxu0 0.0
    %77 = vmatpush1.msra.mxu0 0.0
    %78 = vmatprep.subr.mxu0 0.0
    %79 = vmatpush1.msra.mxu0 0.0
    %80 = vmatprep.subr.mxu0 0.0
    %81 = vmatpush1.msra.mxu0 0.0
    %82 = vmatprep.subr.mxu0 0.0
    %83 = vmatpush1.msra.mxu0 0.0
    %84 = vmatprep.subr.mxu0 0.0
    %85 = vmatpush1.msra.mxu0 0.0
    %86 = vmatprep.subr.mxu0 0.0
    %87 = vmatpush1.msra.mxu0 0.0
    %88 = vmatprep.subr.mxu0 0.0
    %89 = vmatpush1.msra.mxu0 0.0
    %90 = vmatprep.subr.mxu0 0.0
    %91 = vmatpush1.msra.mxu0 0.0
    %92 = vmatprep.subr.mxu0 0.0
    %93 = vmatpush1.msra.mxu0 0.0
    %94 = vmatprep.subr.mxu0 0.0
    %95 = vmatpush1.msra.mxu0 0.0
    %96 = vmatprep.subr.mxu0 0.0
    %97 = vmatpush1.msra.mxu0 0.0
    %98 = vmatprep.subr.mxu0 0.0
    %99 = vmatpush1.msra.mxu0 0.0
    %100 = vmatprep.subr.mxu0 0.0
    %101 = vmatpush1.msra.mxu0 0.0
    %102 = vmatprep.subr.mxu0 0.0
    %103 = vmatpush1.msra.mxu0 0.0
    %104 = vmatprep.subr.mxu0 0.0
    %105 = vmatpush1.msra.mxu0 0.0
    %106 = vmatprep.subr.mxu0 0.0
    %107 = vmatpush1.msra.mxu0 0.0
    %108 = vmatprep.subr.mxu0 0.0
    %109 = vmatpush1.msra.mxu0 0.0
    %110 = vmatprep.subr.mxu0 0.0
    %111 = vmatpush1.msra.mxu0 0.0
    %112 = vmatprep.subr.mxu0 0.0
    %113 = vmatpush1.msra.mxu0 0.0
    %114 = vmatprep.subr.mxu0 0.0
    %115 = vmatpush1.msra.mxu0 0.0
    %116 = vmatprep.subr.mxu0 0.0
    %117 = vmatpush1.msra.mxu0 0.0
    %118 = vmatprep.mubr.f32.mxu0 0.0
    %v119 = vand.u32 %v48, 4294901760
    %v120 = vsub.f32 %v48, %v119
    %v121 = vand.u32 %v120, 4294901760
    %v122 = vsub.f32 %v120, %v121
    %v123 = vand.u32 %v122, 4294901760
    %124 = vmatmul.mubr.f32.gmra.mrb[0].mxu0 %v123
    %v125 = vpop.f32.mrb[0].mxu0
    %v126 = vadd.f32 %v44, %v125
    %v127 = vpop.f32.mrb[0].mxu0
    %128 = vdwg.mxu0
    %129 = vmatprep.subr.mxu0 0.0
    %v130 = vand.u32 %v35, 4294901760
    %v131 = vsub.f32 %v35, %v130
    %v132 = vand.u32 %v131, 4294901760
    %v133 = vsub.f32 %v131, %v132
    %v134 = vand.u32 %v133, 4294901760
    %135 = vmatpush1.msra.mxu0 %v134
    %136 = vmatprep.subr.mxu0 0.0
    %v137 = vand.u32 %v36, 4294901760
    %v138 = vsub.f32 %v36, %v137
    %v139 = vand.u32 %v138, 4294901760
    %v140 = vsub.f32 %v138, %v139
    %v141 = vand.u32 %v140, 4294901760
    %142 = vmatpush1.msra.mxu0 %v141
    %143 = vmatprep.subr.mxu0 0.0
    %v144 = vand.u32 %v37, 4294901760
    %v145 = vsub.f32 %v37, %v144
    %v146 = vand.u32 %v145, 4294901760
    %v147 = vsub.f32 %v145, %v146
    %v148 = vand.u32 %v147, 4294901760
    %149 = vmatpush1.msra.mxu0 %v148
    %150 = vmatprep.subr.mxu0 0.0
    %v151 = vand.u32 %v38, 4294901760
    %v152 = vsub.f32 %v38, %v151
    %v153 = vand.u32 %v152, 4294901760
    %v154 = vsub.f32 %v152, %v153
    %v155 = vand.u32 %v154, 4294901760
    %156 = vmatpush1.msra.mxu0 %v155
    %157 = vmatprep.subr.mxu0 0.0
    %158 = vmatpush1.msra.mxu0 0.0
    %159 = vmatprep.subr.mxu0 0.0
    %160 = vmatpush1.msra.mxu0 0.0
    %161 = vmatprep.subr.mxu0 0.0
    %162 = vmatpush1.msra.mxu0 0.0
    %163 = vmatprep.subr.mxu0 0.0
    %164 = vmatpush1.msra.mxu0 0.0
    %165 = vmatprep.subr.mxu0 0.0
    %166 = vmatpush1.msra.mxu0 0.0
    %167 = vmatprep.subr.mxu0 0.0
    %168 = vmatpush1.msra.mxu0 0.0
    %169 = vmatprep.subr.mxu0 0.0
    %170 = vmatpush1.msra.mxu0 0.0
    %171 = vmatprep.subr.mxu0 0.0
    %172 = vmatpush1.msra.mxu0 0.0
    %173 = vmatprep.subr.mxu0 0.0
    %174 = vmatpush1.msra.mxu0 0.0
    %175 = vmatprep.subr.mxu0 0.0
    %176 = vmatpush1.msra.mxu0 0.0
    %177 = vmatprep.subr.mxu0 0.0
    %178 = vmatpush1.msra.mxu0 0.0
    %179 = vmatprep.subr.mxu0 0.0
    %180 = vmatpush1.msra.mxu0 0.0
    %181 = vmatprep.subr.mxu0 0.0
    %182 = vmatpush1.msra.mxu0 0.0
    %183 = vmatprep.subr.mxu0 0.0
    %184 = vmatpush1.msra.mxu0 0.0
    %185 = vmatprep.subr.mxu0 0.0
    %186 = vmatpush1.msra.mxu0 0.0
    %187 = vmatprep.subr.mxu0 0.0
    %188 = vmatpush1.msra.mxu0 0.0
    %189 = vmatprep.subr.mxu0 0.0
    %190 = vmatpush1.msra.mxu0 0.0
    %191 = vmatprep.subr.mxu0 0.0
    %192 = vmatpush1.msra.mxu0 0.0
    %193 = vmatprep.subr.mxu0 0.0
    %194 = vmatpush1.msra.mxu0 0.0
    %195 = vmatprep.subr.mxu0 0.0
    %196 = vmatpush1.msra.mxu0 0.0
    %197 = vmatprep.subr.mxu0 0.0
    %198 = vmatpush1.msra.mxu0 0.0
    %199 = vmatprep.subr.mxu0 0.0
    %200 = vmatpush1.msra.mxu0 0.0
    %201 = vmatprep.subr.mxu0 0.0
    %202 = vmatpush1.msra.mxu0 0.0
    %203 = vmatprep.subr.mxu0 0.0
    %204 = vmatpush1.msra.mxu0 0.0
    %205 = vmatprep.subr.mxu0 0.0
    %206 = vmatpush1.msra.mxu0 0.0
    %207 = vmatprep.subr.mxu0 0.0
    %208 = vmatpush1.msra.mxu0 0.0
    %209 = vmatprep.subr.mxu0 0.0
    %210 = vmatpush1.msra.mxu0 0.0
    %211 = vmatprep.subr.mxu0 0.0
    %212 = vmatpush1.msra.mxu0 0.0
    %213 = vmatprep.mubr.f32.mxu0 0.0
    %v214 = vand.u32 %v48, 4294901760
    %215 = vmatmul.mubr.f32.gmra.mrb[0].mxu0 %v214
    %v216 = vpop.f32.mrb[0].mxu0
    %v217 = vadd.f32 %v126, %v216
    %v218 = vpop.f32.mrb[0].mxu0
    %219 = vdwg.mxu0
    %220 = vmatprep.subr.mxu0 0.0
    %v221 = vand.u32 %v35, 4294901760
    %v222 = vsub.f32 %v35, %v221
    %223 = vmatpush1.msra.mxu0 %v222
    %224 = vmatprep.subr.mxu0 0.0
    %v225 = vand.u32 %v36, 4294901760
    %v226 = vsub.f32 %v36, %v225
    %227 = vmatpush1.msra.mxu0 %v226
    %228 = vmatprep.subr.mxu0 0.0
    %v229 = vand.u32 %v37, 4294901760
    %v230 = vsub.f32 %v37, %v229
    %231 = vmatpush1.msra.mxu0 %v230
    %232 = vmatprep.subr.mxu0 0.0
    %v233 = vand.u32 %v38, 4294901760
    %v234 = vsub.f32 %v38, %v233
    %235 = vmatpush1.msra.mxu0 %v234
    %236 = vmatprep.subr.mxu0 0.0
    %237 = vmatpush1.msra.mxu0 0.0
    %238 = vmatprep.subr.mxu0 0.0
    %239 = vmatpush1.msra.mxu0 0.0
    %240 = vmatprep.subr.mxu0 0.0
    %241 = vmatpush1.msra.mxu0 0.0
    %242 = vmatprep.subr.mxu0 0.0
    %243 = vmatpush1.msra.mxu0 0.0
    %244 = vmatprep.subr.mxu0 0.0
    %245 = vmatpush1.msra.mxu0 0.0
    %246 = vmatprep.subr.mxu0 0.0
    %247 = vmatpush1.msra.mxu0 0.0
    %248 = vmatprep.subr.mxu0 0.0
    %249 = vmatpush1.msra.mxu0 0.0
    %250 = vmatprep.subr.mxu0 0.0
    %251 = vmatpush1.msra.mxu0 0.0
    %252 = vmatprep.subr.mxu0 0.0
    %253 = vmatpush1.msra.mxu0 0.0
    %254 = vmatprep.subr.mxu0 0.0
    %255 = vmatpush1.msra.mxu0 0.0
    %256 = vmatprep.subr.mxu0 0.0
    %257 = vmatpush1.msra.mxu0 0.0
    %258 = vmatprep.subr.mxu0 0.0
    %259 = vmatpush1.msra.mxu0 0.0
    %260 = vmatprep.subr.mxu0 0.0
    %261 = vmatpush1.msra.mxu0 0.0
    %262 = vmatprep.subr.mxu0 0.0
    %263 = vmatpush1.msra.mxu0 0.0
    %264 = vmatprep.subr.mxu0 0.0
    %265 = vmatpush1.msra.mxu0 0.0
    %266 = vmatprep.subr.mxu0 0.0
    %267 = vmatpush1.msra.mxu0 0.0
    %268 = vmatprep.subr.mxu0 0.0
    %269 = vmatpush1.msra.mxu0 0.0
    %270 = vmatprep.subr.mxu0 0.0
    %271 = vmatpush1.msra.mxu0 0.0
    %272 = vmatprep.subr.mxu0 0.0
    %273 = vmatpush1.msra.mxu0 0.0
    %274 = vmatprep.subr.mxu0 0.0
    %275 = vmatpush1.msra.mxu0 0.0
    %276 = vmatprep.subr.mxu0 0.0
    %277 = vmatpush1.msra.mxu0 0.0
    %278 = vmatprep.subr.mxu0 0.0
    %279 = vmatpush1.msra.mxu0 0.0
    %280 = vmatprep.subr.mxu0 0.0
    %281 = vmatpush1.msra.mxu0 0.0
    %282 = vmatprep.subr.mxu0 0.0
    %283 = vmatpush1.msra.mxu0 0.0
    %284 = vmatprep.subr.mxu0 0.0
    %285 = vmatpush1.msra.mxu0 0.0
    %286 = vmatprep.subr.mxu0 0.0
    %287 = vmatpush1.msra.mxu0 0.0
    %288 = vmatprep.subr.mxu0 0.0
    %289 = vmatpush1.msra.mxu0 0.0
    %290 = vmatprep.subr.mxu0 0.0
    %291 = vmatpush1.msra.mxu0 0.0
    %292 = vmatprep.mubr.f32.mxu0 0.0
    %v293 = vand.u32 %v48, 4294901760
    %v294 = vsub.f32 %v48, %v293
    %295 = vmatmul.mubr.f32.gmra.mrb[0].mxu0 %v294
    %v296 = vpop.f32.mrb[0].mxu0
    %v297 = vadd.f32 %v217, %v296
    %v298 = vpop.f32.mrb[0].mxu0
    %299 = vdwg.mxu0
    %300 = vmatprep.subr.mxu0 0.0
    %v301 = vand.u32 %v35, 4294901760
    %302 = vmatpush1.msra.mxu0 %v301
    %303 = vmatprep.subr.mxu0 0.0
    %v304 = vand.u32 %v36, 4294901760
    %305 = vmatpush1.msra.mxu0 %v304
    %306 = vmatprep.subr.mxu0 0.0
    %v307 = vand.u32 %v37, 4294901760
    %308 = vmatpush1.msra.mxu0 %v307
    %309 = vmatprep.subr.mxu0 0.0
    %v310 = vand.u32 %v38, 4294901760
    %311 = vmatpush1.msra.mxu0 %v310
    %312 = vmatprep.subr.mxu0 0.0
    %313 = vmatpush1.msra.mxu0 0.0
    %314 = vmatprep.subr.mxu0 0.0
    %315 = vmatpush1.msra.mxu0 0.0
    %316 = vmatprep.subr.mxu0 0.0
    %317 = vmatpush1.msra.mxu0 0.0
    %318 = vmatprep.subr.mxu0 0.0
    %319 = vmatpush1.msra.mxu0 0.0
    %320 = vmatprep.subr.mxu0 0.0
    %321 = vmatpush1.msra.mxu0 0.0
    %322 = vmatprep.subr.mxu0 0.0
    %323 = vmatpush1.msra.mxu0 0.0
    %324 = vmatprep.subr.mxu0 0.0
    %325 = vmatpush1.msra.mxu0 0.0
    %326 = vmatprep.subr.mxu0 0.0
    %327 = vmatpush1.msra.mxu0 0.0
    %328 = vmatprep.subr.mxu0 0.0
    %329 = vmatpush1.msra.mxu0 0.0
    %330 = vmatprep.subr.mxu0 0.0
    %331 = vmatpush1.msra.mxu0 0.0
    %332 = vmatprep.subr.mxu0 0.0
    %333 = vmatpush1.msra.mxu0 0.0
    %334 = vmatprep.subr.mxu0 0.0
    %335 = vmatpush1.msra.mxu0 0.0
    %336 = vmatprep.subr.mxu0 0.0
    %337 = vmatpush1.msra.mxu0 0.0
    %338 = vmatprep.subr.mxu0 0.0
    %339 = vmatpush1.msra.mxu0 0.0
    %340 = vmatprep.subr.mxu0 0.0
    %341 = vmatpush1.msra.mxu0 0.0
    %342 = vmatprep.subr.mxu0 0.0
    %343 = vmatpush1.msra.mxu0 0.0
    %344 = vmatprep.subr.mxu0 0.0
    %345 = vmatpush1.msra.mxu0 0.0
    %346 = vmatprep.subr.mxu0 0.0
    %347 = vmatpush1.msra.mxu0 0.0
    %348 = vmatprep.subr.mxu0 0.0
    %349 = vmatpush1.msra.mxu0 0.0
    %350 = vmatprep.subr.mxu0 0.0
    %351 = vmatpush1.msra.mxu0 0.0
    %352 = vmatprep.subr.mxu0 0.0
    %353 = vmatpush1.msra.mxu0 0.0
    %354 = vmatprep.subr.mxu0 0.0
    %355 = vmatpush1.msra.mxu0 0.0
    %356 = vmatprep.subr.mxu0 0.0
    %357 = vmatpush1.msra.mxu0 0.0
    %358 = vmatprep.subr.mxu0 0.0
    %359 = vmatpush1.msra.mxu0 0.0
    %360 = vmatprep.subr.mxu0 0.0
    %361 = vmatpush1.msra.mxu0 0.0
    %362 = vmatprep.subr.mxu0 0.0
    %363 = vmatpush1.msra.mxu0 0.0
    %364 = vmatprep.subr.mxu0 0.0
    %365 = vmatpush1.msra.mxu0 0.0
    %366 = vmatprep.subr.mxu0 0.0
    %367 = vmatpush1.msra.mxu0 0.0
    %368 = vmatprep.mubr.f32.mxu0 0.0
    %v369 = vand.u32 %v48, 4294901760
    %v370 = vsub.f32 %v48, %v369
    %v371 = vand.u32 %v370, 4294901760
    %372 = vmatmul.mubr.f32.gmra.mrb[0].mxu0 %v371
    %v373 = vpop.f32.mrb[0].mxu0
    %v374 = vadd.f32 %v297, %v373
    %v375 = vpop.f32.mrb[0].mxu0
    %376 = vdwg.mxu0
    %377 = vmatprep.subr.mxu0 0.0
    %v378 = vand.u32 %v35, 4294901760
    %v379 = vsub.f32 %v35, %v378
    %v380 = vand.u32 %v379, 4294901760
    %381 = vmatpush1.msra.mxu0 %v380
    %382 = vmatprep.subr.mxu0 0.0
    %v383 = vand.u32 %v36, 4294901760
    %v384 = vsub.f32 %v36, %v383
    %v385 = vand.u32 %v384, 4294901760
    %386 = vmatpush1.msra.mxu0 %v385
    %387 = vmatprep.subr.mxu0 0.0
    %v388 = vand.u32 %v37, 4294901760
    %v389 = vsub.f32 %v37, %v388
    %v390 = vand.u32 %v389, 4294901760
    %391 = vmatpush1.msra.mxu0 %v390
    %392 = vmatprep.subr.mxu0 0.0
    %v393 = vand.u32 %v38, 4294901760
    %v394 = vsub.f32 %v38, %v393
    %v395 = vand.u32 %v394, 4294901760
    %396 = vmatpush1.msra.mxu0 %v395
    %397 = vmatprep.subr.mxu0 0.0
    %398 = vmatpush1.msra.mxu0 0.0
    %399 = vmatprep.subr.mxu0 0.0
    %400 = vmatpush1.msra.mxu0 0.0
    %401 = vmatprep.subr.mxu0 0.0
    %402 = vmatpush1.msra.mxu0 0.0
    %403 = vmatprep.subr.mxu0 0.0
    %404 = vmatpush1.msra.mxu0 0.0
    %405 = vmatprep.subr.mxu0 0.0
    %406 = vmatpush1.msra.mxu0 0.0
    %407 = vmatprep.subr.mxu0 0.0
    %408 = vmatpush1.msra.mxu0 0.0
    %409 = vmatprep.subr.mxu0 0.0
    %410 = vmatpush1.msra.mxu0 0.0
    %411 = vmatprep.subr.mxu0 0.0
    %412 = vmatpush1.msra.mxu0 0.0
    %413 = vmatprep.subr.mxu0 0.0
    %414 = vmatpush1.msra.mxu0 0.0
    %415 = vmatprep.subr.mxu0 0.0
    %416 = vmatpush1.msra.mxu0 0.0
    %417 = vmatprep.subr.mxu0 0.0
    %418 = vmatpush1.msra.mxu0 0.0
    %419 = vmatprep.subr.mxu0 0.0
    %420 = vmatpush1.msra.mxu0 0.0
    %421 = vmatprep.subr.mxu0 0.0
    %422 = vmatpush1.msra.mxu0 0.0
    %423 = vmatprep.subr.mxu0 0.0
    %424 = vmatpush1.msra.mxu0 0.0
    %425 = vmatprep.subr.mxu0 0.0
    %426 = vmatpush1.msra.mxu0 0.0
    %427 = vmatprep.subr.mxu0 0.0
    %428 = vmatpush1.msra.mxu0 0.0
    %429 = vmatprep.subr.mxu0 0.0
    %430 = vmatpush1.msra.mxu0 0.0
    %431 = vmatprep.subr.mxu0 0.0
    %432 = vmatpush1.msra.mxu0 0.0
    %433 = vmatprep.subr.mxu0 0.0
    %434 = vmatpush1.msra.mxu0 0.0
    %435 = vmatprep.subr.mxu0 0.0
    %436 = vmatpush1.msra.mxu0 0.0
    %437 = vmatprep.subr.mxu0 0.0
    %438 = vmatpush1.msra.mxu0 0.0
    %439 = vmatprep.subr.mxu0 0.0
    %440 = vmatpush1.msra.mxu0 0.0
    %441 = vmatprep.subr.mxu0 0.0
    %442 = vmatpush1.msra.mxu0 0.0
    %443 = vmatprep.subr.mxu0 0.0
    %444 = vmatpush1.msra.mxu0 0.0
    %445 = vmatprep.subr.mxu0 0.0
    %446 = vmatpush1.msra.mxu0 0.0
    %447 = vmatprep.subr.mxu0 0.0
    %448 = vmatpush1.msra.mxu0 0.0
    %449 = vmatprep.subr.mxu0 0.0
    %450 = vmatpush1.msra.mxu0 0.0
    %451 = vmatprep.subr.mxu0 0.0
    %452 = vmatpush1.msra.mxu0 0.0
    %453 = vmatprep.mubr.f32.mxu0 0.0
    %v454 = vand.u32 %v48, 4294901760
    %455 = vmatmul.mubr.f32.gmra.mrb[0].mxu0 %v454
    %v456 = vpop.f32.mrb[0].mxu0
    %v457 = vadd.f32 %v374, %v456
    %v458 = vpop.f32.mrb[0].mxu0
    %459 = vdwg.mxu0
    %460 = vmatprep.subr.mxu0 0.0
    %v461 = vand.u32 %v35, 4294901760
    %462 = vmatpush1.msra.mxu0 %v461
    %463 = vmatprep.subr.mxu0 0.0
    %v464 = vand.u32 %v36, 4294901760
    %465 = vmatpush1.msra.mxu0 %v464
    %466 = vmatprep.subr.mxu0 0.0
    %v467 = vand.u32 %v37, 4294901760
    %468 = vmatpush1.msra.mxu0 %v467
    %469 = vmatprep.subr.mxu0 0.0
    %v470 = vand.u32 %v38, 4294901760
    %471 = vmatpush1.msra.mxu0 %v470
    %472 = vmatprep.subr.mxu0 0.0
    %473 = vmatpush1.msra.mxu0 0.0
    %474 = vmatprep.subr.mxu0 0.0
    %475 = vmatpush1.msra.mxu0 0.0
    %476 = vmatprep.subr.mxu0 0.0
    %477 = vmatpush1.msra.mxu0 0.0
    %478 = vmatprep.subr.mxu0 0.0
    %479 = vmatpush1.msra.mxu0 0.0
    %480 = vmatprep.subr.mxu0 0.0
    %481 = vmatpush1.msra.mxu0 0.0
    %482 = vmatprep.subr.mxu0 0.0
    %483 = vmatpush1.msra.mxu0 0.0
    %484 = vmatprep.subr.mxu0 0.0
    %485 = vmatpush1.msra.mxu0 0.0
    %486 = vmatprep.subr.mxu0 0.0
    %487 = vmatpush1.msra.mxu0 0.0
    %488 = vmatprep.subr.mxu0 0.0
    %489 = vmatpush1.msra.mxu0 0.0
    %490 = vmatprep.subr.mxu0 0.0
    %491 = vmatpush1.msra.mxu0 0.0
    %492 = vmatprep.subr.mxu0 0.0
    %493 = vmatpush1.msra.mxu0 0.0
    %494 = vmatprep.subr.mxu0 0.0
    %495 = vmatpush1.msra.mxu0 0.0
    %496 = vmatprep.subr.mxu0 0.0
    %497 = vmatpush1.msra.mxu0 0.0
    %498 = vmatprep.subr.mxu0 0.0
    %499 = vmatpush1.msra.mxu0 0.0
    %500 = vmatprep.subr.mxu0 0.0
    %501 = vmatpush1.msra.mxu0 0.0
    %502 = vmatprep.subr.mxu0 0.0
    %503 = vmatpush1.msra.mxu0 0.0
    %504 = vmatprep.subr.mxu0 0.0
    %505 = vmatpush1.msra.mxu0 0.0
    %506 = vmatprep.subr.mxu0 0.0
    %507 = vmatpush1.msra.mxu0 0.0
    %508 = vmatprep.subr.mxu0 0.0
    %509 = vmatpush1.msra.mxu0 0.0
    %510 = vmatprep.subr.mxu0 0.0
    %511 = vmatpush1.msra.mxu0 0.0
    %512 = vmatprep.subr.mxu0 0.0
    %513 = vmatpush1.msra.mxu0 0.0
    %514 = vmatprep.subr.mxu0 0.0
    %515 = vmatpush1.msra.mxu0 0.0
    %516 = vmatprep.subr.mxu0 0.0
    %517 = vmatpush1.msra.mxu0 0.0
    %518 = vmatprep.subr.mxu0 0.0
    %519 = vmatpush1.msra.mxu0 0.0
    %520 = vmatprep.subr.mxu0 0.0
    %521 = vmatpush1.msra.mxu0 0.0
    %522 = vmatprep.subr.mxu0 0.0
    %523 = vmatpush1.msra.mxu0 0.0
    %524 = vmatprep.subr.mxu0 0.0
    %525 = vmatpush1.msra.mxu0 0.0
    %526 = vmatprep.subr.mxu0 0.0
    %527 = vmatpush1.msra.mxu0 0.0
    %528 = vmatprep.mubr.f32.mxu0 0.0
    %v529 = vand.u32 %v48, 4294901760
    %530 = vmatmul.mubr.f32.gmra.mrb[0].mxu0 %v529
    %v531 = vpop.f32.mrb[0].mxu0
    %v532 = vadd.f32 %v457, %v531
    %v533 = vpop.f32.mrb[0].mxu0
    %534 = vdwg.mxu0
    %v535 = vld [vmem:[%s1] sm:$0xff]
    %v536 = vld [vmem:[%s1 + $0x8] sm:$0xff]
    %v537 = vld [vmem:[%s1 + $0x10] sm:$0xff]
    %v538 = vld [vmem:[%s1 + $0x18] sm:$0xff]
    %v539 = vld [vmem:[%s1 + $0x20] sm:$0xff]
    %v540 = vld [vmem:[%s1 + $0x28] sm:$0xff]
    %v541 = vld [vmem:[%s1 + $0x30] sm:$0xff]
    %v542 = vld [vmem:[%s1 + $0x38] sm:$0xff]
    %v543 = vld [vmem:[%s4] sm:$0xff]
    %v544 = vld [vmem:[%s4 + $0x8] sm:$0xff]
    %v545 = vld [vmem:[%s4 + $0x10] sm:$0xff]
    %v546 = vld [vmem:[%s4 + $0x18] sm:$0xff]
    %v547 = vld [vmem:[%s5] sm:$0x1]
    %v549 = vlaneseq
    %v550 = vshrl.u32 %v549, 7
    %v551 = vsub.s32 0, %v550
    %v552 = vrot.slane %v547, %v551
    %v555 = vsel %vm46, %v535, 0
    %v558 = vsel %vm46, %v536, 0
    %v561 = vsel %vm46, %v537, 0
    %v564 = vsel %vm46, %v538, 0
    %v567 = vsel %vm46, %v539, 0
    %v570 = vsel %vm46, %v540, 0
    %v573 = vsel %vm46, %v541, 0
    %v576 = vsel %vm46, %v542, 0
    %578 = vmatprep.subr.mxu0 0.0
    %v579 = vand.u32 %v543, 4294901760
    %580 = vmatpush1.msra.mxu0 %v579
    %581 = vmatprep.subr.mxu0 0.0
    %v582 = vand.u32 %v544, 4294901760
    %583 = vmatpush1.msra.mxu0 %v582
    %584 = vmatprep.subr.mxu0 0.0
    %v585 = vand.u32 %v545, 4294901760
    %586 = vmatpush1.msra.mxu0 %v585
    %587 = vmatprep.subr.mxu0 0.0
    %v588 = vand.u32 %v546, 4294901760
    %589 = vmatpush1.msra.mxu0 %v588
    %590 = vmatprep.subr.mxu0 0.0
    %591 = vmatpush1.msra.mxu0 0.0
    %592 = vmatprep.subr.mxu0 0.0
    %593 = vmatpush1.msra.mxu0 0.0
    %594 = vmatprep.subr.mxu0 0.0
    %595 = vmatpush1.msra.mxu0 0.0
    %596 = vmatprep.subr.mxu0 0.0
    %597 = vmatpush1.msra.mxu0 0.0
    %598 = vmatprep.subr.mxu0 0.0
    %599 = vmatpush1.msra.mxu0 0.0
    %600 = vmatprep.subr.mxu0 0.0
    %601 = vmatpush1.msra.mxu0 0.0
    %602 = vmatprep.subr.mxu0 0.0
    %603 = vmatpush1.msra.mxu0 0.0
    %604 = vmatprep.subr.mxu0 0.0
    %605 = vmatpush1.msra.mxu0 0.0
    %606 = vmatprep.subr.mxu0 0.0
    %607 = vmatpush1.msra.mxu0 0.0
    %608 = vmatprep.subr.mxu0 0.0
    %609 = vmatpush1.msra.mxu0 0.0
    %610 = vmatprep.subr.mxu0 0.0
    %611 = vmatpush1.msra.mxu0 0.0
    %612 = vmatprep.subr.mxu0 0.0
    %613 = vmatpush1.msra.mxu0 0.0
    %614 = vmatprep.subr.mxu0 0.0
    %615 = vmatpush1.msra.mxu0 0.0
    %616 = vmatprep.subr.mxu0 0.0
    %617 = vmatpush1.msra.mxu0 0.0
    %618 = vmatprep.subr.mxu0 0.0
    %619 = vmatpush1.msra.mxu0 0.0
    %620 = vmatprep.subr.mxu0 0.0
    %621 = vmatpush1.msra.mxu0 0.0
    %622 = vmatprep.subr.mxu0 0.0
    %623 = vmatpush1.msra.mxu0 0.0
    %624 = vmatprep.subr.mxu0 0.0
    %625 = vmatpush1.msra.mxu0 0.0
    %626 = vmatprep.subr.mxu0 0.0
    %627 = vmatpush1.msra.mxu0 0.0
    %628 = vmatprep.subr.mxu0 0.0
    %629 = vmatpush1.msra.mxu0 0.0
    %630 = vmatprep.subr.mxu0 0.0
    %631 = vmatpush1.msra.mxu0 0.0
    %632 = vmatprep.subr.mxu0 0.0
    %633 = vmatpush1.msra.mxu0 0.0
    %634 = vmatprep.subr.mxu0 0.0
    %635 = vmatpush1.msra.mxu0 0.0
    %636 = vmatprep.subr.mxu0 0.0
    %637 = vmatpush1.msra.mxu0 0.0
    %638 = vmatprep.subr.mxu0 0.0
    %639 = vmatpush1.msra.mxu0 0.0
    %640 = vmatprep.subr.mxu0 0.0
    %641 = vmatpush1.msra.mxu0 0.0
    %642 = vmatprep.subr.mxu0 0.0
    %643 = vmatpush1.msra.mxu0 0.0
    %644 = vmatprep.subr.mxu0 0.0
    %645 = vmatpush1.msra.mxu0 0.0
    %646 = vmatprep.mubr.f32.mxu0 0.0
    %v647 = vand.u32 %v555, 4294901760
    %v648 = vsub.f32 %v555, %v647
    %v649 = vand.u32 %v648, 4294901760
    %v650 = vsub.f32 %v648, %v649
    %v651 = vand.u32 %v650, 4294901760
    %652 = vmatmul.mubr.f32.gmra.mrb[0].mxu0 %v651
    %v653 = vpop.f32.mrb[0].mxu0
    %v654 = vadd.f32 %v552, %v653
    %v655 = vpop.f32.mrb[0].mxu0
    %656 = vmatprep.mubr.f32.mxu0 0.0
    %v657 = vand.u32 %v558, 4294901760
    %v658 = vsub.f32 %v558, %v657
    %v659 = vand.u32 %v658, 4294901760
    %v660 = vsub.f32 %v658, %v659
    %v661 = vand.u32 %v660, 4294901760
    %662 = vmatmul.mubr.f32.gmra.mrb[0].mxu0 %v661
    %v663 = vpop.f32.mrb[0].mxu0
    %v664 = vadd.f32 %v552, %v663
    %v665 = vpop.f32.mrb[0].mxu0
    %666 = vmatprep.mubr.f32.mxu0 0.0
    %v667 = vand.u32 %v561, 4294901760
    %v668 = vsub.f32 %v561, %v667
    %v669 = vand.u32 %v668, 4294901760
    %v670 = vsub.f32 %v668, %v669
    %v671 = vand.u32 %v670, 4294901760
    %672 = vmatmul.mubr.f32.gmra.mrb[0].mxu0 %v671
    %v673 = vpop.f32.mrb[0].mxu0
    %v674 = vadd.f32 %v552, %v673
    %v675 = vpop.f32.mrb[0].mxu0
    %676 = vmatprep.mubr.f32.mxu0 0.0
    %v677 = vand.u32 %v564, 4294901760
    %v678 = vsub.f32 %v564, %v677
    %v679 = vand.u32 %v678, 4294901760
    %v680 = vsub.f32 %v678, %v679
    %v681 = vand.u32 %v680, 4294901760
    %682 = vmatmul.mubr.f32.gmra.mrb[0].mxu0 %v681
    %v683 = vpop.f32.mrb[0].mxu0
    %v684 = vadd.f32 %v552, %v683
    %v685 = vpop.f32.mrb[0].mxu0
    %686 = vmatprep.mubr.f32.mxu0 0.0
    %v687 = vand.u32 %v567, 4294901760
    %v688 = vsub.f32 %v567, %v687
    %v689 = vand.u32 %v688, 4294901760
    %v690 = vsub.f32 %v688, %v689
    %v691 = vand.u32 %v690, 4294901760
    %692 = vmatmul.mubr.f32.gmra.mrb[0].mxu0 %v691
    %v693 = vpop.f32.mrb[0].mxu0
    %v694 = vadd.f32 %v552, %v693
    %v695 = vpop.f32.mrb[0].mxu0
    %696 = vmatprep.mubr.f32.mxu0 0.0
    %v697 = vand.u32 %v570, 4294901760
    %v698 = vsub.f32 %v570, %v697
    %v699 = vand.u32 %v698, 4294901760
    %v700 = vsub.f32 %v698, %v699
    %v701 = vand.u32 %v700, 4294901760
    %702 = vmatmul.mubr.f32.gmra.mrb[0].mxu0 %v701
    %v703 = vpop.f32.mrb[0].mxu0
    %v704 = vadd.f32 %v552, %v703
    %v705 = vpop.f32.mrb[0].mxu0
    %706 = vmatprep.mubr.f32.mxu0 0.0
    %v707 = vand.u32 %v573, 4294901760
    %v708 = vsub.f32 %v573, %v707
    %v709 = vand.u32 %v708, 4294901760
    %v710 = vsub.f32 %v708, %v709
    %v711 = vand.u32 %v710, 4294901760
    %712 = vmatmul.mubr.f32.gmra.mrb[0].mxu0 %v711
    %v713 = vpop.f32.mrb[0].mxu0
    %v714 = vadd.f32 %v552, %v713
    %v715 = vpop.f32.mrb[0].mxu0
    %716 = vmatprep.mubr.f32.mxu0 0.0
    %v717 = vand.u32 %v576, 4294901760
    %v718 = vsub.f32 %v576, %v717
    %v719 = vand.u32 %v718, 4294901760
    %v720 = vsub.f32 %v718, %v719
    %v721 = vand.u32 %v720, 4294901760
    %722 = vmatmul.mubr.f32.gmra.mrb[0].mxu0 %v721
    %v723 = vpop.f32.mrb[0].mxu0
    %v724 = vadd.f32 %v552, %v723
    %v725 = vpop.f32.mrb[0].mxu0
    %726 = vdwg.mxu0
    %727 = vmatprep.subr.mxu0 0.0
    %v728 = vand.u32 %v543, 4294901760
    %v729 = vsub.f32 %v543, %v728
    %v730 = vand.u32 %v729, 4294901760
    %v731 = vsub.f32 %v729, %v730
    %v732 = vand.u32 %v731, 4294901760
    %733 = vmatpush1.msra.mxu0 %v732
    %734 = vmatprep.subr.mxu0 0.0
    %v735 = vand.u32 %v544, 4294901760
    %v736 = vsub.f32 %v544, %v735
    %v737 = vand.u32 %v736, 4294901760
    %v738 = vsub.f32 %v736, %v737
    %v739 = vand.u32 %v738, 4294901760
    %740 = vmatpush1.msra.mxu0 %v739
    %741 = vmatprep.subr.mxu0 0.0
    %v742 = vand.u32 %v545, 4294901760
    %v743 = vsub.f32 %v545, %v742
    %v744 = vand.u32 %v743, 4294901760
    %v745 = vsub.f32 %v743, %v744
    %v746 = vand.u32 %v745, 4294901760
    %747 = vmatpush1.msra.mxu0 %v746
    %748 = vmatprep.subr.mxu0 0.0
    %v749 = vand.u32 %v546, 4294901760
    %v750 = vsub.f32 %v546, %v749
    %v751 = vand.u32 %v750, 4294901760
    %v752 = vsub.f32 %v750, %v751
    %v753 = vand.u32 %v752, 4294901760
    %754 = vmatpush1.msra.mxu0 %v753
    %755 = vmatprep.subr.mxu0 0.0
    %756 = vmatpush1.msra.mxu0 0.0
    %757 = vmatprep.subr.mxu0 0.0
    %758 = vmatpush1.msra.mxu0 0.0
    %759 = vmatprep.subr.mxu0 0.0
    %760 = vmatpush1.msra.mxu0 0.0
    %761 = vmatprep.subr.mxu0 0.0
    %762 = vmatpush1.msra.mxu0 0.0
    %763 = vmatprep.subr.mxu0 0.0
    %764 = vmatpush1.msra.mxu0 0.0
    %765 = vmatprep.subr.mxu0 0.0
    %766 = vmatpush1.msra.mxu0 0.0
    %767 = vmatprep.subr.mxu0 0.0
    %768 = vmatpush1.msra.mxu0 0.0
    %769 = vmatprep.subr.mxu0 0.0
    %770 = vmatpush1.msra.mxu0 0.0
    %771 = vmatprep.subr.mxu0 0.0
    %772 = vmatpush1.msra.mxu0 0.0
    %773 = vmatprep.subr.mxu0 0.0
    %774 = vmatpush1.msra.mxu0 0.0
    %775 = vmatprep.subr.mxu0 0.0
    %776 = vmatpush1.msra.mxu0 0.0
    %777 = vmatprep.subr.mxu0 0.0
    %778 = vmatpush1.msra.mxu0 0.0
    %779 = vmatprep.subr.mxu0 0.0
    %780 = vmatpush1.msra.mxu0 0.0
    %781 = vmatprep.subr.mxu0 0.0
    %782 = vmatpush1.msra.mxu0 0.0
    %783 = vmatprep.subr.mxu0 0.0
    %784 = vmatpush1.msra.mxu0 0.0
    %785 = vmatprep.subr.mxu0 0.0
    %786 = vmatpush1.msra.mxu0 0.0
    %787 = vmatprep.subr.mxu0 0.0
    %788 = vmatpush1.msra.mxu0 0.0
    %789 = vmatprep.subr.mxu0 0.0
    %790 = vmatpush1.msra.mxu0 0.0
    %791 = vmatprep.subr.mxu0 0.0
    %792 = vmatpush1.msra.mxu0 0.0
    %793 = vmatprep.subr.mxu0 0.0
    %794 = vmatpush1.msra.mxu0 0.0
    %795 = vmatprep.subr.mxu0 0.0
    %796 = vmatpush1.msra.mxu0 0.0
    %797 = vmatprep.subr.mxu0 0.0
    %798 = vmatpush1.msra.mxu0 0.0
    %799 = vmatprep.subr.mxu0 0.0
    %800 = vmatpush1.msra.mxu0 0.0
    %801 = vmatprep.subr.mxu0 0.0
    %802 = vmatpush1.msra.mxu0 0.0
    %803 = vmatprep.subr.mxu0 0.0
    %804 = vmatpush1.msra.mxu0 0.0
    %805 = vmatprep.subr.mxu0 0.0
    %806 = vmatpush1.msra.mxu0 0.0
    %807 = vmatprep.subr.mxu0 0.0
    %808 = vmatpush1.msra.mxu0 0.0
    %809 = vmatprep.subr.mxu0 0.0
    %810 = vmatpush1.msra.mxu0 0.0
    %811 = vmatprep.mubr.f32.mxu0 0.0
    %v812 = vand.u32 %v555, 4294901760
    %813 = vmatmul.mubr.f32.gmra.mrb[0].mxu0 %v812
    %v814 = vpop.f32.mrb[0].mxu0
    %v815 = vadd.f32 %v654, %v814
    %v816 = vpop.f32.mrb[0].mxu0
    %817 = vmatprep.mubr.f32.mxu0 0.0
    %v818 = vand.u32 %v558, 4294901760
    %819 = vmatmul.mubr.f32.gmra.mrb[0].mxu0 %v818
    %v820 = vpop.f32.mrb[0].mxu0
    %v821 = vadd.f32 %v664, %v820
    %v822 = vpop.f32.mrb[0].mxu0
    %823 = vmatprep.mubr.f32.mxu0 0.0
    %v824 = vand.u32 %v561, 4294901760
    %825 = vmatmul.mubr.f32.gmra.mrb[0].mxu0 %v824
    %v826 = vpop.f32.mrb[0].mxu0
    %v827 = vadd.f32 %v674, %v826
    %v828 = vpop.f32.mrb[0].mxu0
    %829 = vmatprep.mubr.f32.mxu0 0.0
    %v830 = vand.u32 %v564, 4294901760
    %831 = vmatmul.mubr.f32.gmra.mrb[0].mxu0 %v830
    %v832 = vpop.f32.mrb[0].mxu0
    %v833 = vadd.f32 %v684, %v832
    %v834 = vpop.f32.mrb[0].mxu0
    %835 = vmatprep.mubr.f32.mxu0 0.0
    %v836 = vand.u32 %v567, 4294901760
    %837 = vmatmul.mubr.f32.gmra.mrb[0].mxu0 %v836
    %v838 = vpop.f32.mrb[0].mxu0
    %v839 = vadd.f32 %v694, %v838
    %v840 = vpop.f32.mrb[0].mxu0
    %841 = vmatprep.mubr.f32.mxu0 0.0
    %v842 = vand.u32 %v570, 4294901760
    %843 = vmatmul.mubr.f32.gmra.mrb[0].mxu0 %v842
    %v844 = vpop.f32.mrb[0].mxu0
    %v845 = vadd.f32 %v704, %v844
    %v846 = vpop.f32.mrb[0].mxu0
    %847 = vmatprep.mubr.f32.mxu0 0.0
    %v848 = vand.u32 %v573, 4294901760
    %849 = vmatmul.mubr.f32.gmra.mrb[0].mxu0 %v848
    %v850 = vpop.f32.mrb[0].mxu0
    %v851 = vadd.f32 %v714, %v850
    %v852 = vpop.f32.mrb[0].mxu0
    %853 = vmatprep.mubr.f32.mxu0 0.0
    %v854 = vand.u32 %v576, 4294901760
    %855 = vmatmul.mubr.f32.gmra.mrb[0].mxu0 %v854
    %v856 = vpop.f32.mrb[0].mxu0
    %v857 = vadd.f32 %v724, %v856
    %v858 = vpop.f32.mrb[0].mxu0
    %859 = vdwg.mxu0
    %860 = vmatprep.subr.mxu0 0.0
    %v861 = vand.u32 %v543, 4294901760
    %v862 = vsub.f32 %v543, %v861
    %863 = vmatpush1.msra.mxu0 %v862
    %864 = vmatprep.subr.mxu0 0.0
    %v865 = vand.u32 %v544, 4294901760
    %v866 = vsub.f32 %v544, %v865
    %867 = vmatpush1.msra.mxu0 %v866
    %868 = vmatprep.subr.mxu0 0.0
    %v869 = vand.u32 %v545, 4294901760
    %v870 = vsub.f32 %v545, %v869
    %871 = vmatpush1.msra.mxu0 %v870
    %872 = vmatprep.subr.mxu0 0.0
    %v873 = vand.u32 %v546, 4294901760
    %v874 = vsub.f32 %v546, %v873
    %875 = vmatpush1.msra.mxu0 %v874
    %876 = vmatprep.subr.mxu0 0.0
    %877 = vmatpush1.msra.mxu0 0.0
    %878 = vmatprep.subr.mxu0 0.0
    %879 = vmatpush1.msra.mxu0 0.0
    %880 = vmatprep.subr.mxu0 0.0
    %881 = vmatpush1.msra.mxu0 0.0
    %882 = vmatprep.subr.mxu0 0.0
    %883 = vmatpush1.msra.mxu0 0.0
    %884 = vmatprep.subr.mxu0 0.0
    %885 = vmatpush1.msra.mxu0 0.0
    %886 = vmatprep.subr.mxu0 0.0
    %887 = vmatpush1.msra.mxu0 0.0
    %888 = vmatprep.subr.mxu0 0.0
    %889 = vmatpush1.msra.mxu0 0.0
    %890 = vmatprep.subr.mxu0 0.0
    %891 = vmatpush1.msra.mxu0 0.0
    %892 = vmatprep.subr.mxu0 0.0
    %893 = vmatpush1.msra.mxu0 0.0
    %894 = vmatprep.subr.mxu0 0.0
    %895 = vmatpush1.msra.mxu0 0.0
    %896 = vmatprep.subr.mxu0 0.0
    %897 = vmatpush1.msra.mxu0 0.0
    %898 = vmatprep.subr.mxu0 0.0
    %899 = vmatpush1.msra.mxu0 0.0
    %900 = vmatprep.subr.mxu0 0.0
    %901 = vmatpush1.msra.mxu0 0.0
    %902 = vmatprep.subr.mxu0 0.0
    %903 = vmatpush1.msra.mxu0 0.0
    %904 = vmatprep.subr.mxu0 0.0
    %905 = vmatpush1.msra.mxu0 0.0
    %906 = vmatprep.subr.mxu0 0.0
    %907 = vmatpush1.msra.mxu0 0.0
    %908 = vmatprep.subr.mxu0 0.0
    %909 = vmatpush1.msra.mxu0 0.0
    %910 = vmatprep.subr.mxu0 0.0
    %911 = vmatpush1.msra.mxu0 0.0
    %912 = vmatprep.subr.mxu0 0.0
    %913 = vmatpush1.msra.mxu0 0.0
    %914 = vmatprep.subr.mxu0 0.0
    %915 = vmatpush1.msra.mxu0 0.0
    %916 = vmatprep.subr.mxu0 0.0
    %917 = vmatpush1.msra.mxu0 0.0
    %918 = vmatprep.subr.mxu0 0.0
    %919 = vmatpush1.msra.mxu0 0.0
    %920 = vmatprep.subr.mxu0 0.0
    %921 = vmatpush1.msra.mxu0 0.0
    %922 = vmatprep.subr.mxu0 0.0
    %923 = vmatpush1.msra.mxu0 0.0
    %924 = vmatprep.subr.mxu0 0.0
    %925 = vmatpush1.msra.mxu0 0.0
    %926 = vmatprep.subr.mxu0 0.0
    %927 = vmatpush1.msra.mxu0 0.0
    %928 = vmatprep.subr.mxu0 0.0
    %929 = vmatpush1.msra.mxu0 0.0
    %930 = vmatprep.subr.mxu0 0.0
    %931 = vmatpush1.msra.mxu0 0.0
    %932 = vmatprep.mubr.f32.mxu0 0.0
    %v933 = vand.u32 %v555, 4294901760
    %v934 = vsub.f32 %v555, %v933
    %935 = vmatmul.mubr.f32.gmra.mrb[0].mxu0 %v934
    %v936 = vpop.f32.mrb[0].mxu0
    %v937 = vadd.f32 %v815, %v936
    %v938 = vpop.f32.mrb[0].mxu0
    %939 = vmatprep.mubr.f32.mxu0 0.0
    %v940 = vand.u32 %v558, 4294901760
    %v941 = vsub.f32 %v558, %v940
    %942 = vmatmul.mubr.f32.gmra.mrb[0].mxu0 %v941
    %v943 = vpop.f32.mrb[0].mxu0
    %v944 = vadd.f32 %v821, %v943
    %v945 = vpop.f32.mrb[0].mxu0
    %946 = vmatprep.mubr.f32.mxu0 0.0
    %v947 = vand.u32 %v561, 4294901760
    %v948 = vsub.f32 %v561, %v947
    %949 = vmatmul.mubr.f32.gmra.mrb[0].mxu0 %v948
    %v950 = vpop.f32.mrb[0].mxu0
    %v951 = vadd.f32 %v827, %v950
    %v952 = vpop.f32.mrb[0].mxu0
    %953 = vmatprep.mubr.f32.mxu0 0.0
    %v954 = vand.u32 %v564, 4294901760
    %v955 = vsub.f32 %v564, %v954
    %956 = vmatmul.mubr.f32.gmra.mrb[0].mxu0 %v955
    %v957 = vpop.f32.mrb[0].mxu0
    %v958 = vadd.f32 %v833, %v957
    %v959 = vpop.f32.mrb[0].mxu0
    %960 = vmatprep.mubr.f32.mxu0 0.0
    %v961 = vand.u32 %v567, 4294901760
    %v962 = vsub.f32 %v567, %v961
    %963 = vmatmul.mubr.f32.gmra.mrb[0].mxu0 %v962
    %v964 = vpop.f32.mrb[0].mxu0
    %v965 = vadd.f32 %v839, %v964
    %v966 = vpop.f32.mrb[0].mxu0
    %967 = vmatprep.mubr.f32.mxu0 0.0
    %v968 = vand.u32 %v570, 4294901760
    %v969 = vsub.f32 %v570, %v968
    %970 = vmatmul.mubr.f32.gmra.mrb[0].mxu0 %v969
    %v971 = vpop.f32.mrb[0].mxu0
    %v972 = vadd.f32 %v845, %v971
    %v973 = vpop.f32.mrb[0].mxu0
    %974 = vmatprep.mubr.f32.mxu0 0.0
    %v975 = vand.u32 %v573, 4294901760
    %v976 = vsub.f32 %v573, %v975
    %977 = vmatmul.mubr.f32.gmra.mrb[0].mxu0 %v976
    %v978 = vpop.f32.mrb[0].mxu0
    %v979 = vadd.f32 %v851, %v978
    %v980 = vpop.f32.mrb[0].mxu0
    %981 = vmatprep.mubr.f32.mxu0 0.0
    %v982 = vand.u32 %v576, 4294901760
    %v983 = vsub.f32 %v576, %v982
    %984 = vmatmul.mubr.f32.gmra.mrb[0].mxu0 %v983
    %v985 = vpop.f32.mrb[0].mxu0
    %v986 = vadd.f32 %v857, %v985
    %v987 = vpop.f32.mrb[0].mxu0
    %988 = vdwg.mxu0
    %989 = vmatprep.subr.mxu0 0.0
    %v990 = vand.u32 %v543, 4294901760
    %991 = vmatpush1.msra.mxu0 %v990
    %992 = vmatprep.subr.mxu0 0.0
    %v993 = vand.u32 %v544, 4294901760
    %994 = vmatpush1.msra.mxu0 %v993
    %995 = vmatprep.subr.mxu0 0.0
    %v996 = vand.u32 %v545, 4294901760
    %997 = vmatpush1.msra.mxu0 %v996
    %998 = vmatprep.subr.mxu0 0.0
    %v999 = vand.u32 %v546, 4294901760
    %1000 = vmatpush1.msra.mxu0 %v999
    %1001 = vmatprep.subr.mxu0 0.0
    %1002 = vmatpush1.msra.mxu0 0.0
    %1003 = vmatprep.subr.mxu0 0.0
    %1004 = vmatpush1.msra.mxu0 0.0
    %1005 = vmatprep.subr.mxu0 0.0
    %1006 = vmatpush1.msra.mxu0 0.0
    %1007 = vmatprep.subr.mxu0 0.0
    %1008 = vmatpush1.msra.mxu0 0.0
    %1009 = vmatprep.subr.mxu0 0.0
    %1010 = vmatpush1.msra.mxu0 0.0
    %1011 = vmatprep.subr.mxu0 0.0
    %1012 = vmatpush1.msra.mxu0 0.0
    %1013 = vmatprep.subr.mxu0 0.0
    %1014 = vmatpush1.msra.mxu0 0.0
    %1015 = vmatprep.subr.mxu0 0.0
    %1016 = vmatpush1.msra.mxu0 0.0
    %1017 = vmatprep.subr.mxu0 0.0
    %1018 = vmatpush1.msra.mxu0 0.0
    %1019 = vmatprep.subr.mxu0 0.0
    %1020 = vmatpush1.msra.mxu0 0.0
    %1021 = vmatprep.subr.mxu0 0.0
    %1022 = vmatpush1.msra.mxu0 0.0
    %1023 = vmatprep.subr.mxu0 0.0
    %1024 = vmatpush1.msra.mxu0 0.0
    %1025 = vmatprep.subr.mxu0 0.0
    %1026 = vmatpush1.msra.mxu0 0.0
    %1027 = vmatprep.subr.mxu0 0.0
    %1028 = vmatpush1.msra.mxu0 0.0
    %1029 = vmatprep.subr.mxu0 0.0
    %1030 = vmatpush1.msra.mxu0 0.0
    %1031 = vmatprep.subr.mxu0 0.0
    %1032 = vmatpush1.msra.mxu0 0.0
    %1033 = vmatprep.subr.mxu0 0.0
    %1034 = vmatpush1.msra.mxu0 0.0
    %1035 = vmatprep.subr.mxu0 0.0
    %1036 = vmatpush1.msra.mxu0 0.0
    %1037 = vmatprep.subr.mxu0 0.0
    %1038 = vmatpush1.msra.mxu0 0.0
    %1039 = vmatprep.subr.mxu0 0.0
    %1040 = vmatpush1.msra.mxu0 0.0
    %1041 = vmatprep.subr.mxu0 0.0
    %1042 = vmatpush1.msra.mxu0 0.0
    %1043 = vmatprep.subr.mxu0 0.0
    %1044 = vmatpush1.msra.mxu0 0.0
    %1045 = vmatprep.subr.mxu0 0.0
    %1046 = vmatpush1.msra.mxu0 0.0
    %1047 = vmatprep.subr.mxu0 0.0
    %1048 = vmatpush1.msra.mxu0 0.0
    %1049 = vmatprep.subr.mxu0 0.0
    %1050 = vmatpush1.msra.mxu0 0.0
    %1051 = vmatprep.subr.mxu0 0.0
    %1052 = vmatpush1.msra.mxu0 0.0
    %1053 = vmatprep.subr.mxu0 0.0
    %1054 = vmatpush1.msra.mxu0 0.0
    %1055 = vmatprep.subr.mxu0 0.0
    %1056 = vmatpush1.msra.mxu0 0.0
    %1057 = vmatprep.mubr.f32.mxu0 0.0
    %v1058 = vand.u32 %v555, 4294901760
    %v1059 = vsub.f32 %v555, %v1058
    %v1060 = vand.u32 %v1059, 4294901760
    %1061 = vmatmul.mubr.f32.gmra.mrb[0].mxu0 %v1060
    %v1062 = vpop.f32.mrb[0].mxu0
    %v1063 = vadd.f32 %v937, %v1062
    %v1064 = vpop.f32.mrb[0].mxu0
    %1065 = vmatprep.mubr.f32.mxu0 0.0
    %v1066 = vand.u32 %v558, 4294901760
    %v1067 = vsub.f32 %v558, %v1066
    %v1068 = vand.u32 %v1067, 4294901760
    %1069 = vmatmul.mubr.f32.gmra.mrb[0].mxu0 %v1068
    %v1070 = vpop.f32.mrb[0].mxu0
    %v1071 = vadd.f32 %v944, %v1070
    %v1072 = vpop.f32.mrb[0].mxu0
    %1073 = vmatprep.mubr.f32.mxu0 0.0
    %v1074 = vand.u32 %v561, 4294901760
    %v1075 = vsub.f32 %v561, %v1074
    %v1076 = vand.u32 %v1075, 4294901760
    %1077 = vmatmul.mubr.f32.gmra.mrb[0].mxu0 %v1076
    %v1078 = vpop.f32.mrb[0].mxu0
    %v1079 = vadd.f32 %v951, %v1078
    %v1080 = vpop.f32.mrb[0].mxu0
    %1081 = vmatprep.mubr.f32.mxu0 0.0
    %v1082 = vand.u32 %v564, 4294901760
    %v1083 = vsub.f32 %v564, %v1082
    %v1084 = vand.u32 %v1083, 4294901760
    %1085 = vmatmul.mubr.f32.gmra.mrb[0].mxu0 %v1084
    %v1086 = vpop.f32.mrb[0].mxu0
    %v1087 = vadd.f32 %v958, %v1086
    %v1088 = vpop.f32.mrb[0].mxu0
    %1089 = vmatprep.mubr.f32.mxu0 0.0
    %v1090 = vand.u32 %v567, 4294901760
    %v1091 = vsub.f32 %v567, %v1090
    %v1092 = vand.u32 %v1091, 4294901760
    %1093 = vmatmul.mubr.f32.gmra.mrb[0].mxu0 %v1092
    %v1094 = vpop.f32.mrb[0].mxu0
    %v1095 = vadd.f32 %v965, %v1094
    %v1096 = vpop.f32.mrb[0].mxu0
    %1097 = vmatprep.mubr.f32.mxu0 0.0
    %v1098 = vand.u32 %v570, 4294901760
    %v1099 = vsub.f32 %v570, %v1098
    %v1100 = vand.u32 %v1099, 4294901760
    %1101 = vmatmul.mubr.f32.gmra.mrb[0].mxu0 %v1100
    %v1102 = vpop.f32.mrb[0].mxu0
    %v1103 = vadd.f32 %v972, %v1102
    %v1104 = vpop.f32.mrb[0].mxu0
    %1105 = vmatprep.mubr.f32.mxu0 0.0
    %v1106 = vand.u32 %v573, 4294901760
    %v1107 = vsub.f32 %v573, %v1106
    %v1108 = vand.u32 %v1107, 4294901760
    %1109 = vmatmul.mubr.f32.gmra.mrb[0].mxu0 %v1108
    %v1110 = vpop.f32.mrb[0].mxu0
    %v1111 = vadd.f32 %v979, %v1110
    %v1112 = vpop.f32.mrb[0].mxu0
    %1113 = vmatprep.mubr.f32.mxu0 0.0
    %v1114 = vand.u32 %v576, 4294901760
    %v1115 = vsub.f32 %v576, %v1114
    %v1116 = vand.u32 %v1115, 4294901760
    %1117 = vmatmul.mubr.f32.gmra.mrb[0].mxu0 %v1116
    %v1118 = vpop.f32.mrb[0].mxu0
    %v1119 = vadd.f32 %v986, %v1118
    %v1120 = vpop.f32.mrb[0].mxu0
    %1121 = vdwg.mxu0
    %1122 = vmatprep.subr.mxu0 0.0
    %v1123 = vand.u32 %v543, 4294901760
    %v1124 = vsub.f32 %v543, %v1123
    %v1125 = vand.u32 %v1124, 4294901760
    %1126 = vmatpush1.msra.mxu0 %v1125
    %1127 = vmatprep.subr.mxu0 0.0
    %v1128 = vand.u32 %v544, 4294901760
    %v1129 = vsub.f32 %v544, %v1128
    %v1130 = vand.u32 %v1129, 4294901760
    %1131 = vmatpush1.msra.mxu0 %v1130
    %1132 = vmatprep.subr.mxu0 0.0
    %v1133 = vand.u32 %v545, 4294901760
    %v1134 = vsub.f32 %v545, %v1133
    %v1135 = vand.u32 %v1134, 4294901760
    %1136 = vmatpush1.msra.mxu0 %v1135
    %1137 = vmatprep.subr.mxu0 0.0
    %v1138 = vand.u32 %v546, 4294901760
    %v1139 = vsub.f32 %v546, %v1138
    %v1140 = vand.u32 %v1139, 4294901760
    %1141 = vmatpush1.msra.mxu0 %v1140
    %1142 = vmatprep.subr.mxu0 0.0
    %1143 = vmatpush1.msra.mxu0 0.0
    %1144 = vmatprep.subr.mxu0 0.0
    %1145 = vmatpush1.msra.mxu0 0.0
    %1146 = vmatprep.subr.mxu0 0.0
    %1147 = vmatpush1.msra.mxu0 0.0
    %1148 = vmatprep.subr.mxu0 0.0
    %1149 = vmatpush1.msra.mxu0 0.0
    %1150 = vmatprep.subr.mxu0 0.0
    %1151 = vmatpush1.msra.mxu0 0.0
    %1152 = vmatprep.subr.mxu0 0.0
    %1153 = vmatpush1.msra.mxu0 0.0
    %1154 = vmatprep.subr.mxu0 0.0
    %1155 = vmatpush1.msra.mxu0 0.0
    %1156 = vmatprep.subr.mxu0 0.0
    %1157 = vmatpush1.msra.mxu0 0.0
    %1158 = vmatprep.subr.mxu0 0.0
    %1159 = vmatpush1.msra.mxu0 0.0
    %1160 = vmatprep.subr.mxu0 0.0
    %1161 = vmatpush1.msra.mxu0 0.0
    %1162 = vmatprep.subr.mxu0 0.0
    %1163 = vmatpush1.msra.mxu0 0.0
    %1164 = vmatprep.subr.mxu0 0.0
    %1165 = vmatpush1.msra.mxu0 0.0
    %1166 = vmatprep.subr.mxu0 0.0
    %1167 = vmatpush1.msra.mxu0 0.0
    %1168 = vmatprep.subr.mxu0 0.0
    %1169 = vmatpush1.msra.mxu0 0.0
    %1170 = vmatprep.subr.mxu0 0.0
    %1171 = vmatpush1.msra.mxu0 0.0
    %1172 = vmatprep.subr.mxu0 0.0
    %1173 = vmatpush1.msra.mxu0 0.0
    %1174 = vmatprep.subr.mxu0 0.0
    %1175 = vmatpush1.msra.mxu0 0.0
    %1176 = vmatprep.subr.mxu0 0.0
    %1177 = vmatpush1.msra.mxu0 0.0
    %1178 = vmatprep.subr.mxu0 0.0
    %1179 = vmatpush1.msra.mxu0 0.0
    %1180 = vmatprep.subr.mxu0 0.0
    %1181 = vmatpush1.msra.mxu0 0.0
    %1182 = vmatprep.subr.mxu0 0.0
    %1183 = vmatpush1.msra.mxu0 0.0
    %1184 = vmatprep.subr.mxu0 0.0
    %1185 = vmatpush1.msra.mxu0 0.0
    %1186 = vmatprep.subr.mxu0 0.0
    %1187 = vmatpush1.msra.mxu0 0.0
    %1188 = vmatprep.subr.mxu0 0.0
    %1189 = vmatpush1.msra.mxu0 0.0
    %1190 = vmatprep.subr.mxu0 0.0
    %1191 = vmatpush1.msra.mxu0 0.0
    %1192 = vmatprep.subr.mxu0 0.0
    %1193 = vmatpush1.msra.mxu0 0.0
    %1194 = vmatprep.subr.mxu0 0.0
    %1195 = vmatpush1.msra.mxu0 0.0
    %1196 = vmatprep.subr.mxu0 0.0
    %1197 = vmatpush1.msra.mxu0 0.0
    %1198 = vmatprep.mubr.f32.mxu0 0.0
    %v1199 = vand.u32 %v555, 4294901760
    %1200 = vmatmul.mubr.f32.gmra.mrb[0].mxu0 %v1199
    %v1201 = vpop.f32.mrb[0].mxu0
    %v1202 = vadd.f32 %v1063, %v1201
    %v1203 = vpop.f32.mrb[0].mxu0
    %1204 = vmatprep.mubr.f32.mxu0 0.0
    %v1205 = vand.u32 %v558, 4294901760
    %1206 = vmatmul.mubr.f32.gmra.mrb[0].mxu0 %v1205
    %v1207 = vpop.f32.mrb[0].mxu0
    %v1208 = vadd.f32 %v1071, %v1207
    %v1209 = vpop.f32.mrb[0].mxu0
    %1210 = vmatprep.mubr.f32.mxu0 0.0
    %v1211 = vand.u32 %v561, 4294901760
    %1212 = vmatmul.mubr.f32.gmra.mrb[0].mxu0 %v1211
    %v1213 = vpop.f32.mrb[0].mxu0
    %v1214 = vadd.f32 %v1079, %v1213
    %v1215 = vpop.f32.mrb[0].mxu0
    %1216 = vmatprep.mubr.f32.mxu0 0.0
    %v1217 = vand.u32 %v564, 4294901760
    %1218 = vmatmul.mubr.f32.gmra.mrb[0].mxu0 %v1217
    %v1219 = vpop.f32.mrb[0].mxu0
    %v1220 = vadd.f32 %v1087, %v1219
    %v1221 = vpop.f32.mrb[0].mxu0
    %1222 = vmatprep.mubr.f32.mxu0 0.0
    %v1223 = vand.u32 %v567, 4294901760
    %1224 = vmatmul.mubr.f32.gmra.mrb[0].mxu0 %v1223
    %v1225 = vpop.f32.mrb[0].mxu0
    %v1226 = vadd.f32 %v1095, %v1225
    %v1227 = vpop.f32.mrb[0].mxu0
    %1228 = vmatprep.mubr.f32.mxu0 0.0
    %v1229 = vand.u32 %v570, 4294901760
    %1230 = vmatmul.mubr.f32.gmra.mrb[0].mxu0 %v1229
    %v1231 = vpop.f32.mrb[0].mxu0
    %v1232 = vadd.f32 %v1103, %v1231
    %v1233 = vpop.f32.mrb[0].mxu0
    %1234 = vmatprep.mubr.f32.mxu0 0.0
    %v1235 = vand.u32 %v573, 4294901760
    %1236 = vmatmul.mubr.f32.gmra.mrb[0].mxu0 %v1235
    %v1237 = vpop.f32.mrb[0].mxu0
    %v1238 = vadd.f32 %v1111, %v1237
    %v1239 = vpop.f32.mrb[0].mxu0
    %1240 = vmatprep.mubr.f32.mxu0 0.0
    %v1241 = vand.u32 %v576, 4294901760
    %1242 = vmatmul.mubr.f32.gmra.mrb[0].mxu0 %v1241
    %v1243 = vpop.f32.mrb[0].mxu0
    %v1244 = vadd.f32 %v1119, %v1243
    %v1245 = vpop.f32.mrb[0].mxu0
    %1246 = vdwg.mxu0
    %1247 = vmatprep.subr.mxu0 0.0
    %v1248 = vand.u32 %v543, 4294901760
    %1249 = vmatpush1.msra.mxu0 %v1248
    %1250 = vmatprep.subr.mxu0 0.0
    %v1251 = vand.u32 %v544, 4294901760
    %1252 = vmatpush1.msra.mxu0 %v1251
    %1253 = vmatprep.subr.mxu0 0.0
    %v1254 = vand.u32 %v545, 4294901760
    %1255 = vmatpush1.msra.mxu0 %v1254
    %1256 = vmatprep.subr.mxu0 0.0
    %v1257 = vand.u32 %v546, 4294901760
    %1258 = vmatpush1.msra.mxu0 %v1257
    %1259 = vmatprep.subr.mxu0 0.0
    %1260 = vmatpush1.msra.mxu0 0.0
    %1261 = vmatprep.subr.mxu0 0.0
    %1262 = vmatpush1.msra.mxu0 0.0
    %1263 = vmatprep.subr.mxu0 0.0
    %1264 = vmatpush1.msra.mxu0 0.0
    %1265 = vmatprep.subr.mxu0 0.0
    %1266 = vmatpush1.msra.mxu0 0.0
    %1267 = vmatprep.subr.mxu0 0.0
    %1268 = vmatpush1.msra.mxu0 0.0
    %1269 = vmatprep.subr.mxu0 0.0
    %1270 = vmatpush1.msra.mxu0 0.0
    %1271 = vmatprep.subr.mxu0 0.0
    %1272 = vmatpush1.msra.mxu0 0.0
    %1273 = vmatprep.subr.mxu0 0.0
    %1274 = vmatpush1.msra.mxu0 0.0
    %1275 = vmatprep.subr.mxu0 0.0
    %1276 = vmatpush1.msra.mxu0 0.0
    %1277 = vmatprep.subr.mxu0 0.0
    %1278 = vmatpush1.msra.mxu0 0.0
    %1279 = vmatprep.subr.mxu0 0.0
    %1280 = vmatpush1.msra.mxu0 0.0
    %1281 = vmatprep.subr.mxu0 0.0
    %1282 = vmatpush1.msra.mxu0 0.0
    %1283 = vmatprep.subr.mxu0 0.0
    %1284 = vmatpush1.msra.mxu0 0.0
    %1285 = vmatprep.subr.mxu0 0.0
    %1286 = vmatpush1.msra.mxu0 0.0
    %1287 = vmatprep.subr.mxu0 0.0
    %1288 = vmatpush1.msra.mxu0 0.0
    %1289 = vmatprep.subr.mxu0 0.0
    %1290 = vmatpush1.msra.mxu0 0.0
    %1291 = vmatprep.subr.mxu0 0.0
    %1292 = vmatpush1.msra.mxu0 0.0
    %1293 = vmatprep.subr.mxu0 0.0
    %1294 = vmatpush1.msra.mxu0 0.0
    %1295 = vmatprep.subr.mxu0 0.0
    %1296 = vmatpush1.msra.mxu0 0.0
    %1297 = vmatprep.subr.mxu0 0.0
    %1298 = vmatpush1.msra.mxu0 0.0
    %1299 = vmatprep.subr.mxu0 0.0
    %1300 = vmatpush1.msra.mxu0 0.0
    %1301 = vmatprep.subr.mxu0 0.0
    %1302 = vmatpush1.msra.mxu0 0.0
    %1303 = vmatprep.subr.mxu0 0.0
    %1304 = vmatpush1.msra.mxu0 0.0
    %1305 = vmatprep.subr.mxu0 0.0
    %1306 = vmatpush1.msra.mxu0 0.0
    %1307 = vmatprep.subr.mxu0 0.0
    %1308 = vmatpush1.msra.mxu0 0.0
    %1309 = vmatprep.subr.mxu0 0.0
    %1310 = vmatpush1.msra.mxu0 0.0
    %1311 = vmatprep.subr.mxu0 0.0
    %1312 = vmatpush1.msra.mxu0 0.0
    %1313 = vmatprep.subr.mxu0 0.0
    %1314 = vmatpush1.msra.mxu0 0.0
    %1315 = vmatprep.mubr.f32.mxu0 0.0
    %v1316 = vand.u32 %v555, 4294901760
    %1317 = vmatmul.mubr.f32.gmra.mrb[0].mxu0 %v1316
    %v1318 = vpop.f32.mrb[0].mxu0
    %v1319 = vadd.f32 %v1202, %v1318
    %v1320 = vpop.f32.mrb[0].mxu0
    %1321 = vmatprep.mubr.f32.mxu0 0.0
    %v1322 = vand.u32 %v558, 4294901760
    %1323 = vmatmul.mubr.f32.gmra.mrb[0].mxu0 %v1322
    %v1324 = vpop.f32.mrb[0].mxu0
    %v1325 = vadd.f32 %v1208, %v1324
    %v1326 = vpop.f32.mrb[0].mxu0
    %1327 = vmatprep.mubr.f32.mxu0 0.0
    %v1328 = vand.u32 %v561, 4294901760
    %1329 = vmatmul.mubr.f32.gmra.mrb[0].mxu0 %v1328
    %v1330 = vpop.f32.mrb[0].mxu0
    %v1331 = vadd.f32 %v1214, %v1330
    %v1332 = vpop.f32.mrb[0].mxu0
    %1333 = vmatprep.mubr.f32.mxu0 0.0
    %v1334 = vand.u32 %v564, 4294901760
    %1335 = vmatmul.mubr.f32.gmra.mrb[0].mxu0 %v1334
    %v1336 = vpop.f32.mrb[0].mxu0
    %v1337 = vadd.f32 %v1220, %v1336
    %v1338 = vpop.f32.mrb[0].mxu0
    %1339 = vmatprep.mubr.f32.mxu0 0.0
    %v1340 = vand.u32 %v567, 4294901760
    %1341 = vmatmul.mubr.f32.gmra.mrb[0].mxu0 %v1340
    %v1342 = vpop.f32.mrb[0].mxu0
    %v1343 = vadd.f32 %v1226, %v1342
    %v1344 = vpop.f32.mrb[0].mxu0
    %1345 = vmatprep.mubr.f32.mxu0 0.0
    %v1346 = vand.u32 %v570, 4294901760
    %1347 = vmatmul.mubr.f32.gmra.mrb[0].mxu0 %v1346
    %v1348 = vpop.f32.mrb[0].mxu0
    %v1349 = vadd.f32 %v1232, %v1348
    %v1350 = vpop.f32.mrb[0].mxu0
    %1351 = vmatprep.mubr.f32.mxu0 0.0
    %v1352 = vand.u32 %v573, 4294901760
    %1353 = vmatmul.mubr.f32.gmra.mrb[0].mxu0 %v1352
    %v1354 = vpop.f32.mrb[0].mxu0
    %v1355 = vadd.f32 %v1238, %v1354
    %v1356 = vpop.f32.mrb[0].mxu0
    %1357 = vmatprep.mubr.f32.mxu0 0.0
    %v1358 = vand.u32 %v576, 4294901760
    %1359 = vmatmul.mubr.f32.gmra.mrb[0].mxu0 %v1358
    %v1360 = vpop.f32.mrb[0].mxu0
    %v1361 = vadd.f32 %v1244, %v1360
    %v1362 = vpop.f32.mrb[0].mxu0
    %1363 = vdwg.mxu0
    %v1364 = vld [vmem:[%s6] sm:$0x1]
    %s1365 = sld [smem:[#allocation2]]
    %v1367 = vcombine.high %v532, %v532
    %v1369 = vunpack.c.l.s4 1966171168
    %v1370 = vunpack.c.0.s8 %v1369
    %v1371 = vlaneseq
    %v1372 = vshrl.u32 %v1371, 7
    %v1373 = vsub.s32 %v1370, %v1372
    %v1374 = vrot.slane %v532, %v1373
    %v1376 = vunpack.c.l.s4 1966171168
    %v1377 = vunpack.c.0.s8 %v1376
    %v1378 = vlaneseq
    %v1379 = vshrl.u32 %v1378, 7
    %v1380 = vsub.s32 %v1377, %v1379
    %v1381 = vrot.slane %v1367, %v1380
    %v1382 = vcombine.high %v1374, %v1374
    %v1383 = vcombine.high %v1381, %v1381
    %v1385 = vunpack.c.l.s4 1966171168
    %v1386 = vunpack.c.0.s8 %v1385
    %v1387 = vlaneseq
    %v1388 = vshrl.u32 %v1387, 7
    %v1389 = vsub.s32 %v1386, %v1388
    %v1390 = vrot.slane %v1374, %v1389
    %v1392 = vunpack.c.l.s4 1966171168
    %v1393 = vunpack.c.0.s8 %v1392
    %v1394 = vlaneseq
    %v1395 = vshrl.u32 %v1394, 7
    %v1396 = vsub.s32 %v1393, %v1395
    %v1397 = vrot.slane %v1381, %v1396
    %v1399 = vunpack.c.l.s4 1966171168
    %v1400 = vunpack.c.0.s8 %v1399
    %v1401 = vlaneseq
    %v1402 = vshrl.u32 %v1401, 7
    %v1403 = vsub.s32 %v1400, %v1402
    %v1404 = vrot.slane %v1382, %v1403
    %v1406 = vunpack.c.l.s4 1966171168
    %v1407 = vunpack.c.0.s8 %v1406
    %v1408 = vlaneseq
    %v1409 = vshrl.u32 %v1408, 7
    %v1410 = vsub.s32 %v1407, %v1409
    %v1411 = vrot.slane %v1383, %v1410
    %v1412 = vcombine.high %v1390, %v1390
    %v1413 = vcombine.high %v1397, %v1397
    %v1414 = vcombine.high %v1404, %v1404
    %v1415 = vcombine.high %v1411, %v1411
    %v1416 = vlaneseq
    %v1417 = vshrl.u32 %v1416, 7
    %v1418 = vsub.s32 0, %v1417
    %v1419 = vrot.slane %v1390, %v1418
    %v1420 = vlaneseq
    %v1421 = vshrl.u32 %v1420, 7
    %v1422 = vsub.s32 0, %v1421
    %v1423 = vrot.slane %v1404, %v1422
    %v1424 = vlaneseq
    %v1425 = vshrl.u32 %v1424, 7
    %v1426 = vsub.s32 0, %v1425
    %v1427 = vrot.slane %v1412, %v1426
    %v1428 = vlaneseq
    %v1429 = vshrl.u32 %v1428, 7
    %v1430 = vsub.s32 0, %v1429
    %v1431 = vrot.slane %v1414, %v1430
    %v1432 = vlaneseq
    %v1433 = vshrl.u32 %v1432, 7
    %v1434 = vsub.s32 0, %v1433
    %v1435 = vrot.slane %v1397, %v1434
    %v1436 = vlaneseq
    %v1437 = vshrl.u32 %v1436, 7
    %v1438 = vsub.s32 0, %v1437
    %v1439 = vrot.slane %v1411, %v1438
    %v1440 = vlaneseq
    %v1441 = vshrl.u32 %v1440, 7
    %v1442 = vsub.s32 0, %v1441
    %v1443 = vrot.slane %v1413, %v1442
    %v1444 = vlaneseq
    %v1445 = vshrl.u32 %v1444, 7
    %v1446 = vsub.s32 0, %v1445
    %v1447 = vrot.slane %v1415, %v1446
    %v1456 = vadd.f32 %v1419, %v1319
    %v1457 = vadd.f32 %v1423, %v1325
    %v1458 = vadd.f32 %v1427, %v1331
    %v1459 = vadd.f32 %v1431, %v1337
    %v1460 = vadd.f32 %v1435, %v1343
    %v1461 = vadd.f32 %v1439, %v1349
    %v1462 = vadd.f32 %v1443, %v1355
    %v1463 = vadd.f32 %v1447, %v1361
    %v1464 = vtanh.pop %v1456
    %v1465 = vtanh.pop %v1457
    %v1466 = vtanh.pop %v1458
    %v1467 = vtanh.pop %v1459
    %v1468 = vtanh.pop %v1460
    %v1469 = vtanh.pop %v1461
    %v1470 = vtanh.pop %v1462
    %v1471 = vtanh.pop %v1463
    %v1473 = vlaneseq
    %v1474 = vshrl.u32 %v1473, 7
    %v1475 = vsub.s32 0, %v1474
    %v1476 = vrot.slane %v1364, %v1475
    %v1478 = vmul.f32 %v1464, %v1476
    %v1479 = vmul.f32 %v1465, %v1476
    %v1480 = vmul.f32 %v1466, %v1476
    %v1481 = vmul.f32 %v1467, %v1476
    %v1482 = vmul.f32 %v1468, %v1476
    %v1483 = vmul.f32 %v1469, %v1476
    %v1484 = vmul.f32 %v1470, %v1476
    %v1485 = vmul.f32 %v1471, %v1476
    %v1486 = vsel %vm46, %v1478, 0.0
    %1487 = vadd.xlane.f32.xlu0 %v1486
    %v1488 = vpop.xlane.xlu0 %1487
    %v1489 = vsel %vm46, %v1479, 0.0
    %1490 = vadd.xlane.f32.xlu0 %v1489
    %v1491 = vpop.xlane.xlu0 %1490
    %v1492 = vsel %vm46, %v1480, 0.0
    %1493 = vadd.xlane.f32.xlu0 %v1492
    %v1494 = vpop.xlane.xlu0 %1493
    %v1495 = vsel %vm46, %v1481, 0.0
    %1496 = vadd.xlane.f32.xlu0 %v1495
    %v1497 = vpop.xlane.xlu0 %1496
    %v1498 = vsel %vm46, %v1482, 0.0
    %1499 = vadd.xlane.f32.xlu0 %v1498
    %v1500 = vpop.xlane.xlu0 %1499
    %v1501 = vsel %vm46, %v1483, 0.0
    %1502 = vadd.xlane.f32.xlu0 %v1501
    %v1503 = vpop.xlane.xlu0 %1502
    %v1504 = vsel %vm46, %v1484, 0.0
    %1505 = vadd.xlane.f32.xlu0 %v1504
    %v1506 = vpop.xlane.xlu0 %1505
    %v1507 = vsel %vm46, %v1485, 0.0
    %1508 = vadd.xlane.f32.xlu0 %v1507
    %v1509 = vpop.xlane.xlu0 %1508
    %v1510 = vadd.f32 %v1488, 0.0
    %v1511 = vadd.f32 %v1491, 0.0
    %v1512 = vadd.f32 %v1494, 0.0
    %v1513 = vadd.f32 %v1497, 0.0
    %v1514 = vadd.f32 %v1500, 0.0
    %v1515 = vadd.f32 %v1503, 0.0
    %v1516 = vadd.f32 %v1506, 0.0
    %v1517 = vadd.f32 %v1509, 0.0
    %v1518 = vstv %s1365
    %v1519 = vadd.f32 %v1510, %v1518
    %v1520 = vadd.f32 %v1511, %v1518
    %v1521 = vadd.f32 %v1512, %v1518
    %v1522 = vadd.f32 %v1513, %v1518
    %v1523 = vadd.f32 %v1514, %v1518
    %v1524 = vadd.f32 %v1515, %v1518
    %v1525 = vadd.f32 %v1516, %v1518
    %v1526 = vadd.f32 %v1517, %v1518
    %v1535 = vlaneseq
    %v1536 = vand.u32 %v1535, 127
    %v1537 = vlaneseq
    %v1538 = vshrl.u32 %v1537, 7
    %v1539 = vsub.s32 %v1536, %v1538
    %v1540 = vrot.slane %v1519, %v1539
    %v1541 = vlaneseq
    %v1542 = vshrl.u32 %v1541, 7
    %v1543 = vsub.s32 %v1536, %v1542
    %v1544 = vrot.slane %v1520, %v1543
    %v1545 = vlaneseq
    %v1546 = vshrl.u32 %v1545, 7
    %v1547 = vsub.s32 %v1536, %v1546
    %v1548 = vrot.slane %v1521, %v1547
    %v1549 = vlaneseq
    %v1550 = vshrl.u32 %v1549, 7
    %v1551 = vsub.s32 %v1536, %v1550
    %v1552 = vrot.slane %v1522, %v1551
    %v1553 = vlaneseq
    %v1554 = vshrl.u32 %v1553, 7
    %v1555 = vsub.s32 %v1536, %v1554
    %v1556 = vrot.slane %v1523, %v1555
    %v1557 = vlaneseq
    %v1558 = vshrl.u32 %v1557, 7
    %v1559 = vsub.s32 %v1536, %v1558
    %v1560 = vrot.slane %v1524, %v1559
    %v1561 = vlaneseq
    %v1562 = vshrl.u32 %v1561, 7
    %v1563 = vsub.s32 %v1536, %v1562
    %v1564 = vrot.slane %v1525, %v1563
    %v1565 = vlaneseq
    %v1566 = vshrl.u32 %v1565, 7
    %v1567 = vsub.s32 %v1536, %v1566
    %v1568 = vrot.slane %v1526, %v1567
    %vm1569 = vcmask 1041409
    %v1570 = vsel %vm1569, %v1544, %v1540
    %vm1571 = vcmask 1042434
    %v1572 = vsel %vm1571, %v1548, %v1570
    %vm1573 = vcmask 1043459
    %v1574 = vsel %vm1573, %v1552, %v1572
    %vm1575 = vcmask 1044484
    %v1576 = vsel %vm1575, %v1556, %v1574
    %vm1577 = vcmask 1045509
    %v1578 = vsel %vm1577, %v1560, %v1576
    %vm1579 = vcmask 1046534
    %v1580 = vsel %vm1579, %v1564, %v1578
    %vm1581 = vcmask 1047559
    %v1582 = vsel %vm1581, %v1568, %v1580
    %vm1584 = vcmask 64512
    %v1585 = vsel %vm1584, %v1582, -inf
    %1586 = vmax.xlane.f32.xlu0 %v1585
    %v1587 = vpop.xlane.xlu0 %1586
    %v1589 = vlaneseq
    %v1590 = vshrl.u32 %v1589, 7
    %v1591 = vsub.s32 0, %v1590
    %v1592 = vrot.slane %v1587, %v1591
    %v1593 = vlaneseq
    %v1594 = vshrl.u32 %v1593, 7
    %v1595 = vsub.s32 1, %v1594
    %v1596 = vrot.slane %v1587, %v1595
    %v1597 = vlaneseq
    %v1598 = vshrl.u32 %v1597, 7
    %v1599 = vsub.s32 2, %v1598
    %v1600 = vrot.slane %v1587, %v1599
    %v1601 = vlaneseq
    %v1602 = vshrl.u32 %v1601, 7
    %v1603 = vsub.s32 3, %v1602
    %v1604 = vrot.slane %v1587, %v1603
    %v1605 = vlaneseq
    %v1606 = vshrl.u32 %v1605, 7
    %v1607 = vsub.s32 4, %v1606
    %v1608 = vrot.slane %v1587, %v1607
    %v1609 = vlaneseq
    %v1610 = vshrl.u32 %v1609, 7
    %v1611 = vsub.s32 5, %v1610
    %v1612 = vrot.slane %v1587, %v1611
    %v1613 = vlaneseq
    %v1614 = vshrl.u32 %v1613, 7
    %v1615 = vsub.s32 6, %v1614
    %v1616 = vrot.slane %v1587, %v1615
    %v1617 = vlaneseq
    %v1618 = vshrl.u32 %v1617, 7
    %v1619 = vsub.s32 7, %v1618
    %v1620 = vrot.slane %v1587, %v1619
    %v1629 = vsub.f32 %v1519, %v1592
    %v1630 = vsub.f32 %v1520, %v1596
    %v1631 = vsub.f32 %v1521, %v1600
    %v1632 = vsub.f32 %v1522, %v1604
    %v1633 = vsub.f32 %v1523, %v1608
    %v1634 = vsub.f32 %v1524, %v1612
    %v1635 = vsub.f32 %v1525, %v1616
    %v1636 = vsub.f32 %v1526, %v1620
    %v1637 = vmul.f32 %v1629, 1.442695
    %v1638 = vpow.pop %v1637
    %v1639 = vmul.f32 %v1630, 1.442695
    %v1640 = vpow.pop %v1639
    %v1641 = vmul.f32 %v1631, 1.442695
    %v1642 = vpow.pop %v1641
    %v1643 = vmul.f32 %v1632, 1.442695
    %v1644 = vpow.pop %v1643
    %v1645 = vmul.f32 %v1633, 1.442695
    %v1646 = vpow.pop %v1645
    %v1647 = vmul.f32 %v1634, 1.442695
    %v1648 = vpow.pop %v1647
    %v1649 = vmul.f32 %v1635, 1.442695
    %v1650 = vpow.pop %v1649
    %v1651 = vmul.f32 %v1636, 1.442695
    %v1652 = vpow.pop %v1651
    %1661 = vset.pattern.permute.xlu0 0
    %1662 = vperm.xlu0 %1661, %v1638
    %v1663 = vpop.permute.xlu0 %1662
    %1664 = vset.pattern.permute.xlu0 0
    %1665 = vperm.xlu0 %1664, %v1640
    %v1666 = vpop.permute.xlu0 %1665
    %1667 = vset.pattern.permute.xlu0 0
    %1668 = vperm.xlu0 %1667, %v1642
    %v1669 = vpop.permute.xlu0 %1668
    %1670 = vset.pattern.permute.xlu0 0
    %1671 = vperm.xlu0 %1670, %v1644
    %v1672 = vpop.permute.xlu0 %1671
    %1673 = vset.pattern.permute.xlu0 0
    %1674 = vperm.xlu0 %1673, %v1646
    %v1675 = vpop.permute.xlu0 %1674
    %1676 = vset.pattern.permute.xlu0 0
    %1677 = vperm.xlu0 %1676, %v1648
    %v1678 = vpop.permute.xlu0 %1677
    %1679 = vset.pattern.permute.xlu0 0
    %1680 = vperm.xlu0 %1679, %v1650
    %v1681 = vpop.permute.xlu0 %1680
    %1682 = vset.pattern.permute.xlu0 0
    %1683 = vperm.xlu0 %1682, %v1652
    %v1684 = vpop.permute.xlu0 %1683
    %v1685 = vlaneseq
    %v1686 = vshrl.u32 %v1685, 7
    %v1687 = vsub.s32 %v1536, %v1686
    %v1688 = vrot.slane %v1663, %v1687
    %v1689 = vlaneseq
    %v1690 = vshrl.u32 %v1689, 7
    %v1691 = vsub.s32 %v1536, %v1690
    %v1692 = vrot.slane %v1666, %v1691
    %v1693 = vlaneseq
    %v1694 = vshrl.u32 %v1693, 7
    %v1695 = vsub.s32 %v1536, %v1694
    %v1696 = vrot.slane %v1669, %v1695
    %v1697 = vlaneseq
    %v1698 = vshrl.u32 %v1697, 7
    %v1699 = vsub.s32 %v1536, %v1698
    %v1700 = vrot.slane %v1672, %v1699
    %v1701 = vlaneseq
    %v1702 = vshrl.u32 %v1701, 7
    %v1703 = vsub.s32 %v1536, %v1702
    %v1704 = vrot.slane %v1675, %v1703
    %v1705 = vlaneseq
    %v1706 = vshrl.u32 %v1705, 7
    %v1707 = vsub.s32 %v1536, %v1706
    %v1708 = vrot.slane %v1678, %v1707
    %v1709 = vlaneseq
    %v1710 = vshrl.u32 %v1709, 7
    %v1711 = vsub.s32 %v1536, %v1710
    %v1712 = vrot.slane %v1681, %v1711
    %v1713 = vlaneseq
    %v1714 = vshrl.u32 %v1713, 7
    %v1715 = vsub.s32 %v1536, %v1714
    %v1716 = vrot.slane %v1684, %v1715
    %v1717 = vsel %vm1569, %v1692, %v1688
    %v1718 = vsel %vm1571, %v1696, %v1717
    %v1719 = vsel %vm1573, %v1700, %v1718
    %v1720 = vsel %vm1575, %v1704, %v1719
    %v1721 = vsel %vm1577, %v1708, %v1720
    %v1722 = vsel %vm1579, %v1712, %v1721
    %v1723 = vsel %vm1581, %v1716, %v1722
    %v1725 = vsel %vm1584, %v1723, 0.0
    %1726 = vadd.xlane.f32.xlu0 %v1725
    %v1727 = vpop.xlane.xlu0 %1726
    %v1729 = vlaneseq
    %v1730 = vshrl.u32 %v1729, 7
    %v1731 = vsub.s32 0, %v1730
    %v1732 = vrot.slane %v1727, %v1731
    %v1733 = vlaneseq
    %v1734 = vshrl.u32 %v1733, 7
    %v1735 = vsub.s32 1, %v1734
    %v1736 = vrot.slane %v1727, %v1735
    %v1737 = vlaneseq
    %v1738 = vshrl.u32 %v1737, 7
    %v1739 = vsub.s32 2, %v1738
    %v1740 = vrot.slane %v1727, %v1739
    %v1741 = vlaneseq
    %v1742 = vshrl.u32 %v1741, 7
    %v1743 = vsub.s32 3, %v1742
    %v1744 = vrot.slane %v1727, %v1743
    %v1745 = vlaneseq
    %v1746 = vshrl.u32 %v1745, 7
    %v1747 = vsub.s32 4, %v1746
    %v1748 = vrot.slane %v1727, %v1747
    %v1749 = vlaneseq
    %v1750 = vshrl.u32 %v1749, 7
    %v1751 = vsub.s32 5, %v1750
    %v1752 = vrot.slane %v1727, %v1751
    %v1753 = vlaneseq
    %v1754 = vshrl.u32 %v1753, 7
    %v1755 = vsub.s32 6, %v1754
    %v1756 = vrot.slane %v1727, %v1755
    %v1757 = vlaneseq
    %v1758 = vshrl.u32 %v1757, 7
    %v1759 = vsub.s32 7, %v1758
    %v1760 = vrot.slane %v1727, %v1759
    %v1769 = vrcp.pop %v1732
    %v1770 = vmul.f32 %v1638, %v1769
    %v1771 = vrcp.pop %v1736
    %v1772 = vmul.f32 %v1640, %v1771
    %v1773 = vrcp.pop %v1740
    %v1774 = vmul.f32 %v1642, %v1773
    %v1775 = vrcp.pop %v1744
    %v1776 = vmul.f32 %v1644, %v1775
    %v1777 = vrcp.pop %v1748
    %v1778 = vmul.f32 %v1646, %v1777
    %v1779 = vrcp.pop %v1752
    %v1780 = vmul.f32 %v1648, %v1779
    %v1781 = vrcp.pop %v1756
    %v1782 = vmul.f32 %v1650, %v1781
    %v1783 = vrcp.pop %v1760
    %v1784 = vmul.f32 %v1652, %v1783
    %1793 = vset.pattern.permute.xlu0 0
    %1794 = vperm.xlu0 %1793, %v1770
    %v1795 = vpop.permute.xlu0 %1794
    %1796 = vset.pattern.permute.xlu0 0
    %1797 = vperm.xlu0 %1796, %v1772
    %v1798 = vpop.permute.xlu0 %1797
    %1799 = vset.pattern.permute.xlu0 0
    %1800 = vperm.xlu0 %1799, %v1774
    %v1801 = vpop.permute.xlu0 %1800
    %1802 = vset.pattern.permute.xlu0 0
    %1803 = vperm.xlu0 %1802, %v1776
    %v1804 = vpop.permute.xlu0 %1803
    %1805 = vset.pattern.permute.xlu0 0
    %1806 = vperm.xlu0 %1805, %v1778
    %v1807 = vpop.permute.xlu0 %1806
    %1808 = vset.pattern.permute.xlu0 0
    %1809 = vperm.xlu0 %1808, %v1780
    %v1810 = vpop.permute.xlu0 %1809
    %1811 = vset.pattern.permute.xlu0 0
    %1812 = vperm.xlu0 %1811, %v1782
    %v1813 = vpop.permute.xlu0 %1812
    %1814 = vset.pattern.permute.xlu0 0
    %1815 = vperm.xlu0 %1814, %v1784
    %v1816 = vpop.permute.xlu0 %1815
    %v1817 = vlaneseq
    %v1818 = vshrl.u32 %v1817, 7
    %v1819 = vsub.s32 %v1536, %v1818
    %v1820 = vrot.slane %v1795, %v1819
    %v1821 = vlaneseq
    %v1822 = vshrl.u32 %v1821, 7
    %v1823 = vsub.s32 %v1536, %v1822
    %v1824 = vrot.slane %v1798, %v1823
    %v1825 = vlaneseq
    %v1826 = vshrl.u32 %v1825, 7
    %v1827 = vsub.s32 %v1536, %v1826
    %v1828 = vrot.slane %v1801, %v1827
    %v1829 = vlaneseq
    %v1830 = vshrl.u32 %v1829, 7
    %v1831 = vsub.s32 %v1536, %v1830
    %v1832 = vrot.slane %v1804, %v1831
    %v1833 = vlaneseq
    %v1834 = vshrl.u32 %v1833, 7
    %v1835 = vsub.s32 %v1536, %v1834
    %v1836 = vrot.slane %v1807, %v1835
    %v1837 = vlaneseq
    %v1838 = vshrl.u32 %v1837, 7
    %v1839 = vsub.s32 %v1536, %v1838
    %v1840 = vrot.slane %v1810, %v1839
    %v1841 = vlaneseq
    %v1842 = vshrl.u32 %v1841, 7
    %v1843 = vsub.s32 %v1536, %v1842
    %v1844 = vrot.slane %v1813, %v1843
    %v1845 = vlaneseq
    %v1846 = vshrl.u32 %v1845, 7
    %v1847 = vsub.s32 %v1536, %v1846
    %v1848 = vrot.slane %v1816, %v1847
    %v1849 = vsel %vm1569, %v1824, %v1820
    %v1850 = vsel %vm1571, %v1828, %v1849
    %v1851 = vsel %vm1573, %v1832, %v1850
    %v1852 = vsel %vm1575, %v1836, %v1851
    %v1853 = vsel %vm1577, %v1840, %v1852
    %v1854 = vsel %vm1579, %v1844, %v1853
    %v1855 = vsel %vm1581, %v1848, %v1854
    %1857 = vst.msk [vmem:[#allocation5] sm:$0xff] %vm1584, %v1855
    %v1866 = vmul.f32 %v1795, %v1319
    %v1867 = vmul.f32 %v1798, %v1325
    %v1868 = vmul.f32 %v1801, %v1331
    %v1869 = vmul.f32 %v1804, %v1337
    %v1870 = vmul.f32 %v1807, %v1343
    %v1871 = vmul.f32 %v1810, %v1349
    %v1872 = vmul.f32 %v1813, %v1355
    %v1873 = vmul.f32 %v1816, %v1361
    %v1874 = vsel %vm46, %v1866, 0.0
    %v1875 = vrot.slane %v1874, 4
    %v1876 = vadd.f32 %v1874, %v1875
    %v1877 = vrot.slane %v1876, 2
    %v1878 = vadd.f32 %v1876, %v1877
    %v1879 = vrot.slane %v1878, 1
    %v1880 = vadd.f32 %v1878, %v1879
    %v1881 = vsel %vm46, %v1867, 0.0
    %v1882 = vrot.slane %v1881, 4
    %v1883 = vadd.f32 %v1881, %v1882
    %v1884 = vrot.slane %v1883, 2
    %v1885 = vadd.f32 %v1883, %v1884
    %v1886 = vrot.slane %v1885, 1
    %v1887 = vadd.f32 %v1885, %v1886
    %v1888 = vsel %vm46, %v1868, 0.0
    %v1889 = vrot.slane %v1888, 4
    %v1890 = vadd.f32 %v1888, %v1889
    %v1891 = vrot.slane %v1890, 2
    %v1892 = vadd.f32 %v1890, %v1891
    %v1893 = vrot.slane %v1892, 1
    %v1894 = vadd.f32 %v1892, %v1893
    %v1895 = vsel %vm46, %v1869, 0.0
    %v1896 = vrot.slane %v1895, 4
    %v1897 = vadd.f32 %v1895, %v1896
    %v1898 = vrot.slane %v1897, 2
    %v1899 = vadd.f32 %v1897, %v1898
    %v1900 = vrot.slane %v1899, 1
    %v1901 = vadd.f32 %v1899, %v1900
    %v1902 = vsel %vm46, %v1870, 0.0
    %v1903 = vrot.slane %v1902, 4
    %v1904 = vadd.f32 %v1902, %v1903
    %v1905 = vrot.slane %v1904, 2
    %v1906 = vadd.f32 %v1904, %v1905
    %v1907 = vrot.slane %v1906, 1
    %v1908 = vadd.f32 %v1906, %v1907
    %v1909 = vsel %vm46, %v1871, 0.0
    %v1910 = vrot.slane %v1909, 4
    %v1911 = vadd.f32 %v1909, %v1910
    %v1912 = vrot.slane %v1911, 2
    %v1913 = vadd.f32 %v1911, %v1912
    %v1914 = vrot.slane %v1913, 1
    %v1915 = vadd.f32 %v1913, %v1914
    %v1916 = vsel %vm46, %v1872, 0.0
    %v1917 = vrot.slane %v1916, 4
    %v1918 = vadd.f32 %v1916, %v1917
    %v1919 = vrot.slane %v1918, 2
    %v1920 = vadd.f32 %v1918, %v1919
    %v1921 = vrot.slane %v1920, 1
    %v1922 = vadd.f32 %v1920, %v1921
    %v1923 = vsel %vm46, %v1873, 0.0
    %v1924 = vrot.slane %v1923, 4
    %v1925 = vadd.f32 %v1923, %v1924
    %v1926 = vrot.slane %v1925, 2
    %v1927 = vadd.f32 %v1925, %v1926
    %v1928 = vrot.slane %v1927, 1
    %v1929 = vadd.f32 %v1927, %v1928
    %v1938 = vsel %vm1569, %v1887, %v1880
    %v1939 = vsel %vm1571, %v1894, %v1938
    %v1940 = vsel %vm1573, %v1901, %v1939
    %v1941 = vsel %vm1575, %v1908, %v1940
    %v1942 = vsel %vm1577, %v1915, %v1941
    %v1943 = vsel %vm1579, %v1922, %v1942
    %v1944 = vsel %vm1581, %v1929, %v1943
    %1946 = vst.msk [vmem:[#allocation3] sm:$0xff] %vm46, %v1944
    // Predicated region
    $region34: #{tpu_custom_call.1} parent=1 // pred_check
      _
    $region35: #{tpu_custom_call.1} parent=1 // pred_check_branch
      %1948 = sbr.rel (0) target = $region37
    $region36: #{tpu_custom_call.1} parent=1 // pred_region
      %s1950 = ssub.s32 128, 128
      %1951 = vsyncadd [#allocation4], %s1950
      %s1953 = sshll.u32 [#allocation3], 4
      %s1954 = int_to_ptr.vmem [resolvable:$true] %s1953
      %1956 = dma.vmem_to_hbm [thread:$0]  %s1954, 128, %s8, [#allocation4]
    $region37: #{tpu_custom_call.1} parent=1 // pred_fallthru
      _
    // Predicated region
    $region38: #{tpu_custom_call.1} parent=1 // pred_check
      _
    $region39: #{tpu_custom_call.1} parent=1 // pred_check_branch
      %1958 = sbr.rel (0) target = $region41
    $region40: #{tpu_custom_call.1} parent=1 // pred_region
      %s1960 = ssub.s32 128, 128
      %1961 = vsyncadd [#allocation6], %s1960
      %s1963 = sshll.u32 [#allocation5], 4
      %s1964 = int_to_ptr.vmem [resolvable:$true] %s1963
      %1966 = dma.vmem_to_hbm [thread:$0]  %s1964, 128, %s9, [#allocation6]
    $region41: #{tpu_custom_call.1} parent=1 // pred_fallthru
      _
    // Predicated region
    $region42: #{tpu_custom_call.1} parent=1 // pred_check
      _
    $region43: #{tpu_custom_call.1} parent=1 // pred_check_branch
      %1968 = sbr.rel (0) target = $region45
    $region44: #{tpu_custom_call.1} parent=1 // pred_region
      %1969 = dma.done [#allocation4], 128
    $region45: #{tpu_custom_call.1} parent=1 // pred_fallthru
      _
    // Predicated region
    $region46: #{tpu_custom_call.1} parent=1 // pred_check
      _
    $region47: #{tpu_custom_call.1} parent=1 // pred_check_branch
      %1971 = sbr.rel (0) target = $region49
    $region48: #{tpu_custom_call.1} parent=1 // pred_region
      %1972 = dma.done [#allocation6], 128
    $region49: #{tpu_custom_call.1} parent=1 // pred_fallthru
      _
    %1973 = vsyncpa [#allocation4], 1
    %1974 = vsyncpa [#allocation6], 1

</llo_original>
